<compile_context>
chip_gen: v5e
topology: v5e:2x2
jax: 0.10.0
libtpu: 0.0.40
codegen_flags: <defaults>
</compile_context>

<pallas_src>
import math
import numpy as np

import jax
import jax.numpy as jnp
from jax.experimental import pallas as pl
from jax.experimental.pallas import tpu as pltpu

# ---- module hyper-parameters (small, consistent with the PyTorch __init__) ----
VAE_DIM    = 8
T_LEN      = 8
EMB_DIM    = 32
NUM_HEADS  = 2
TX_HIDDEN  = 64
NUM_LAYERS = 2
NORM_FIRST = True   # activation='relu', dropout=0.0


# --------------------------------------------------------------------------
# helpers
# --------------------------------------------------------------------------
def _layernorm(v, g, b, eps=1e-5):
    mu = jnp.mean(v, axis=-1, keepdims=True)
    var = jnp.mean((v - mu) ** 2, axis=-1, keepdims=True)
    return (v - mu) * jax.lax.rsqrt(var + eps) * g + b


def sinusoidal_pe(t_len, d):
    pe = np.zeros((t_len, d), dtype=np.float32)
    pos = np.arange(t_len, dtype=np.float32)[:, None]
    div = np.exp(np.arange(0, d, 2, dtype=np.float32) * (-math.log(10000.0) / d))
    pe[:, 0::2] = np.sin(pos * div)
    pe[:, 1::2] = np.cos(pos * div)
    return jnp.asarray(pe)


# --------------------------------------------------------------------------
# fused forward kernel (single program, whole-array VMEM blocks — shapes are tiny)
# TODO(synk): if (b a) ever scales up, add a row grid over the (b a) axis with a
#             sublane-multiple block, "parallel" dimension_semantics and
#             VMEM-aware block sizes (re-derived for v7x's 64 MiB).
# --------------------------------------------------------------------------
def _make_fused_kernel(num_heads, num_layers):
    def kernel(x0_ref, wps_ref, mask_ref, pe_ref, emb_w_ref, emb_b_ref,
               ln1g_ref, ln1b_ref, lnmg_ref, lnmb_ref,
               wq_ref, bq_ref, wkv_ref, bkv_ref, wo_ref, bo_ref,
               ln2g_ref, ln2b_ref, w1_ref, b1_ref, w2_ref, b2_ref,
               head_g_ref, head_b_ref, head_w_ref, head_bw_ref,
               o_ref):
        ba, d = x0_ref.shape
        t_len = mask_ref.shape[1]
        dh = d // num_heads
        scale = 1.0 / math.sqrt(dh)

        # ---- wps_embedder: Linear over [x, y, cos th, sin th, extra], done as an
        #      outer-product accumulation on the VPU (no lane-5 intermediate, no
        #      tiny-K MXU matmul) ----
        emb_w = emb_w_ref[...].astype(jnp.float32)            # (5, D)
        xw = wps_ref[0].astype(jnp.float32)                   # (BA, T)
        yw = wps_ref[1].astype(jnp.float32)
        th = wps_ref[2].astype(jnp.float32)
        ex = wps_ref[3].astype(jnp.float32)
        feats = (xw, yw, jnp.cos(th), jnp.sin(th), ex)
        acc = feats[0][:, :, None] * emb_w[0:1, :][None, :, :]
        for i in range(1, 5):
            acc = acc + feats[i][:, :, None] * emb_w[i:i + 1, :][None, :, :]
        wps_emb = acc + emb_b_ref[...][None, :, :]             # (BA, T, D)

        # ---- time encoding: wps_emb + time_pe(wps_emb) = 2*wps_emb + pe ----
        mem = 2.0 * wps_emb + pe_ref[...][None, :, :]          # (BA, T, D)

        # ---- key-padding mask: unmask fully-padded rows (inside the kernel) and
        #      build the additive bias ONCE (hoisted out of head/layer loops) ----
        mask = mask_ref[...]                                   # (BA, T), 1.0 == padded
        all_masked = jnp.min(mask, axis=-1, keepdims=True) > 0.5
        mask_eff = jnp.where(all_masked, jnp.zeros_like(mask), mask)
        bias = jnp.where(mask_eff > 0.5, jnp.float32(-1e30), jnp.float32(0.0))  # (BA, T)

        # ---- cross-attention + FF stack (unrolled, stacked per-layer weights) ----
        x = x0_ref[...].astype(jnp.float32)                    # (BA, D)
        for l in range(num_layers):
            xn = _layernorm(x, ln1g_ref[l], ln1b_ref[l])
            memn = _layernorm(mem, lnmg_ref[l], lnmb_ref[l])

            q = jnp.dot(xn, wq_ref[l], preferred_element_type=jnp.float32) + bq_ref[l]
            kv = (jnp.dot(memn.reshape(ba * t_len, d), wkv_ref[l],
                          preferred_element_type=jnp.float32)
                  + bkv_ref[l]).reshape(ba, t_len, 2 * d)       # fused K/V projection

            ctx_heads = []
            for h in range(num_heads):
                qh = q[:, h * dh:(h + 1) * dh]                          # (BA, dh)
                kh = kv[:, :, h * dh:(h + 1) * dh]                      # (BA, T, dh)
                vh = kv[:, :, d + h * dh:d + (h + 1) * dh]              # (BA, T, dh)
                # VPU/XLU attention (q-length == 1): mult + lane reduce, no tiny MXU pushes
                s = jnp.sum(qh[:, None, :] * kh, axis=-1) * scale + bias        # (BA, T)
                s = s - jnp.max(s, axis=-1, keepdims=True)
                p = jnp.exp(s)
                p = p * pl.reciprocal(jnp.sum(p, axis=-1, keepdims=True), approx=True)
                ctx_heads.append(jnp.sum(p[:, :, None] * vh, axis=1))           # (BA, dh)
            ctx = jnp.concatenate(ctx_heads, axis=-1)                           # (BA, D)
            x = x + jnp.dot(ctx, wo_ref[l],
                            preferred_element_type=jnp.float32) + bo_ref[l]

            # FF layer (norm_first): x = x + W2 relu(W1 LN(x))
            xn2 = _layernorm(x, ln2g_ref[l], ln2b_ref[l])
            h1 = jnp.maximum(jnp.dot(xn2, w1_ref[l],
                                     preferred_element_type=jnp.float32) + b1_ref[l], 0.0)
            x = x + jnp.dot(h1, w2_ref[l],
                            preferred_element_type=jnp.float32) + b2_ref[l]

        # ---- vae_z_dist head: LayerNorm -> Linear(D, 2*vae_dim) ----
        xh = _layernorm(x, head_g_ref[...], head_b_ref[...])
        o_ref[...] = (jnp.dot(xh, head_w_ref[...], preferred_element_type=jnp.float32)
                      + head_bw_ref[...]).astype(o_ref.dtype)
    return kernel


def _linear_kernel(x_ref, w_ref, b_ref, o_ref):
    """o = x @ w + b  (z_emb linear)."""
    o_ref[...] = (jnp.dot(x_ref[...].astype(jnp.float32), w_ref[...],
                          preferred_element_type=jnp.float32)
                  + b_ref[...]).astype(o_ref.dtype)


# --------------------------------------------------------------------------
# parameters (deterministic, in-script; per-layer weights stacked along L)
# --------------------------------------------------------------------------
def init_params(key):
    keys = iter(jax.random.split(key, 64))

    def w(shape, scale=0.02):
        return (scale * jax.random.normal(next(keys), shape)).astype(jnp.float32)

    z = lambda s: jnp.zeros(s, jnp.float32)
    o = lambda s: jnp.ones(s, jnp.float32)

    d, hid, vd, L = EMB_DIM, TX_HIDDEN, VAE_DIM, NUM_LAYERS
    params = {
        'emb_w': w((5, d)), 'emb_b': z((1, d)),             # Embedder (theta expanded -> 5 feats)
        'pe': sinusoidal_pe(T_LEN, d),                      # TimeEncoding
        # stacked per-layer weights (leading L axis)
        'ln1g': o((L, 1, d)), 'ln1b': z((L, 1, d)),
        'lnmg': o((L, 1, d)), 'lnmb': z((L, 1, d)),
        'wq': w((L, d, d)), 'bq': z((L, 1, d)),
        'wkv': w((L, d, 2 * d)), 'bkv': z((L, 1, 2 * d)),   # K and V fused
        'wo': w((L, d, d)), 'bo': z((L, 1, d)),
        'ln2g': o((L, 1, d)), 'ln2b': z((L, 1, d)),
        'w1': w((L, d, hid)), 'b1': z((L, 1, hid)),
        'w2': w((L, hid, d)), 'b2': z((L, 1, d)),
        # vae_z_dist head (norm_first -> LN then Linear)
        'head_g': o((1, d)), 'head_b': z((1, d)),
        'head_w': w((d, 2 * vd)), 'head_bw': z((1, 2 * vd)),
        # z_emb linear (no LN: norm_first)
        'zemb_w': w((vd, d)), 'zemb_b': z((1, d)),
    }
    return params


# --------------------------------------------------------------------------
# forward (thin JAX glue around ONE fused Pallas kernel)
# --------------------------------------------------------------------------
def vae_encoder_forward(params, agents_emb, agents_masks, gt_wps, wps_mask, sample_key):
    del agents_masks  # unused in the reference forward()
    B, T, A = wps_mask.shape
    D = EMB_DIM
    BA = B * A

    # minimal layout glue (tiny one-time copies): 'b t a c -> c (b a) t', 'b t a -> (b a) t'
    x0 = agents_emb.reshape(BA, D).astype(jnp.float32)
    wps = jnp.transpose(gt_wps, (3, 0, 2, 1)).reshape(4, BA, T).astype(jnp.float32)
    mask = jnp.transpose(wps_mask, (0, 2, 1)).reshape(BA, T).astype(jnp.float32)

    args = (x0, wps, mask, params['pe'], params['emb_w'], params['emb_b'],
            params['ln1g'], params['ln1b'], params['lnmg'], params['lnmb'],
            params['wq'], params['bq'], params['wkv'], params['bkv'],
            params['wo'], params['bo'],
            params['ln2g'], params['ln2b'],
            params['w1'], params['b1'], params['w2'], params['b2'],
            params['head_g'], params['head_b'], params['head_w'], params['head_bw'])

    kern = _make_fused_kernel(NUM_HEADS, NUM_LAYERS)
    pred = pl.pallas_call(
        kern,
        out_shape=jax.ShapeDtypeStruct((BA, 2 * VAE_DIM), jnp.float32),
        in_specs=[pl.BlockSpec(memory_space=pltpu.MemorySpace.VMEM)] * len(args),
        out_specs=pl.BlockSpec(memory_space=pltpu.MemorySpace.VMEM),
    )(*args)

    pred = pred.reshape(B, A, 2 * VAE_DIM)
    mean = pred[..., :VAE_DIM]
    std = jnp.exp(pred[..., VAE_DIM:])   # matches reference (no log-std clamping there)

    # Normal(mean, std).rsample() -> reparameterized sample via jax.random (glue)
    eps = jax.random.normal(sample_key, mean.shape, dtype=mean.dtype)
    z = mean + std * eps
    return z, (mean, std)


def embed_z(params, z):
    B, A, V = z.shape
    out = pl.pallas_call(
        _linear_kernel,
        out_shape=jax.ShapeDtypeStruct((B * A, EMB_DIM), jnp.float32),
        in_specs=[pl.BlockSpec(memory_space=pltpu.MemorySpace.VMEM)] * 3,
        out_specs=pl.BlockSpec(memory_space=pltpu.MemorySpace.VMEM),
    )(z.reshape(B * A, V).astype(jnp.float32), params['zemb_w'], params['zemb_b'])
    return out.reshape(B, A, EMB_DIM)


# --------------------------------------------------------------------------
if __name__ == "__main__":
    B, A = 2, 4
    key = jax.random.PRNGKey(0)
    kp, ka, kw, ks = jax.random.split(key, 4)

    params = init_params(kp)
    agents_emb = jax.random.normal(ka, (B, A, EMB_DIM), jnp.float32)
    agents_masks = jnp.zeros((B, A), jnp.bool_)
    gt_wps = jax.random.normal(kw, (B, T_LEN, A, 4), jnp.float32)
    # valid waypoint counts per (b, a); one agent fully padded to hit the unmask-all path
    lens = jnp.array([[5, 8, 3, 0], [8, 1, 6, 8]], jnp.int32)
    wps_mask = jnp.arange(T_LEN)[None, :, None] >= lens[:, None, :]          # (B, T, A), True=pad

    fwd = jax.jit(vae_encoder_forward)
    z, (mean, std) = fwd(params, agents_emb, agents_masks, gt_wps, wps_mask, ks)
    z = jax.block_until_ready(z)
    z_emb = jax.block_until_ready(jax.jit(embed_z)(params, z))

    assert z.shape == (B, A, VAE_DIM)
    assert mean.shape == (B, A, VAE_DIM) and std.shape == (B, A, VAE_DIM)
    assert z_emb.shape == (B, A, EMB_DIM)
    assert bool(jnp.all(jnp.isfinite(z))) and bool(jnp.all(jnp.isfinite(std)))
    print("KERNEL_OK")
</pallas_src>

<mosaic_0001>
module attributes {stable_mosaic.version = 11 : i64} {
  func.func @kernel(%arg0: memref<8x32xf32, #tpu.memory_space<vmem>>, %arg1: memref<4x8x8xf32, #tpu.memory_space<vmem>>, %arg2: memref<8x8xf32, #tpu.memory_space<vmem>>, %arg3: memref<8x32xf32, #tpu.memory_space<vmem>>, %arg4: memref<5x32xf32, #tpu.memory_space<vmem>>, %arg5: memref<1x32xf32, #tpu.memory_space<vmem>>, %arg6: memref<2x1x32xf32, #tpu.memory_space<vmem>>, %arg7: memref<2x1x32xf32, #tpu.memory_space<vmem>>, %arg8: memref<2x1x32xf32, #tpu.memory_space<vmem>>, %arg9: memref<2x1x32xf32, #tpu.memory_space<vmem>>, %arg10: memref<2x32x32xf32, #tpu.memory_space<vmem>>, %arg11: memref<2x1x32xf32, #tpu.memory_space<vmem>>, %arg12: memref<2x32x64xf32, #tpu.memory_space<vmem>>, %arg13: memref<2x1x64xf32, #tpu.memory_space<vmem>>, %arg14: memref<2x32x32xf32, #tpu.memory_space<vmem>>, %arg15: memref<2x1x32xf32, #tpu.memory_space<vmem>>, %arg16: memref<2x1x32xf32, #tpu.memory_space<vmem>>, %arg17: memref<2x1x32xf32, #tpu.memory_space<vmem>>, %arg18: memref<2x32x64xf32, #tpu.memory_space<vmem>>, %arg19: memref<2x1x64xf32, #tpu.memory_space<vmem>>, %arg20: memref<2x64x32xf32, #tpu.memory_space<vmem>>, %arg21: memref<2x1x32xf32, #tpu.memory_space<vmem>>, %arg22: memref<1x32xf32, #tpu.memory_space<vmem>>, %arg23: memref<1x32xf32, #tpu.memory_space<vmem>>, %arg24: memref<32x16xf32, #tpu.memory_space<vmem>>, %arg25: memref<1x16xf32, #tpu.memory_space<vmem>>, %arg26: memref<8x16xf32, #tpu.memory_space<vmem>>) attributes {dimension_semantics = [], scalar_prefetch = 0 : i64, scratch_operands = 0 : i64, tpu.core_type = #tpu.core_type<tc>} {
    %c0 = arith.constant 0 : index
    %c0_0 = arith.constant 0 : index
    %0 = vector.load %arg4[%c0, %c0_0] : memref<5x32xf32, #tpu.memory_space<vmem>>, vector<5x32xf32>
    %c0_1 = arith.constant 0 : index
    %c0_2 = arith.constant 0 : index
    %c0_3 = arith.constant 0 : index
    %1 = vector.load %arg1[%c0_1, %c0_2, %c0_3] : memref<4x8x8xf32, #tpu.memory_space<vmem>>, vector<1x8x8xf32>
    %2 = vector.shape_cast %1 : vector<1x8x8xf32> to vector<8x8xf32>
    %c1 = arith.constant 1 : index
    %c0_4 = arith.constant 0 : index
    %c0_5 = arith.constant 0 : index
    %3 = vector.load %arg1[%c1, %c0_4, %c0_5] : memref<4x8x8xf32, #tpu.memory_space<vmem>>, vector<1x8x8xf32>
    %4 = vector.shape_cast %3 : vector<1x8x8xf32> to vector<8x8xf32>
    %c2 = arith.constant 2 : index
    %c0_6 = arith.constant 0 : index
    %c0_7 = arith.constant 0 : index
    %5 = vector.load %arg1[%c2, %c0_6, %c0_7] : memref<4x8x8xf32, #tpu.memory_space<vmem>>, vector<1x8x8xf32>
    %6 = vector.shape_cast %5 : vector<1x8x8xf32> to vector<8x8xf32>
    %c3 = arith.constant 3 : index
    %c0_8 = arith.constant 0 : index
    %c0_9 = arith.constant 0 : index
    %7 = vector.load %arg1[%c3, %c0_8, %c0_9] : memref<4x8x8xf32, #tpu.memory_space<vmem>>, vector<1x8x8xf32>
    %8 = vector.shape_cast %7 : vector<1x8x8xf32> to vector<8x8xf32>
    %9 = math.cos %6 : vector<8x8xf32>
    %10 = math.sin %6 : vector<8x8xf32>
    %11 = vector.shape_cast %2 : vector<8x8xf32> to vector<8x8x1xf32>
    %12 = vector.extract_strided_slice %0 {offsets = [0, 0], sizes = [1, 32], strides = [1, 1]} : vector<5x32xf32> to vector<1x32xf32>
    %13 = vector.shape_cast %12 : vector<1x32xf32> to vector<1x1x32xf32>
    %14 = vector.broadcast %11 : vector<8x8x1xf32> to vector<8x8x32xf32>
    %15 = vector.broadcast %13 : vector<1x1x32xf32> to vector<8x8x32xf32>
    %16 = arith.mulf %14, %15 : vector<8x8x32xf32>
    %17 = vector.shape_cast %4 : vector<8x8xf32> to vector<8x8x1xf32>
    %18 = vector.extract_strided_slice %0 {offsets = [1, 0], sizes = [1, 32], strides = [1, 1]} : vector<5x32xf32> to vector<1x32xf32>
    %19 = vector.shape_cast %18 : vector<1x32xf32> to vector<1x1x32xf32>
    %20 = vector.broadcast %17 : vector<8x8x1xf32> to vector<8x8x32xf32>
    %21 = vector.broadcast %19 : vector<1x1x32xf32> to vector<8x8x32xf32>
    %22 = arith.mulf %20, %21 : vector<8x8x32xf32>
    %23 = arith.addf %16, %22 : vector<8x8x32xf32>
    %24 = vector.shape_cast %9 : vector<8x8xf32> to vector<8x8x1xf32>
    %25 = vector.extract_strided_slice %0 {offsets = [2, 0], sizes = [1, 32], strides = [1, 1]} : vector<5x32xf32> to vector<1x32xf32>
    %26 = vector.shape_cast %25 : vector<1x32xf32> to vector<1x1x32xf32>
    %27 = vector.broadcast %24 : vector<8x8x1xf32> to vector<8x8x32xf32>
    %28 = vector.broadcast %26 : vector<1x1x32xf32> to vector<8x8x32xf32>
    %29 = arith.mulf %27, %28 : vector<8x8x32xf32>
    %30 = arith.addf %23, %29 : vector<8x8x32xf32>
    %31 = vector.shape_cast %10 : vector<8x8xf32> to vector<8x8x1xf32>
    %32 = vector.extract_strided_slice %0 {offsets = [3, 0], sizes = [1, 32], strides = [1, 1]} : vector<5x32xf32> to vector<1x32xf32>
    %33 = vector.shape_cast %32 : vector<1x32xf32> to vector<1x1x32xf32>
    %34 = vector.broadcast %31 : vector<8x8x1xf32> to vector<8x8x32xf32>
    %35 = vector.broadcast %33 : vector<1x1x32xf32> to vector<8x8x32xf32>
    %36 = arith.mulf %34, %35 : vector<8x8x32xf32>
    %37 = arith.addf %30, %36 : vector<8x8x32xf32>
    %38 = vector.shape_cast %8 : vector<8x8xf32> to vector<8x8x1xf32>
    %39 = vector.extract_strided_slice %0 {offsets = [4, 0], sizes = [1, 32], strides = [1, 1]} : vector<5x32xf32> to vector<1x32xf32>
    %40 = vector.shape_cast %39 : vector<1x32xf32> to vector<1x1x32xf32>
    %41 = vector.broadcast %38 : vector<8x8x1xf32> to vector<8x8x32xf32>
    %42 = vector.broadcast %40 : vector<1x1x32xf32> to vector<8x8x32xf32>
    %43 = arith.mulf %41, %42 : vector<8x8x32xf32>
    %44 = arith.addf %37, %43 : vector<8x8x32xf32>
    %c0_10 = arith.constant 0 : index
    %c0_11 = arith.constant 0 : index
    %45 = vector.load %arg5[%c0_10, %c0_11] : memref<1x32xf32, #tpu.memory_space<vmem>>, vector<1x32xf32>
    %46 = vector.shape_cast %45 : vector<1x32xf32> to vector<1x1x32xf32>
    %47 = vector.broadcast %46 : vector<1x1x32xf32> to vector<8x8x32xf32>
    %48 = arith.addf %44, %47 : vector<8x8x32xf32>
    %cst = arith.constant 2.000000e+00 : f32
    %49 = vector.broadcast %cst : f32 to vector<8x8x32xf32>
    %50 = arith.mulf %49, %48 : vector<8x8x32xf32>
    %c0_12 = arith.constant 0 : index
    %c0_13 = arith.constant 0 : index
    %51 = vector.load %arg3[%c0_12, %c0_13] : memref<8x32xf32, #tpu.memory_space<vmem>>, vector<8x32xf32>
    %52 = vector.shape_cast %51 : vector<8x32xf32> to vector<1x8x32xf32>
    %53 = vector.broadcast %52 : vector<1x8x32xf32> to vector<8x8x32xf32>
    %54 = arith.addf %50, %53 : vector<8x8x32xf32>
    %c0_14 = arith.constant 0 : index
    %c0_15 = arith.constant 0 : index
    %55 = vector.load %arg2[%c0_14, %c0_15] : memref<8x8xf32, #tpu.memory_space<vmem>>, vector<8x8xf32>
    %cst_16 = arith.constant dense<0x7F800000> : vector<8xf32>
    %56 = vector.multi_reduction <minimumf>, %55, %cst_16 [1] : vector<8x8xf32> to vector<8xf32>
    %57 = vector.shape_cast %56 : vector<8xf32> to vector<8x1xf32>
    %cst_17 = arith.constant 5.000000e-01 : f32
    %58 = vector.broadcast %cst_17 : f32 to vector<8x1xf32>
    %59 = arith.cmpf ogt, %57, %58 : vector<8x1xf32>
    %cst_18 = arith.constant 0.000000e+00 : f32
    %60 = vector.broadcast %cst_18 : f32 to vector<8x8xf32>
    %61 = vector.shape_cast %59 : vector<8x1xi1> to vector<8x1xi1>
    %62 = vector.broadcast %61 : vector<8x1xi1> to vector<8x8xi1>
    %63 = arith.select %62, %60, %55 : vector<8x8xi1>, vector<8x8xf32>
    %cst_19 = arith.constant 5.000000e-01 : f32
    %64 = vector.broadcast %cst_19 : f32 to vector<8x8xf32>
    %65 = arith.cmpf ogt, %63, %64 : vector<8x8xf32>
    %cst_20 = arith.constant -1.000000e+30 : f32
    %cst_21 = arith.constant 0.000000e+00 : f32
    %66 = vector.broadcast %cst_20 : f32 to vector<8x8xf32>
    %67 = vector.broadcast %cst_21 : f32 to vector<8x8xf32>
    %68 = arith.select %65, %66, %67 : vector<8x8xi1>, vector<8x8xf32>
    %c0_22 = arith.constant 0 : index
    %c0_23 = arith.constant 0 : index
    %69 = vector.load %arg0[%c0_22, %c0_23] : memref<8x32xf32, #tpu.memory_space<vmem>>, vector<8x32xf32>
    %c0_24 = arith.constant 0 : index
    %c0_25 = arith.constant 0 : index
    %c0_26 = arith.constant 0 : index
    %70 = vector.load %arg6[%c0_24, %c0_25, %c0_26] : memref<2x1x32xf32, #tpu.memory_space<vmem>>, vector<1x1x32xf32>
    %71 = vector.shape_cast %70 : vector<1x1x32xf32> to vector<1x32xf32>
    %c0_27 = arith.constant 0 : index
    %c0_28 = arith.constant 0 : index
    %c0_29 = arith.constant 0 : index
    %72 = vector.load %arg7[%c0_27, %c0_28, %c0_29] : memref<2x1x32xf32, #tpu.memory_space<vmem>>, vector<1x1x32xf32>
    %73 = vector.shape_cast %72 : vector<1x1x32xf32> to vector<1x32xf32>
    %cst_30 = arith.constant dense<0.000000e+00> : vector<8xf32>
    %74 = vector.multi_reduction <add>, %69, %cst_30 [1] : vector<8x32xf32> to vector<8xf32>
    %75 = vector.shape_cast %74 : vector<8xf32> to vector<8x1xf32>
    %cst_31 = arith.constant 3.200000e+01 : f32
    %76 = vector.broadcast %cst_31 : f32 to vector<8x1xf32>
    %77 = arith.divf %75, %76 : vector<8x1xf32>
    %78 = vector.broadcast %77 : vector<8x1xf32> to vector<8x32xf32>
    %79 = arith.subf %69, %78 : vector<8x32xf32>
    %80 = arith.mulf %79, %79 : vector<8x32xf32>
    %cst_32 = arith.constant dense<0.000000e+00> : vector<8xf32>
    %81 = vector.multi_reduction <add>, %80, %cst_32 [1] : vector<8x32xf32> to vector<8xf32>
    %82 = vector.shape_cast %81 : vector<8xf32> to vector<8x1xf32>
    %cst_33 = arith.constant 3.200000e+01 : f32
    %83 = vector.broadcast %cst_33 : f32 to vector<8x1xf32>
    %84 = arith.divf %82, %83 : vector<8x1xf32>
    %85 = vector.broadcast %77 : vector<8x1xf32> to vector<8x32xf32>
    %86 = arith.subf %69, %85 : vector<8x32xf32>
    %cst_34 = arith.constant 9.99999974E-6 : f32
    %87 = vector.broadcast %cst_34 : f32 to vector<8x1xf32>
    %88 = arith.addf %84, %87 : vector<8x1xf32>
    %89 = math.rsqrt %88 : vector<8x1xf32>
    %90 = vector.broadcast %89 : vector<8x1xf32> to vector<8x32xf32>
    %91 = arith.mulf %86, %90 : vector<8x32xf32>
    %92 = vector.broadcast %71 : vector<1x32xf32> to vector<8x32xf32>
    %93 = arith.mulf %91, %92 : vector<8x32xf32>
    %94 = vector.broadcast %73 : vector<1x32xf32> to vector<8x32xf32>
    %95 = arith.addf %93, %94 : vector<8x32xf32>
    %c0_35 = arith.constant 0 : index
    %c0_36 = arith.constant 0 : index
    %c0_37 = arith.constant 0 : index
    %96 = vector.load %arg8[%c0_35, %c0_36, %c0_37] : memref<2x1x32xf32, #tpu.memory_space<vmem>>, vector<1x1x32xf32>
    %97 = vector.shape_cast %96 : vector<1x1x32xf32> to vector<1x32xf32>
    %c0_38 = arith.constant 0 : index
    %c0_39 = arith.constant 0 : index
    %c0_40 = arith.constant 0 : index
    %98 = vector.load %arg9[%c0_38, %c0_39, %c0_40] : memref<2x1x32xf32, #tpu.memory_space<vmem>>, vector<1x1x32xf32>
    %99 = vector.shape_cast %98 : vector<1x1x32xf32> to vector<1x32xf32>
    %cst_41 = arith.constant dense<0.000000e+00> : vector<8x8xf32>
    %100 = vector.multi_reduction <add>, %54, %cst_41 [2] : vector<8x8x32xf32> to vector<8x8xf32>
    %101 = vector.shape_cast %100 : vector<8x8xf32> to vector<8x8x1xf32>
    %cst_42 = arith.constant 3.200000e+01 : f32
    %102 = vector.broadcast %cst_42 : f32 to vector<8x8x1xf32>
    %103 = arith.divf %101, %102 : vector<8x8x1xf32>
    %104 = vector.broadcast %103 : vector<8x8x1xf32> to vector<8x8x32xf32>
    %105 = arith.subf %54, %104 : vector<8x8x32xf32>
    %106 = arith.mulf %105, %105 : vector<8x8x32xf32>
    %cst_43 = arith.constant dense<0.000000e+00> : vector<8x8xf32>
    %107 = vector.multi_reduction <add>, %106, %cst_43 [2] : vector<8x8x32xf32> to vector<8x8xf32>
    %108 = vector.shape_cast %107 : vector<8x8xf32> to vector<8x8x1xf32>
    %cst_44 = arith.constant 3.200000e+01 : f32
    %109 = vector.broadcast %cst_44 : f32 to vector<8x8x1xf32>
    %110 = arith.divf %108, %109 : vector<8x8x1xf32>
    %111 = vector.broadcast %103 : vector<8x8x1xf32> to vector<8x8x32xf32>
    %112 = arith.subf %54, %111 : vector<8x8x32xf32>
    %cst_45 = arith.constant 9.99999974E-6 : f32
    %113 = vector.broadcast %cst_45 : f32 to vector<8x8x1xf32>
    %114 = arith.addf %110, %113 : vector<8x8x1xf32>
    %115 = math.rsqrt %114 : vector<8x8x1xf32>
    %116 = vector.broadcast %115 : vector<8x8x1xf32> to vector<8x8x32xf32>
    %117 = arith.mulf %112, %116 : vector<8x8x32xf32>
    %118 = vector.shape_cast %97 : vector<1x32xf32> to vector<1x1x32xf32>
    %119 = vector.broadcast %118 : vector<1x1x32xf32> to vector<8x8x32xf32>
    %120 = arith.mulf %117, %119 : vector<8x8x32xf32>
    %121 = vector.shape_cast %99 : vector<1x32xf32> to vector<1x1x32xf32>
    %122 = vector.broadcast %121 : vector<1x1x32xf32> to vector<8x8x32xf32>
    %123 = arith.addf %120, %122 : vector<8x8x32xf32>
    %c0_46 = arith.constant 0 : index
    %c0_47 = arith.constant 0 : index
    %c0_48 = arith.constant 0 : index
    %124 = vector.load %arg10[%c0_46, %c0_47, %c0_48] : memref<2x32x32xf32, #tpu.memory_space<vmem>>, vector<1x32x32xf32>
    %125 = vector.shape_cast %124 : vector<1x32x32xf32> to vector<32x32xf32>
    %cst_49 = arith.constant dense<0.000000e+00> : vector<8x32xf32>
    %126 = tpu.matmul %95, %125, %cst_49 {dimension_numbers = #tpu.dot_dimension_numbers<[1], [0], [0], [1], [0, 0, 1, 1], [], []>} : vector<8x32xf32>, vector<32x32xf32>, vector<8x32xf32> -> vector<8x32xf32>
    %c0_50 = arith.constant 0 : index
    %c0_51 = arith.constant 0 : index
    %c0_52 = arith.constant 0 : index
    %127 = vector.load %arg11[%c0_50, %c0_51, %c0_52] : memref<2x1x32xf32, #tpu.memory_space<vmem>>, vector<1x1x32xf32>
    %128 = vector.shape_cast %127 : vector<1x1x32xf32> to vector<1x32xf32>
    %129 = vector.broadcast %128 : vector<1x32xf32> to vector<8x32xf32>
    %130 = arith.addf %126, %129 : vector<8x32xf32>
    %131 = vector.shape_cast %123 : vector<8x8x32xf32> to vector<64x32xf32>
    %c0_53 = arith.constant 0 : index
    %c0_54 = arith.constant 0 : index
    %c0_55 = arith.constant 0 : index
    %132 = vector.load %arg12[%c0_53, %c0_54, %c0_55] : memref<2x32x64xf32, #tpu.memory_space<vmem>>, vector<1x32x64xf32>
    %133 = vector.shape_cast %132 : vector<1x32x64xf32> to vector<32x64xf32>
    %cst_56 = arith.constant dense<0.000000e+00> : vector<64x64xf32>
    %134 = tpu.matmul %131, %133, %cst_56 {dimension_numbers = #tpu.dot_dimension_numbers<[1], [0], [0], [1], [0, 0, 1, 1], [], []>} : vector<64x32xf32>, vector<32x64xf32>, vector<64x64xf32> -> vector<64x64xf32>
    %c0_57 = arith.constant 0 : index
    %c0_58 = arith.constant 0 : index
    %c0_59 = arith.constant 0 : index
    %135 = vector.load %arg13[%c0_57, %c0_58, %c0_59] : memref<2x1x64xf32, #tpu.memory_space<vmem>>, vector<1x1x64xf32>
    %136 = vector.shape_cast %135 : vector<1x1x64xf32> to vector<1x64xf32>
    %137 = vector.broadcast %136 : vector<1x64xf32> to vector<64x64xf32>
    %138 = arith.addf %134, %137 : vector<64x64xf32>
    %139 = vector.shape_cast %138 : vector<64x64xf32> to vector<8x8x64xf32>
    %140 = vector.extract_strided_slice %130 {offsets = [0, 0], sizes = [8, 16], strides = [1, 1]} : vector<8x32xf32> to vector<8x16xf32>
    %141 = vector.extract_strided_slice %139 {offsets = [0, 0, 0], sizes = [8, 8, 16], strides = [1, 1, 1]} : vector<8x8x64xf32> to vector<8x8x16xf32>
    %142 = vector.extract_strided_slice %139 {offsets = [0, 0, 32], sizes = [8, 8, 16], strides = [1, 1, 1]} : vector<8x8x64xf32> to vector<8x8x16xf32>
    %143 = vector.shape_cast %140 : vector<8x16xf32> to vector<8x1x16xf32>
    %144 = vector.broadcast %143 : vector<8x1x16xf32> to vector<8x8x16xf32>
    %145 = arith.mulf %144, %141 : vector<8x8x16xf32>
    %cst_60 = arith.constant dense<0.000000e+00> : vector<8x8xf32>
    %146 = vector.multi_reduction <add>, %145, %cst_60 [2] : vector<8x8x16xf32> to vector<8x8xf32>
    %cst_61 = arith.constant 2.500000e-01 : f32
    %147 = vector.broadcast %cst_61 : f32 to vector<8x8xf32>
    %148 = arith.mulf %146, %147 : vector<8x8xf32>
    %149 = arith.addf %148, %68 : vector<8x8xf32>
    %cst_62 = arith.constant dense<0xFF800000> : vector<8xf32>
    %150 = vector.multi_reduction <maximumf>, %149, %cst_62 [1] : vector<8x8xf32> to vector<8xf32>
    %151 = vector.shape_cast %150 : vector<8xf32> to vector<8x1xf32>
    %152 = vector.broadcast %151 : vector<8x1xf32> to vector<8x8xf32>
    %153 = arith.subf %149, %152 : vector<8x8xf32>
    %154 = math.exp %153 : vector<8x8xf32>
    %cst_63 = arith.constant dense<0.000000e+00> : vector<8xf32>
    %155 = vector.multi_reduction <add>, %154, %cst_63 [1] : vector<8x8xf32> to vector<8xf32>
    %156 = vector.shape_cast %155 : vector<8xf32> to vector<8x1xf32>
    %157 = tpu.reciprocal %156 {approx = true} : vector<8x1xf32> -> vector<8x1xf32>
    %158 = vector.broadcast %157 : vector<8x1xf32> to vector<8x8xf32>
    %159 = arith.mulf %154, %158 : vector<8x8xf32>
    %160 = vector.shape_cast %159 : vector<8x8xf32> to vector<8x8x1xf32>
    %161 = vector.broadcast %160 : vector<8x8x1xf32> to vector<8x8x16xf32>
    %162 = arith.mulf %161, %142 : vector<8x8x16xf32>
    %cst_64 = arith.constant dense<0.000000e+00> : vector<8x16xf32>
    %163 = vector.multi_reduction <add>, %162, %cst_64 [1] : vector<8x8x16xf32> to vector<8x16xf32>
    %164 = vector.extract_strided_slice %130 {offsets = [0, 16], sizes = [8, 16], strides = [1, 1]} : vector<8x32xf32> to vector<8x16xf32>
    %165 = vector.extract_strided_slice %139 {offsets = [0, 0, 16], sizes = [8, 8, 16], strides = [1, 1, 1]} : vector<8x8x64xf32> to vector<8x8x16xf32>
    %166 = vector.extract_strided_slice %139 {offsets = [0, 0, 48], sizes = [8, 8, 16], strides = [1, 1, 1]} : vector<8x8x64xf32> to vector<8x8x16xf32>
    %167 = vector.shape_cast %164 : vector<8x16xf32> to vector<8x1x16xf32>
    %168 = vector.broadcast %167 : vector<8x1x16xf32> to vector<8x8x16xf32>
    %169 = arith.mulf %168, %165 : vector<8x8x16xf32>
    %cst_65 = arith.constant dense<0.000000e+00> : vector<8x8xf32>
    %170 = vector.multi_reduction <add>, %169, %cst_65 [2] : vector<8x8x16xf32> to vector<8x8xf32>
    %cst_66 = arith.constant 2.500000e-01 : f32
    %171 = vector.broadcast %cst_66 : f32 to vector<8x8xf32>
    %172 = arith.mulf %170, %171 : vector<8x8xf32>
    %173 = arith.addf %172, %68 : vector<8x8xf32>
    %cst_67 = arith.constant dense<0xFF800000> : vector<8xf32>
    %174 = vector.multi_reduction <maximumf>, %173, %cst_67 [1] : vector<8x8xf32> to vector<8xf32>
    %175 = vector.shape_cast %174 : vector<8xf32> to vector<8x1xf32>
    %176 = vector.broadcast %175 : vector<8x1xf32> to vector<8x8xf32>
    %177 = arith.subf %173, %176 : vector<8x8xf32>
    %178 = math.exp %177 : vector<8x8xf32>
    %cst_68 = arith.constant dense<0.000000e+00> : vector<8xf32>
    %179 = vector.multi_reduction <add>, %178, %cst_68 [1] : vector<8x8xf32> to vector<8xf32>
    %180 = vector.shape_cast %179 : vector<8xf32> to vector<8x1xf32>
    %181 = tpu.reciprocal %180 {approx = true} : vector<8x1xf32> -> vector<8x1xf32>
    %182 = vector.broadcast %181 : vector<8x1xf32> to vector<8x8xf32>
    %183 = arith.mulf %178, %182 : vector<8x8xf32>
    %184 = vector.shape_cast %183 : vector<8x8xf32> to vector<8x8x1xf32>
    %185 = vector.broadcast %184 : vector<8x8x1xf32> to vector<8x8x16xf32>
    %186 = arith.mulf %185, %166 : vector<8x8x16xf32>
    %cst_69 = arith.constant dense<0.000000e+00> : vector<8x16xf32>
    %187 = vector.multi_reduction <add>, %186, %cst_69 [1] : vector<8x8x16xf32> to vector<8x16xf32>
    %188 = tpu.concatenate %163, %187 in 1 : vector<8x16xf32>, vector<8x16xf32> -> vector<8x32xf32>
    %c0_70 = arith.constant 0 : index
    %c0_71 = arith.constant 0 : index
    %c0_72 = arith.constant 0 : index
    %189 = vector.load %arg14[%c0_70, %c0_71, %c0_72] : memref<2x32x32xf32, #tpu.memory_space<vmem>>, vector<1x32x32xf32>
    %190 = vector.shape_cast %189 : vector<1x32x32xf32> to vector<32x32xf32>
    %cst_73 = arith.constant dense<0.000000e+00> : vector<8x32xf32>
    %191 = tpu.matmul %188, %190, %cst_73 {dimension_numbers = #tpu.dot_dimension_numbers<[1], [0], [0], [1], [0, 0, 1, 1], [], []>} : vector<8x32xf32>, vector<32x32xf32>, vector<8x32xf32> -> vector<8x32xf32>
    %192 = arith.addf %69, %191 : vector<8x32xf32>
    %c0_74 = arith.constant 0 : index
    %c0_75 = arith.constant 0 : index
    %c0_76 = arith.constant 0 : index
    %193 = vector.load %arg15[%c0_74, %c0_75, %c0_76] : memref<2x1x32xf32, #tpu.memory_space<vmem>>, vector<1x1x32xf32>
    %194 = vector.shape_cast %193 : vector<1x1x32xf32> to vector<1x32xf32>
    %195 = vector.broadcast %194 : vector<1x32xf32> to vector<8x32xf32>
    %196 = arith.addf %192, %195 : vector<8x32xf32>
    %c0_77 = arith.constant 0 : index
    %c0_78 = arith.constant 0 : index
    %c0_79 = arith.constant 0 : index
    %197 = vector.load %arg16[%c0_77, %c0_78, %c0_79] : memref<2x1x32xf32, #tpu.memory_space<vmem>>, vector<1x1x32xf32>
    %198 = vector.shape_cast %197 : vector<1x1x32xf32> to vector<1x32xf32>
    %c0_80 = arith.constant 0 : index
    %c0_81 = arith.constant 0 : index
    %c0_82 = arith.constant 0 : index
    %199 = vector.load %arg17[%c0_80, %c0_81, %c0_82] : memref<2x1x32xf32, #tpu.memory_space<vmem>>, vector<1x1x32xf32>
    %200 = vector.shape_cast %199 : vector<1x1x32xf32> to vector<1x32xf32>
    %cst_83 = arith.constant dense<0.000000e+00> : vector<8xf32>
    %201 = vector.multi_reduction <add>, %196, %cst_83 [1] : vector<8x32xf32> to vector<8xf32>
    %202 = vector.shape_cast %201 : vector<8xf32> to vector<8x1xf32>
    %cst_84 = arith.constant 3.200000e+01 : f32
    %203 = vector.broadcast %cst_84 : f32 to vector<8x1xf32>
    %204 = arith.divf %202, %203 : vector<8x1xf32>
    %205 = vector.broadcast %204 : vector<8x1xf32> to vector<8x32xf32>
    %206 = arith.subf %196, %205 : vector<8x32xf32>
    %207 = arith.mulf %206, %206 : vector<8x32xf32>
    %cst_85 = arith.constant dense<0.000000e+00> : vector<8xf32>
    %208 = vector.multi_reduction <add>, %207, %cst_85 [1] : vector<8x32xf32> to vector<8xf32>
    %209 = vector.shape_cast %208 : vector<8xf32> to vector<8x1xf32>
    %cst_86 = arith.constant 3.200000e+01 : f32
    %210 = vector.broadcast %cst_86 : f32 to vector<8x1xf32>
    %211 = arith.divf %209, %210 : vector<8x1xf32>
    %212 = vector.broadcast %204 : vector<8x1xf32> to vector<8x32xf32>
    %213 = arith.subf %196, %212 : vector<8x32xf32>
    %cst_87 = arith.constant 9.99999974E-6 : f32
    %214 = vector.broadcast %cst_87 : f32 to vector<8x1xf32>
    %215 = arith.addf %211, %214 : vector<8x1xf32>
    %216 = math.rsqrt %215 : vector<8x1xf32>
    %217 = vector.broadcast %216 : vector<8x1xf32> to vector<8x32xf32>
    %218 = arith.mulf %213, %217 : vector<8x32xf32>
    %219 = vector.broadcast %198 : vector<1x32xf32> to vector<8x32xf32>
    %220 = arith.mulf %218, %219 : vector<8x32xf32>
    %221 = vector.broadcast %200 : vector<1x32xf32> to vector<8x32xf32>
    %222 = arith.addf %220, %221 : vector<8x32xf32>
    %c0_88 = arith.constant 0 : index
    %c0_89 = arith.constant 0 : index
    %c0_90 = arith.constant 0 : index
    %223 = vector.load %arg18[%c0_88, %c0_89, %c0_90] : memref<2x32x64xf32, #tpu.memory_space<vmem>>, vector<1x32x64xf32>
    %224 = vector.shape_cast %223 : vector<1x32x64xf32> to vector<32x64xf32>
    %cst_91 = arith.constant dense<0.000000e+00> : vector<8x64xf32>
    %225 = tpu.matmul %222, %224, %cst_91 {dimension_numbers = #tpu.dot_dimension_numbers<[1], [0], [0], [1], [0, 0, 1, 1], [], []>} : vector<8x32xf32>, vector<32x64xf32>, vector<8x64xf32> -> vector<8x64xf32>
    %c0_92 = arith.constant 0 : index
    %c0_93 = arith.constant 0 : index
    %c0_94 = arith.constant 0 : index
    %226 = vector.load %arg19[%c0_92, %c0_93, %c0_94] : memref<2x1x64xf32, #tpu.memory_space<vmem>>, vector<1x1x64xf32>
    %227 = vector.shape_cast %226 : vector<1x1x64xf32> to vector<1x64xf32>
    %228 = vector.broadcast %227 : vector<1x64xf32> to vector<8x64xf32>
    %229 = arith.addf %225, %228 : vector<8x64xf32>
    %cst_95 = arith.constant 0.000000e+00 : f32
    %230 = vector.broadcast %cst_95 : f32 to vector<8x64xf32>
    %231 = arith.maximumf %229, %230 : vector<8x64xf32>
    %c0_96 = arith.constant 0 : index
    %c0_97 = arith.constant 0 : index
    %c0_98 = arith.constant 0 : index
    %232 = vector.load %arg20[%c0_96, %c0_97, %c0_98] : memref<2x64x32xf32, #tpu.memory_space<vmem>>, vector<1x64x32xf32>
    %233 = vector.shape_cast %232 : vector<1x64x32xf32> to vector<64x32xf32>
    %cst_99 = arith.constant dense<0.000000e+00> : vector<8x32xf32>
    %234 = tpu.matmul %231, %233, %cst_99 {dimension_numbers = #tpu.dot_dimension_numbers<[1], [0], [0], [1], [0, 0, 1, 1], [], []>} : vector<8x64xf32>, vector<64x32xf32>, vector<8x32xf32> -> vector<8x32xf32>
    %235 = arith.addf %196, %234 : vector<8x32xf32>
    %c0_100 = arith.constant 0 : index
    %c0_101 = arith.constant 0 : index
    %c0_102 = arith.constant 0 : index
    %236 = vector.load %arg21[%c0_100, %c0_101, %c0_102] : memref<2x1x32xf32, #tpu.memory_space<vmem>>, vector<1x1x32xf32>
    %237 = vector.shape_cast %236 : vector<1x1x32xf32> to vector<1x32xf32>
    %238 = vector.broadcast %237 : vector<1x32xf32> to vector<8x32xf32>
    %239 = arith.addf %235, %238 : vector<8x32xf32>
    %c1_103 = arith.constant 1 : index
    %c0_104 = arith.constant 0 : index
    %c0_105 = arith.constant 0 : index
    %240 = vector.load %arg6[%c1_103, %c0_104, %c0_105] : memref<2x1x32xf32, #tpu.memory_space<vmem>>, vector<1x1x32xf32>
    %241 = vector.shape_cast %240 : vector<1x1x32xf32> to vector<1x32xf32>
    %c1_106 = arith.constant 1 : index
    %c0_107 = arith.constant 0 : index
    %c0_108 = arith.constant 0 : index
    %242 = vector.load %arg7[%c1_106, %c0_107, %c0_108] : memref<2x1x32xf32, #tpu.memory_space<vmem>>, vector<1x1x32xf32>
    %243 = vector.shape_cast %242 : vector<1x1x32xf32> to vector<1x32xf32>
    %cst_109 = arith.constant dense<0.000000e+00> : vector<8xf32>
    %244 = vector.multi_reduction <add>, %239, %cst_109 [1] : vector<8x32xf32> to vector<8xf32>
    %245 = vector.shape_cast %244 : vector<8xf32> to vector<8x1xf32>
    %cst_110 = arith.constant 3.200000e+01 : f32
    %246 = vector.broadcast %cst_110 : f32 to vector<8x1xf32>
    %247 = arith.divf %245, %246 : vector<8x1xf32>
    %248 = vector.broadcast %247 : vector<8x1xf32> to vector<8x32xf32>
    %249 = arith.subf %239, %248 : vector<8x32xf32>
    %250 = arith.mulf %249, %249 : vector<8x32xf32>
    %cst_111 = arith.constant dense<0.000000e+00> : vector<8xf32>
    %251 = vector.multi_reduction <add>, %250, %cst_111 [1] : vector<8x32xf32> to vector<8xf32>
    %252 = vector.shape_cast %251 : vector<8xf32> to vector<8x1xf32>
    %cst_112 = arith.constant 3.200000e+01 : f32
    %253 = vector.broadcast %cst_112 : f32 to vector<8x1xf32>
    %254 = arith.divf %252, %253 : vector<8x1xf32>
    %255 = vector.broadcast %247 : vector<8x1xf32> to vector<8x32xf32>
    %256 = arith.subf %239, %255 : vector<8x32xf32>
    %cst_113 = arith.constant 9.99999974E-6 : f32
    %257 = vector.broadcast %cst_113 : f32 to vector<8x1xf32>
    %258 = arith.addf %254, %257 : vector<8x1xf32>
    %259 = math.rsqrt %258 : vector<8x1xf32>
    %260 = vector.broadcast %259 : vector<8x1xf32> to vector<8x32xf32>
    %261 = arith.mulf %256, %260 : vector<8x32xf32>
    %262 = vector.broadcast %241 : vector<1x32xf32> to vector<8x32xf32>
    %263 = arith.mulf %261, %262 : vector<8x32xf32>
    %264 = vector.broadcast %243 : vector<1x32xf32> to vector<8x32xf32>
    %265 = arith.addf %263, %264 : vector<8x32xf32>
    %c1_114 = arith.constant 1 : index
    %c0_115 = arith.constant 0 : index
    %c0_116 = arith.constant 0 : index
    %266 = vector.load %arg8[%c1_114, %c0_115, %c0_116] : memref<2x1x32xf32, #tpu.memory_space<vmem>>, vector<1x1x32xf32>
    %267 = vector.shape_cast %266 : vector<1x1x32xf32> to vector<1x32xf32>
    %c1_117 = arith.constant 1 : index
    %c0_118 = arith.constant 0 : index
    %c0_119 = arith.constant 0 : index
    %268 = vector.load %arg9[%c1_117, %c0_118, %c0_119] : memref<2x1x32xf32, #tpu.memory_space<vmem>>, vector<1x1x32xf32>
    %269 = vector.shape_cast %268 : vector<1x1x32xf32> to vector<1x32xf32>
    %cst_120 = arith.constant dense<0.000000e+00> : vector<8x8xf32>
    %270 = vector.multi_reduction <add>, %54, %cst_120 [2] : vector<8x8x32xf32> to vector<8x8xf32>
    %271 = vector.shape_cast %270 : vector<8x8xf32> to vector<8x8x1xf32>
    %cst_121 = arith.constant 3.200000e+01 : f32
    %272 = vector.broadcast %cst_121 : f32 to vector<8x8x1xf32>
    %273 = arith.divf %271, %272 : vector<8x8x1xf32>
    %274 = vector.broadcast %273 : vector<8x8x1xf32> to vector<8x8x32xf32>
    %275 = arith.subf %54, %274 : vector<8x8x32xf32>
    %276 = arith.mulf %275, %275 : vector<8x8x32xf32>
    %cst_122 = arith.constant dense<0.000000e+00> : vector<8x8xf32>
    %277 = vector.multi_reduction <add>, %276, %cst_122 [2] : vector<8x8x32xf32> to vector<8x8xf32>
    %278 = vector.shape_cast %277 : vector<8x8xf32> to vector<8x8x1xf32>
    %cst_123 = arith.constant 3.200000e+01 : f32
    %279 = vector.broadcast %cst_123 : f32 to vector<8x8x1xf32>
    %280 = arith.divf %278, %279 : vector<8x8x1xf32>
    %281 = vector.broadcast %273 : vector<8x8x1xf32> to vector<8x8x32xf32>
    %282 = arith.subf %54, %281 : vector<8x8x32xf32>
    %cst_124 = arith.constant 9.99999974E-6 : f32
    %283 = vector.broadcast %cst_124 : f32 to vector<8x8x1xf32>
    %284 = arith.addf %280, %283 : vector<8x8x1xf32>
    %285 = math.rsqrt %284 : vector<8x8x1xf32>
    %286 = vector.broadcast %285 : vector<8x8x1xf32> to vector<8x8x32xf32>
    %287 = arith.mulf %282, %286 : vector<8x8x32xf32>
    %288 = vector.shape_cast %267 : vector<1x32xf32> to vector<1x1x32xf32>
    %289 = vector.broadcast %288 : vector<1x1x32xf32> to vector<8x8x32xf32>
    %290 = arith.mulf %287, %289 : vector<8x8x32xf32>
    %291 = vector.shape_cast %269 : vector<1x32xf32> to vector<1x1x32xf32>
    %292 = vector.broadcast %291 : vector<1x1x32xf32> to vector<8x8x32xf32>
    %293 = arith.addf %290, %292 : vector<8x8x32xf32>
    %c1_125 = arith.constant 1 : index
    %c0_126 = arith.constant 0 : index
    %c0_127 = arith.constant 0 : index
    %294 = vector.load %arg10[%c1_125, %c0_126, %c0_127] : memref<2x32x32xf32, #tpu.memory_space<vmem>>, vector<1x32x32xf32>
    %295 = vector.shape_cast %294 : vector<1x32x32xf32> to vector<32x32xf32>
    %cst_128 = arith.constant dense<0.000000e+00> : vector<8x32xf32>
    %296 = tpu.matmul %265, %295, %cst_128 {dimension_numbers = #tpu.dot_dimension_numbers<[1], [0], [0], [1], [0, 0, 1, 1], [], []>} : vector<8x32xf32>, vector<32x32xf32>, vector<8x32xf32> -> vector<8x32xf32>
    %c1_129 = arith.constant 1 : index
    %c0_130 = arith.constant 0 : index
    %c0_131 = arith.constant 0 : index
    %297 = vector.load %arg11[%c1_129, %c0_130, %c0_131] : memref<2x1x32xf32, #tpu.memory_space<vmem>>, vector<1x1x32xf32>
    %298 = vector.shape_cast %297 : vector<1x1x32xf32> to vector<1x32xf32>
    %299 = vector.broadcast %298 : vector<1x32xf32> to vector<8x32xf32>
    %300 = arith.addf %296, %299 : vector<8x32xf32>
    %301 = vector.shape_cast %293 : vector<8x8x32xf32> to vector<64x32xf32>
    %c1_132 = arith.constant 1 : index
    %c0_133 = arith.constant 0 : index
    %c0_134 = arith.constant 0 : index
    %302 = vector.load %arg12[%c1_132, %c0_133, %c0_134] : memref<2x32x64xf32, #tpu.memory_space<vmem>>, vector<1x32x64xf32>
    %303 = vector.shape_cast %302 : vector<1x32x64xf32> to vector<32x64xf32>
    %cst_135 = arith.constant dense<0.000000e+00> : vector<64x64xf32>
    %304 = tpu.matmul %301, %303, %cst_135 {dimension_numbers = #tpu.dot_dimension_numbers<[1], [0], [0], [1], [0, 0, 1, 1], [], []>} : vector<64x32xf32>, vector<32x64xf32>, vector<64x64xf32> -> vector<64x64xf32>
    %c1_136 = arith.constant 1 : index
    %c0_137 = arith.constant 0 : index
    %c0_138 = arith.constant 0 : index
    %305 = vector.load %arg13[%c1_136, %c0_137, %c0_138] : memref<2x1x64xf32, #tpu.memory_space<vmem>>, vector<1x1x64xf32>
    %306 = vector.shape_cast %305 : vector<1x1x64xf32> to vector<1x64xf32>
    %307 = vector.broadcast %306 : vector<1x64xf32> to vector<64x64xf32>
    %308 = arith.addf %304, %307 : vector<64x64xf32>
    %309 = vector.shape_cast %308 : vector<64x64xf32> to vector<8x8x64xf32>
    %310 = vector.extract_strided_slice %300 {offsets = [0, 0], sizes = [8, 16], strides = [1, 1]} : vector<8x32xf32> to vector<8x16xf32>
    %311 = vector.extract_strided_slice %309 {offsets = [0, 0, 0], sizes = [8, 8, 16], strides = [1, 1, 1]} : vector<8x8x64xf32> to vector<8x8x16xf32>
    %312 = vector.extract_strided_slice %309 {offsets = [0, 0, 32], sizes = [8, 8, 16], strides = [1, 1, 1]} : vector<8x8x64xf32> to vector<8x8x16xf32>
    %313 = vector.shape_cast %310 : vector<8x16xf32> to vector<8x1x16xf32>
    %314 = vector.broadcast %313 : vector<8x1x16xf32> to vector<8x8x16xf32>
    %315 = arith.mulf %314, %311 : vector<8x8x16xf32>
    %cst_139 = arith.constant dense<0.000000e+00> : vector<8x8xf32>
    %316 = vector.multi_reduction <add>, %315, %cst_139 [2] : vector<8x8x16xf32> to vector<8x8xf32>
    %cst_140 = arith.constant 2.500000e-01 : f32
    %317 = vector.broadcast %cst_140 : f32 to vector<8x8xf32>
    %318 = arith.mulf %316, %317 : vector<8x8xf32>
    %319 = arith.addf %318, %68 : vector<8x8xf32>
    %cst_141 = arith.constant dense<0xFF800000> : vector<8xf32>
    %320 = vector.multi_reduction <maximumf>, %319, %cst_141 [1] : vector<8x8xf32> to vector<8xf32>
    %321 = vector.shape_cast %320 : vector<8xf32> to vector<8x1xf32>
    %322 = vector.broadcast %321 : vector<8x1xf32> to vector<8x8xf32>
    %323 = arith.subf %319, %322 : vector<8x8xf32>
    %324 = math.exp %323 : vector<8x8xf32>
    %cst_142 = arith.constant dense<0.000000e+00> : vector<8xf32>
    %325 = vector.multi_reduction <add>, %324, %cst_142 [1] : vector<8x8xf32> to vector<8xf32>
    %326 = vector.shape_cast %325 : vector<8xf32> to vector<8x1xf32>
    %327 = tpu.reciprocal %326 {approx = true} : vector<8x1xf32> -> vector<8x1xf32>
    %328 = vector.broadcast %327 : vector<8x1xf32> to vector<8x8xf32>
    %329 = arith.mulf %324, %328 : vector<8x8xf32>
    %330 = vector.shape_cast %329 : vector<8x8xf32> to vector<8x8x1xf32>
    %331 = vector.broadcast %330 : vector<8x8x1xf32> to vector<8x8x16xf32>
    %332 = arith.mulf %331, %312 : vector<8x8x16xf32>
    %cst_143 = arith.constant dense<0.000000e+00> : vector<8x16xf32>
    %333 = vector.multi_reduction <add>, %332, %cst_143 [1] : vector<8x8x16xf32> to vector<8x16xf32>
    %334 = vector.extract_strided_slice %300 {offsets = [0, 16], sizes = [8, 16], strides = [1, 1]} : vector<8x32xf32> to vector<8x16xf32>
    %335 = vector.extract_strided_slice %309 {offsets = [0, 0, 16], sizes = [8, 8, 16], strides = [1, 1, 1]} : vector<8x8x64xf32> to vector<8x8x16xf32>
    %336 = vector.extract_strided_slice %309 {offsets = [0, 0, 48], sizes = [8, 8, 16], strides = [1, 1, 1]} : vector<8x8x64xf32> to vector<8x8x16xf32>
    %337 = vector.shape_cast %334 : vector<8x16xf32> to vector<8x1x16xf32>
    %338 = vector.broadcast %337 : vector<8x1x16xf32> to vector<8x8x16xf32>
    %339 = arith.mulf %338, %335 : vector<8x8x16xf32>
    %cst_144 = arith.constant dense<0.000000e+00> : vector<8x8xf32>
    %340 = vector.multi_reduction <add>, %339, %cst_144 [2] : vector<8x8x16xf32> to vector<8x8xf32>
    %cst_145 = arith.constant 2.500000e-01 : f32
    %341 = vector.broadcast %cst_145 : f32 to vector<8x8xf32>
    %342 = arith.mulf %340, %341 : vector<8x8xf32>
    %343 = arith.addf %342, %68 : vector<8x8xf32>
    %cst_146 = arith.constant dense<0xFF800000> : vector<8xf32>
    %344 = vector.multi_reduction <maximumf>, %343, %cst_146 [1] : vector<8x8xf32> to vector<8xf32>
    %345 = vector.shape_cast %344 : vector<8xf32> to vector<8x1xf32>
    %346 = vector.broadcast %345 : vector<8x1xf32> to vector<8x8xf32>
    %347 = arith.subf %343, %346 : vector<8x8xf32>
    %348 = math.exp %347 : vector<8x8xf32>
    %cst_147 = arith.constant dense<0.000000e+00> : vector<8xf32>
    %349 = vector.multi_reduction <add>, %348, %cst_147 [1] : vector<8x8xf32> to vector<8xf32>
    %350 = vector.shape_cast %349 : vector<8xf32> to vector<8x1xf32>
    %351 = tpu.reciprocal %350 {approx = true} : vector<8x1xf32> -> vector<8x1xf32>
    %352 = vector.broadcast %351 : vector<8x1xf32> to vector<8x8xf32>
    %353 = arith.mulf %348, %352 : vector<8x8xf32>
    %354 = vector.shape_cast %353 : vector<8x8xf32> to vector<8x8x1xf32>
    %355 = vector.broadcast %354 : vector<8x8x1xf32> to vector<8x8x16xf32>
    %356 = arith.mulf %355, %336 : vector<8x8x16xf32>
    %cst_148 = arith.constant dense<0.000000e+00> : vector<8x16xf32>
    %357 = vector.multi_reduction <add>, %356, %cst_148 [1] : vector<8x8x16xf32> to vector<8x16xf32>
    %358 = tpu.concatenate %333, %357 in 1 : vector<8x16xf32>, vector<8x16xf32> -> vector<8x32xf32>
    %c1_149 = arith.constant 1 : index
    %c0_150 = arith.constant 0 : index
    %c0_151 = arith.constant 0 : index
    %359 = vector.load %arg14[%c1_149, %c0_150, %c0_151] : memref<2x32x32xf32, #tpu.memory_space<vmem>>, vector<1x32x32xf32>
    %360 = vector.shape_cast %359 : vector<1x32x32xf32> to vector<32x32xf32>
    %cst_152 = arith.constant dense<0.000000e+00> : vector<8x32xf32>
    %361 = tpu.matmul %358, %360, %cst_152 {dimension_numbers = #tpu.dot_dimension_numbers<[1], [0], [0], [1], [0, 0, 1, 1], [], []>} : vector<8x32xf32>, vector<32x32xf32>, vector<8x32xf32> -> vector<8x32xf32>
    %362 = arith.addf %239, %361 : vector<8x32xf32>
    %c1_153 = arith.constant 1 : index
    %c0_154 = arith.constant 0 : index
    %c0_155 = arith.constant 0 : index
    %363 = vector.load %arg15[%c1_153, %c0_154, %c0_155] : memref<2x1x32xf32, #tpu.memory_space<vmem>>, vector<1x1x32xf32>
    %364 = vector.shape_cast %363 : vector<1x1x32xf32> to vector<1x32xf32>
    %365 = vector.broadcast %364 : vector<1x32xf32> to vector<8x32xf32>
    %366 = arith.addf %362, %365 : vector<8x32xf32>
    %c1_156 = arith.constant 1 : index
    %c0_157 = arith.constant 0 : index
    %c0_158 = arith.constant 0 : index
    %367 = vector.load %arg16[%c1_156, %c0_157, %c0_158] : memref<2x1x32xf32, #tpu.memory_space<vmem>>, vector<1x1x32xf32>
    %368 = vector.shape_cast %367 : vector<1x1x32xf32> to vector<1x32xf32>
    %c1_159 = arith.constant 1 : index
    %c0_160 = arith.constant 0 : index
    %c0_161 = arith.constant 0 : index
    %369 = vector.load %arg17[%c1_159, %c0_160, %c0_161] : memref<2x1x32xf32, #tpu.memory_space<vmem>>, vector<1x1x32xf32>
    %370 = vector.shape_cast %369 : vector<1x1x32xf32> to vector<1x32xf32>
    %cst_162 = arith.constant dense<0.000000e+00> : vector<8xf32>
    %371 = vector.multi_reduction <add>, %366, %cst_162 [1] : vector<8x32xf32> to vector<8xf32>
    %372 = vector.shape_cast %371 : vector<8xf32> to vector<8x1xf32>
    %cst_163 = arith.constant 3.200000e+01 : f32
    %373 = vector.broadcast %cst_163 : f32 to vector<8x1xf32>
    %374 = arith.divf %372, %373 : vector<8x1xf32>
    %375 = vector.broadcast %374 : vector<8x1xf32> to vector<8x32xf32>
    %376 = arith.subf %366, %375 : vector<8x32xf32>
    %377 = arith.mulf %376, %376 : vector<8x32xf32>
    %cst_164 = arith.constant dense<0.000000e+00> : vector<8xf32>
    %378 = vector.multi_reduction <add>, %377, %cst_164 [1] : vector<8x32xf32> to vector<8xf32>
    %379 = vector.shape_cast %378 : vector<8xf32> to vector<8x1xf32>
    %cst_165 = arith.constant 3.200000e+01 : f32
    %380 = vector.broadcast %cst_165 : f32 to vector<8x1xf32>
    %381 = arith.divf %379, %380 : vector<8x1xf32>
    %382 = vector.broadcast %374 : vector<8x1xf32> to vector<8x32xf32>
    %383 = arith.subf %366, %382 : vector<8x32xf32>
    %cst_166 = arith.constant 9.99999974E-6 : f32
    %384 = vector.broadcast %cst_166 : f32 to vector<8x1xf32>
    %385 = arith.addf %381, %384 : vector<8x1xf32>
    %386 = math.rsqrt %385 : vector<8x1xf32>
    %387 = vector.broadcast %386 : vector<8x1xf32> to vector<8x32xf32>
    %388 = arith.mulf %383, %387 : vector<8x32xf32>
    %389 = vector.broadcast %368 : vector<1x32xf32> to vector<8x32xf32>
    %390 = arith.mulf %388, %389 : vector<8x32xf32>
    %391 = vector.broadcast %370 : vector<1x32xf32> to vector<8x32xf32>
    %392 = arith.addf %390, %391 : vector<8x32xf32>
    %c1_167 = arith.constant 1 : index
    %c0_168 = arith.constant 0 : index
    %c0_169 = arith.constant 0 : index
    %393 = vector.load %arg18[%c1_167, %c0_168, %c0_169] : memref<2x32x64xf32, #tpu.memory_space<vmem>>, vector<1x32x64xf32>
    %394 = vector.shape_cast %393 : vector<1x32x64xf32> to vector<32x64xf32>
    %cst_170 = arith.constant dense<0.000000e+00> : vector<8x64xf32>
    %395 = tpu.matmul %392, %394, %cst_170 {dimension_numbers = #tpu.dot_dimension_numbers<[1], [0], [0], [1], [0, 0, 1, 1], [], []>} : vector<8x32xf32>, vector<32x64xf32>, vector<8x64xf32> -> vector<8x64xf32>
    %c1_171 = arith.constant 1 : index
    %c0_172 = arith.constant 0 : index
    %c0_173 = arith.constant 0 : index
    %396 = vector.load %arg19[%c1_171, %c0_172, %c0_173] : memref<2x1x64xf32, #tpu.memory_space<vmem>>, vector<1x1x64xf32>
    %397 = vector.shape_cast %396 : vector<1x1x64xf32> to vector<1x64xf32>
    %398 = vector.broadcast %397 : vector<1x64xf32> to vector<8x64xf32>
    %399 = arith.addf %395, %398 : vector<8x64xf32>
    %cst_174 = arith.constant 0.000000e+00 : f32
    %400 = vector.broadcast %cst_174 : f32 to vector<8x64xf32>
    %401 = arith.maximumf %399, %400 : vector<8x64xf32>
    %c1_175 = arith.constant 1 : index
    %c0_176 = arith.constant 0 : index
    %c0_177 = arith.constant 0 : index
    %402 = vector.load %arg20[%c1_175, %c0_176, %c0_177] : memref<2x64x32xf32, #tpu.memory_space<vmem>>, vector<1x64x32xf32>
    %403 = vector.shape_cast %402 : vector<1x64x32xf32> to vector<64x32xf32>
    %cst_178 = arith.constant dense<0.000000e+00> : vector<8x32xf32>
    %404 = tpu.matmul %401, %403, %cst_178 {dimension_numbers = #tpu.dot_dimension_numbers<[1], [0], [0], [1], [0, 0, 1, 1], [], []>} : vector<8x64xf32>, vector<64x32xf32>, vector<8x32xf32> -> vector<8x32xf32>
    %405 = arith.addf %366, %404 : vector<8x32xf32>
    %c1_179 = arith.constant 1 : index
    %c0_180 = arith.constant 0 : index
    %c0_181 = arith.constant 0 : index
    %406 = vector.load %arg21[%c1_179, %c0_180, %c0_181] : memref<2x1x32xf32, #tpu.memory_space<vmem>>, vector<1x1x32xf32>
    %407 = vector.shape_cast %406 : vector<1x1x32xf32> to vector<1x32xf32>
    %408 = vector.broadcast %407 : vector<1x32xf32> to vector<8x32xf32>
    %409 = arith.addf %405, %408 : vector<8x32xf32>
    %c0_182 = arith.constant 0 : index
    %c0_183 = arith.constant 0 : index
    %410 = vector.load %arg22[%c0_182, %c0_183] : memref<1x32xf32, #tpu.memory_space<vmem>>, vector<1x32xf32>
    %c0_184 = arith.constant 0 : index
    %c0_185 = arith.constant 0 : index
    %411 = vector.load %arg23[%c0_184, %c0_185] : memref<1x32xf32, #tpu.memory_space<vmem>>, vector<1x32xf32>
    %cst_186 = arith.constant dense<0.000000e+00> : vector<8xf32>
    %412 = vector.multi_reduction <add>, %409, %cst_186 [1] : vector<8x32xf32> to vector<8xf32>
    %413 = vector.shape_cast %412 : vector<8xf32> to vector<8x1xf32>
    %cst_187 = arith.constant 3.200000e+01 : f32
    %414 = vector.broadcast %cst_187 : f32 to vector<8x1xf32>
    %415 = arith.divf %413, %414 : vector<8x1xf32>
    %416 = vector.broadcast %415 : vector<8x1xf32> to vector<8x32xf32>
    %417 = arith.subf %409, %416 : vector<8x32xf32>
    %418 = arith.mulf %417, %417 : vector<8x32xf32>
    %cst_188 = arith.constant dense<0.000000e+00> : vector<8xf32>
    %419 = vector.multi_reduction <add>, %418, %cst_188 [1] : vector<8x32xf32> to vector<8xf32>
    %420 = vector.shape_cast %419 : vector<8xf32> to vector<8x1xf32>
    %cst_189 = arith.constant 3.200000e+01 : f32
    %421 = vector.broadcast %cst_189 : f32 to vector<8x1xf32>
    %422 = arith.divf %420, %421 : vector<8x1xf32>
    %423 = vector.broadcast %415 : vector<8x1xf32> to vector<8x32xf32>
    %424 = arith.subf %409, %423 : vector<8x32xf32>
    %cst_190 = arith.constant 9.99999974E-6 : f32
    %425 = vector.broadcast %cst_190 : f32 to vector<8x1xf32>
    %426 = arith.addf %422, %425 : vector<8x1xf32>
    %427 = math.rsqrt %426 : vector<8x1xf32>
    %428 = vector.broadcast %427 : vector<8x1xf32> to vector<8x32xf32>
    %429 = arith.mulf %424, %428 : vector<8x32xf32>
    %430 = vector.broadcast %410 : vector<1x32xf32> to vector<8x32xf32>
    %431 = arith.mulf %429, %430 : vector<8x32xf32>
    %432 = vector.broadcast %411 : vector<1x32xf32> to vector<8x32xf32>
    %433 = arith.addf %431, %432 : vector<8x32xf32>
    %c0_191 = arith.constant 0 : index
    %c0_192 = arith.constant 0 : index
    %434 = vector.load %arg24[%c0_191, %c0_192] : memref<32x16xf32, #tpu.memory_space<vmem>>, vector<32x16xf32>
    %cst_193 = arith.constant dense<0.000000e+00> : vector<8x16xf32>
    %435 = tpu.matmul %433, %434, %cst_193 {dimension_numbers = #tpu.dot_dimension_numbers<[1], [0], [0], [1], [0, 0, 1, 1], [], []>} : vector<8x32xf32>, vector<32x16xf32>, vector<8x16xf32> -> vector<8x16xf32>
    %c0_194 = arith.constant 0 : index
    %c0_195 = arith.constant 0 : index
    %436 = vector.load %arg25[%c0_194, %c0_195] : memref<1x16xf32, #tpu.memory_space<vmem>>, vector<1x16xf32>
    %437 = vector.broadcast %436 : vector<1x16xf32> to vector<8x16xf32>
    %438 = arith.addf %435, %437 : vector<8x16xf32>
    %c0_196 = arith.constant 0 : index
    %c0_197 = arith.constant 0 : index
    %439 = vector.load %arg26[%c0_196, %c0_197] : memref<8x16xf32, #tpu.memory_space<vmem>>, vector<8x16xf32>
    tpu.vector_store %arg26[%c0_196, %c0_197], %438 {strides = array<i32>} : memref<8x16xf32, #tpu.memory_space<vmem>>, vector<8x16xf32>,
    return
  }
}

</mosaic_0001>

<llo_original>
// kernel: vae_encoder_forward.1
$region0: #{vae_encoder_forward.1}
  #allocation0 [shape = 'u32[]', space=smem, size = 0x4, offset = 0x4, fixed_abs, tag = 'smem constant byte address 0x4 - core index']
  #allocation1 [shape = 'u32[72,128]{1,0:T(1,128)}', space=vmem, size = 0x9000, scoped, tag = 'internal scratch']
  %s0 = inlined_call_operand.vmem [shape: f32[8,32], index: 0, kind: input, shape index: {}]
  %s1 = inlined_call_operand.vmem [shape: f32[4,8,8], index: 1, kind: input, shape index: {}]
  %s2 = inlined_call_operand.vmem [shape: f32[8,8], index: 2, kind: input, shape index: {}]
  %s3 = inlined_call_operand.vmem [shape: f32[8,32], index: 3, kind: input, shape index: {}]
  %s4 = inlined_call_operand.vmem [shape: f32[5,32], index: 4, kind: input, shape index: {}]
  %s5 = inlined_call_operand.vmem [shape: f32[1,32], index: 5, kind: input, shape index: {}]
  %s6 = inlined_call_operand.vmem [shape: f32[2,1,32], index: 6, kind: input, shape index: {}]
  %s7 = inlined_call_operand.vmem [shape: f32[2,1,32], index: 7, kind: input, shape index: {}]
  %s8 = inlined_call_operand.hbm [shape: f32[2,1,32], index: 8, kind: input, shape index: {}]
  %s9 = inlined_call_operand.hbm [shape: f32[2,1,32], index: 9, kind: input, shape index: {}]
  %s10 = inlined_call_operand.vmem [shape: f32[2,32,32], index: 10, kind: input, shape index: {}]
  %s11 = inlined_call_operand.vmem [shape: f32[2,1,32], index: 11, kind: input, shape index: {}]
  %s12 = inlined_call_operand.vmem [shape: f32[2,32,64], index: 12, kind: input, shape index: {}]
  %s13 = inlined_call_operand.vmem [shape: f32[2,1,64], index: 13, kind: input, shape index: {}]
  %s14 = inlined_call_operand.vmem [shape: f32[2,32,32], index: 14, kind: input, shape index: {}]
  %s15 = inlined_call_operand.vmem [shape: f32[2,1,32], index: 15, kind: input, shape index: {}]
  %s16 = inlined_call_operand.hbm [shape: f32[2,1,32], index: 16, kind: input, shape index: {}]
  %s17 = inlined_call_operand.hbm [shape: f32[2,1,32], index: 17, kind: input, shape index: {}]
  %s18 = inlined_call_operand.vmem [shape: f32[2,32,64], index: 18, kind: input, shape index: {}]
  %s19 = inlined_call_operand.vmem [shape: f32[2,1,64], index: 19, kind: input, shape index: {}]
  %s20 = inlined_call_operand.vmem [shape: f32[2,64,32], index: 20, kind: input, shape index: {}]
  %s21 = inlined_call_operand.vmem [shape: f32[2,1,32], index: 21, kind: input, shape index: {}]
  %s22 = inlined_call_operand.hbm [shape: f32[1,32], index: 22, kind: input, shape index: {}]
  %s23 = inlined_call_operand.hbm [shape: f32[1,32], index: 23, kind: input, shape index: {}]
  %s24 = inlined_call_operand.vmem [shape: f32[32,16], index: 24, kind: input, shape index: {}]
  %s25 = inlined_call_operand.hbm [shape: f32[1,16], index: 25, kind: input, shape index: {}]
  %s26 = inlined_call_operand.vmem [shape: f32[8,16], index: 26, kind: output, shape index: {}]
  %s27 = sld [smem:[#allocation0]]
  $region142: #{vae_encoder_forward.1} parent=0
    _
  %s29 = ssub.s32 1, %s27
  %s30 = scalar_select 0, %s29, %s27
  $region1: #{vae_encoder_forward.1} parent=0
    #allocation2 [shape = 'u8[1024]{0}', space=vmem, size = 0x400, scoped, tag = 'input window, operand 8, single buffered']
    #allocation3 [shape = 's32[1]{0}', space=sflag, size = 0x4, scoped, tag = 'scoped memory for vae_encoder_forward.1']
    #allocation4 [shape = 'u8[1024]{0}', space=vmem, size = 0x400, scoped, tag = 'input window, operand 9, single buffered']
    #allocation5 [shape = 's32[1]{0}', space=sflag, size = 0x4, scoped, tag = 'scoped memory for vae_encoder_forward.1']
    #allocation6 [shape = 'u8[1024]{0}', space=vmem, size = 0x400, scoped, tag = 'input window, operand 16, single buffered']
    #allocation7 [shape = 'u8[1024]{0}', space=vmem, size = 0x400, scoped, tag = 'input window, operand 17, single buffered']
    #allocation8 [shape = 's32[1]{0}', space=sflag, size = 0x4, scoped, tag = 'scoped memory for vae_encoder_forward.1']
    #allocation9 [shape = 'u8[512]{0}', space=vmem, size = 0x400, scoped, tag = 'input window, operand 22, single buffered']
    #allocation10 [shape = 'u8[512]{0}', space=vmem, size = 0x400, scoped, tag = 'input window, operand 23, single buffered']
    #allocation11 [shape = 's32[1]{0}', space=sflag, size = 0x4, scoped, tag = 'scoped memory for vae_encoder_forward.1']
    #allocation12 [shape = 'u8[512]{0}', space=vmem, size = 0x400, scoped, tag = 'input window, operand 25, single buffered']
    %31 = vsyncpa [#allocation3], 0
    %32 = vsyncpa [#allocation5], 0
    %33 = vsyncpa [#allocation8], 0
    %34 = vsyncpa [#allocation11], 0
    // Predicated region
    $region2: #{vae_encoder_forward.1} parent=1 // pred_check
      _
    $region3: #{vae_encoder_forward.1} parent=1 // pred_check_branch
      %36 = sbr.rel (0) target = $region5
    $region4: #{vae_encoder_forward.1} parent=1 // pred_region
      _
    $region5: #{vae_encoder_forward.1} parent=1 // pred_fallthru
      _
    // Predicated region
    $region6: #{vae_encoder_forward.1} parent=1 // pred_check
      _
    $region7: #{vae_encoder_forward.1} parent=1 // pred_check_branch
      %38 = sbr.rel (0) target = $region9
    $region8: #{vae_encoder_forward.1} parent=1 // pred_region
      _
    $region9: #{vae_encoder_forward.1} parent=1 // pred_fallthru
      _
    // Predicated region
    $region10: #{vae_encoder_forward.1} parent=1 // pred_check
      _
    $region11: #{vae_encoder_forward.1} parent=1 // pred_check_branch
      %40 = sbr.rel (0) target = $region13
    $region12: #{vae_encoder_forward.1} parent=1 // pred_region
      _
    $region13: #{vae_encoder_forward.1} parent=1 // pred_fallthru
      _
    // Predicated region
    $region14: #{vae_encoder_forward.1} parent=1 // pred_check
      _
    $region15: #{vae_encoder_forward.1} parent=1 // pred_check_branch
      %42 = sbr.rel (0) target = $region17
    $region16: #{vae_encoder_forward.1} parent=1 // pred_region
      _
    $region17: #{vae_encoder_forward.1} parent=1 // pred_fallthru
      _
    // Predicated region
    $region18: #{vae_encoder_forward.1} parent=1 // pred_check
      _
    $region19: #{vae_encoder_forward.1} parent=1 // pred_check_branch
      %44 = sbr.rel (0) target = $region21
    $region20: #{vae_encoder_forward.1} parent=1 // pred_region
      _
    $region21: #{vae_encoder_forward.1} parent=1 // pred_fallthru
      _
    // Predicated region
    $region22: #{vae_encoder_forward.1} parent=1 // pred_check
      _
    $region23: #{vae_encoder_forward.1} parent=1 // pred_check_branch
      %46 = sbr.rel (0) target = $region25
    $region24: #{vae_encoder_forward.1} parent=1 // pred_region
      _
    $region25: #{vae_encoder_forward.1} parent=1 // pred_fallthru
      _
    // Predicated region
    $region26: #{vae_encoder_forward.1} parent=1 // pred_check
      _
    $region27: #{vae_encoder_forward.1} parent=1 // pred_check_branch
      %48 = sbr.rel (0) target = $region29
    $region28: #{vae_encoder_forward.1} parent=1 // pred_region
      _
    $region29: #{vae_encoder_forward.1} parent=1 // pred_fallthru
      _
    // Predicated region
    $region30: #{vae_encoder_forward.1} parent=1 // pred_check
      _
    $region31: #{vae_encoder_forward.1} parent=1 // pred_check_branch
      %50 = sbr.rel (0) target = $region33
    $region32: #{vae_encoder_forward.1} parent=1 // pred_region
      _
    $region33: #{vae_encoder_forward.1} parent=1 // pred_fallthru
      _
    // Predicated region
    $region34: #{vae_encoder_forward.1} parent=1 // pred_check
      _
    $region35: #{vae_encoder_forward.1} parent=1 // pred_check_branch
      %52 = sbr.rel (0) target = $region37
    $region36: #{vae_encoder_forward.1} parent=1 // pred_region
      %54 = vsyncadd [#allocation3], 0
      %s55 = sshll.u32 %s8, 4
      %s56 = int_to_ptr.hbm [resolvable:$true] %s55
      %s57 = sshll.u32 [#allocation2], 4
      %s58 = int_to_ptr.vmem [resolvable:$true] %s57
      %63 = dma.hbm_to_vmem [thread:$0]  %s56, 32, %s58, [#allocation3], 16, 16, 1
    $region37: #{vae_encoder_forward.1} parent=1 // pred_fallthru
      _
    // Predicated region
    $region38: #{vae_encoder_forward.1} parent=1 // pred_check
      _
    $region39: #{vae_encoder_forward.1} parent=1 // pred_check_branch
      %65 = sbr.rel (0) target = $region41
    $region40: #{vae_encoder_forward.1} parent=1 // pred_region
      %67 = vsyncadd [#allocation5], 0
      %s68 = sshll.u32 %s9, 4
      %s69 = int_to_ptr.hbm [resolvable:$true] %s68
      %s70 = sshll.u32 [#allocation4], 4
      %s71 = int_to_ptr.vmem [resolvable:$true] %s70
      %76 = dma.hbm_to_vmem [thread:$0]  %s69, 32, %s71, [#allocation5], 16, 16, 1
    $region41: #{vae_encoder_forward.1} parent=1 // pred_fallthru
      _
    // Predicated region
    $region42: #{vae_encoder_forward.1} parent=1 // pred_check
      _
    $region43: #{vae_encoder_forward.1} parent=1 // pred_check_branch
      %78 = sbr.rel (0) target = $region45
    $region44: #{vae_encoder_forward.1} parent=1 // pred_region
      _
    $region45: #{vae_encoder_forward.1} parent=1 // pred_fallthru
      _
    // Predicated region
    $region46: #{vae_encoder_forward.1} parent=1 // pred_check
      _
    $region47: #{vae_encoder_forward.1} parent=1 // pred_check_branch
      %80 = sbr.rel (0) target = $region49
    $region48: #{vae_encoder_forward.1} parent=1 // pred_region
      _
    $region49: #{vae_encoder_forward.1} parent=1 // pred_fallthru
      _
    // Predicated region
    $region50: #{vae_encoder_forward.1} parent=1 // pred_check
      _
    $region51: #{vae_encoder_forward.1} parent=1 // pred_check_branch
      %82 = sbr.rel (0) target = $region53
    $region52: #{vae_encoder_forward.1} parent=1 // pred_region
      _
    $region53: #{vae_encoder_forward.1} parent=1 // pred_fallthru
      _
    // Predicated region
    $region54: #{vae_encoder_forward.1} parent=1 // pred_check
      _
    $region55: #{vae_encoder_forward.1} parent=1 // pred_check_branch
      %84 = sbr.rel (0) target = $region57
    $region56: #{vae_encoder_forward.1} parent=1 // pred_region
      _
    $region57: #{vae_encoder_forward.1} parent=1 // pred_fallthru
      _
    // Predicated region
    $region58: #{vae_encoder_forward.1} parent=1 // pred_check
      _
    $region59: #{vae_encoder_forward.1} parent=1 // pred_check_branch
      %86 = sbr.rel (0) target = $region61
    $region60: #{vae_encoder_forward.1} parent=1 // pred_region
      _
    $region61: #{vae_encoder_forward.1} parent=1 // pred_fallthru
      _
    // Predicated region
    $region62: #{vae_encoder_forward.1} parent=1 // pred_check
      _
    $region63: #{vae_encoder_forward.1} parent=1 // pred_check_branch
      %88 = sbr.rel (0) target = $region65
    $region64: #{vae_encoder_forward.1} parent=1 // pred_region
      _
    $region65: #{vae_encoder_forward.1} parent=1 // pred_fallthru
      _
    // Predicated region
    $region66: #{vae_encoder_forward.1} parent=1 // pred_check
      _
    $region67: #{vae_encoder_forward.1} parent=1 // pred_check_branch
      %90 = sbr.rel (0) target = $region69
    $region68: #{vae_encoder_forward.1} parent=1 // pred_region
      %92 = vsyncadd [#allocation5], 0
      %s93 = sshll.u32 %s16, 4
      %s94 = int_to_ptr.hbm [resolvable:$true] %s93
      %s95 = sshll.u32 [#allocation6], 4
      %s96 = int_to_ptr.vmem [resolvable:$true] %s95
      %101 = dma.hbm_to_vmem [thread:$0]  %s94, 32, %s96, [#allocation5], 16, 16, 1
    $region69: #{vae_encoder_forward.1} parent=1 // pred_fallthru
      _
    // Predicated region
    $region70: #{vae_encoder_forward.1} parent=1 // pred_check
      _
    $region71: #{vae_encoder_forward.1} parent=1 // pred_check_branch
      %103 = sbr.rel (0) target = $region73
    $region72: #{vae_encoder_forward.1} parent=1 // pred_region
      %105 = vsyncadd [#allocation8], 0
      %s106 = sshll.u32 %s17, 4
      %s107 = int_to_ptr.hbm [resolvable:$true] %s106
      %s108 = sshll.u32 [#allocation7], 4
      %s109 = int_to_ptr.vmem [resolvable:$true] %s108
      %114 = dma.hbm_to_vmem [thread:$0]  %s107, 32, %s109, [#allocation8], 16, 16, 1
    $region73: #{vae_encoder_forward.1} parent=1 // pred_fallthru
      _
    // Predicated region
    $region74: #{vae_encoder_forward.1} parent=1 // pred_check
      _
    $region75: #{vae_encoder_forward.1} parent=1 // pred_check_branch
      %116 = sbr.rel (0) target = $region77
    $region76: #{vae_encoder_forward.1} parent=1 // pred_region
      _
    $region77: #{vae_encoder_forward.1} parent=1 // pred_fallthru
      _
    // Predicated region
    $region78: #{vae_encoder_forward.1} parent=1 // pred_check
      _
    $region79: #{vae_encoder_forward.1} parent=1 // pred_check_branch
      %118 = sbr.rel (0) target = $region81
    $region80: #{vae_encoder_forward.1} parent=1 // pred_region
      _
    $region81: #{vae_encoder_forward.1} parent=1 // pred_fallthru
      _
    // Predicated region
    $region82: #{vae_encoder_forward.1} parent=1 // pred_check
      _
    $region83: #{vae_encoder_forward.1} parent=1 // pred_check_branch
      %120 = sbr.rel (0) target = $region85
    $region84: #{vae_encoder_forward.1} parent=1 // pred_region
      _
    $region85: #{vae_encoder_forward.1} parent=1 // pred_fallthru
      _
    // Predicated region
    $region86: #{vae_encoder_forward.1} parent=1 // pred_check
      _
    $region87: #{vae_encoder_forward.1} parent=1 // pred_check_branch
      %122 = sbr.rel (0) target = $region89
    $region88: #{vae_encoder_forward.1} parent=1 // pred_region
      _
    $region89: #{vae_encoder_forward.1} parent=1 // pred_fallthru
      _
    // Predicated region
    $region90: #{vae_encoder_forward.1} parent=1 // pred_check
      _
    $region91: #{vae_encoder_forward.1} parent=1 // pred_check_branch
      %124 = sbr.rel (0) target = $region93
    $region92: #{vae_encoder_forward.1} parent=1 // pred_region
      %126 = vsyncadd [#allocation8], 0
      %s128 = sshll.u32 %s22, 4
      %s129 = int_to_ptr.hbm [resolvable:$true] %s128
      %s130 = sshll.u32 [#allocation9], 4
      %s131 = int_to_ptr.vmem [resolvable:$true] %s130
      %133 = dma.hbm_to_vmem [thread:$0]  %s129, 16, %s131, [#allocation8]
    $region93: #{vae_encoder_forward.1} parent=1 // pred_fallthru
      _
    // Predicated region
    $region94: #{vae_encoder_forward.1} parent=1 // pred_check
      _
    $region95: #{vae_encoder_forward.1} parent=1 // pred_check_branch
      %135 = sbr.rel (0) target = $region97
    $region96: #{vae_encoder_forward.1} parent=1 // pred_region
      %137 = vsyncadd [#allocation11], 0
      %s139 = sshll.u32 %s23, 4
      %s140 = int_to_ptr.hbm [resolvable:$true] %s139
      %s141 = sshll.u32 [#allocation10], 4
      %s142 = int_to_ptr.vmem [resolvable:$true] %s141
      %144 = dma.hbm_to_vmem [thread:$0]  %s140, 16, %s142, [#allocation11]
    $region97: #{vae_encoder_forward.1} parent=1 // pred_fallthru
      _
    // Predicated region
    $region98: #{vae_encoder_forward.1} parent=1 // pred_check
      _
    $region99: #{vae_encoder_forward.1} parent=1 // pred_check_branch
      %146 = sbr.rel (0) target = $region101
    $region100: #{vae_encoder_forward.1} parent=1 // pred_region
      _
    $region101: #{vae_encoder_forward.1} parent=1 // pred_fallthru
      _
    // Predicated region
    $region102: #{vae_encoder_forward.1} parent=1 // pred_check
      _
    $region103: #{vae_encoder_forward.1} parent=1 // pred_check_branch
      %148 = sbr.rel (0) target = $region105
    $region104: #{vae_encoder_forward.1} parent=1 // pred_region
      %150 = vsyncadd [#allocation11], 0
      %s152 = sshll.u32 %s25, 4
      %s153 = int_to_ptr.hbm [resolvable:$true] %s152
      %s154 = sshll.u32 [#allocation12], 4
      %s155 = int_to_ptr.vmem [resolvable:$true] %s154
      %157 = dma.hbm_to_vmem [thread:$0]  %s153, 16, %s155, [#allocation11]
    $region105: #{vae_encoder_forward.1} parent=1 // pred_fallthru
      _
    // Predicated region
    $region106: #{vae_encoder_forward.1} parent=1 // pred_check
      _
    $region107: #{vae_encoder_forward.1} parent=1 // pred_check_branch
      %159 = sbr.rel (0) target = $region109
    $region108: #{vae_encoder_forward.1} parent=1 // pred_region
      %161 = dma.done [#allocation3], 32
    $region109: #{vae_encoder_forward.1} parent=1 // pred_fallthru
      _
    // Predicated region
    $region110: #{vae_encoder_forward.1} parent=1 // pred_check
      _
    $region111: #{vae_encoder_forward.1} parent=1 // pred_check_branch
      %163 = sbr.rel (0) target = $region113
    $region112: #{vae_encoder_forward.1} parent=1 // pred_region
      %165 = dma.done [#allocation5], 32
    $region113: #{vae_encoder_forward.1} parent=1 // pred_fallthru
      _
    // Predicated region
    $region114: #{vae_encoder_forward.1} parent=1 // pred_check
      _
    $region115: #{vae_encoder_forward.1} parent=1 // pred_check_branch
      %167 = sbr.rel (0) target = $region117
    $region116: #{vae_encoder_forward.1} parent=1 // pred_region
      %169 = dma.done [#allocation5], 32
    $region117: #{vae_encoder_forward.1} parent=1 // pred_fallthru
      _
    // Predicated region
    $region118: #{vae_encoder_forward.1} parent=1 // pred_check
      _
    $region119: #{vae_encoder_forward.1} parent=1 // pred_check_branch
      %171 = sbr.rel (0) target = $region121
    $region120: #{vae_encoder_forward.1} parent=1 // pred_region
      %173 = dma.done [#allocation8], 32
    $region121: #{vae_encoder_forward.1} parent=1 // pred_fallthru
      _
    // Predicated region
    $region122: #{vae_encoder_forward.1} parent=1 // pred_check
      _
    $region123: #{vae_encoder_forward.1} parent=1 // pred_check_branch
      %175 = sbr.rel (0) target = $region125
    $region124: #{vae_encoder_forward.1} parent=1 // pred_region
      %177 = dma.done [#allocation8], 16
    $region125: #{vae_encoder_forward.1} parent=1 // pred_fallthru
      _
    // Predicated region
    $region126: #{vae_encoder_forward.1} parent=1 // pred_check
      _
    $region127: #{vae_encoder_forward.1} parent=1 // pred_check_branch
      %179 = sbr.rel (0) target = $region129
    $region128: #{vae_encoder_forward.1} parent=1 // pred_region
      %181 = dma.done [#allocation11], 16
    $region129: #{vae_encoder_forward.1} parent=1 // pred_fallthru
      _
    // Predicated region
    $region130: #{vae_encoder_forward.1} parent=1 // pred_check
      _
    $region131: #{vae_encoder_forward.1} parent=1 // pred_check_branch
      %183 = sbr.rel (0) target = $region133
    $region132: #{vae_encoder_forward.1} parent=1 // pred_region
      %185 = dma.done [#allocation11], 16
    $region133: #{vae_encoder_forward.1} parent=1 // pred_fallthru
      _
    %v186 = vld [vmem:[%s4] sm:$0x1f]
    %v187 = vld [vmem:[%s1] sm:$0xff]
    %s188 = scalar_lea.vmem %s1, 8
    %v189 = vld [vmem:[%s188] sm:$0xff]
    %s190 = scalar_lea.vmem %s1, 16
    %v191 = vld [vmem:[%s190] sm:$0xff]
    %s192 = scalar_lea.vmem %s1, 24
    %v193 = vld [vmem:[%s192] sm:$0xff]
    %v194 = vand.u32 2147483647, %v191
    %vm195 = vcmp.le.f32.partialorder %v194, 0.7853982
    %vm196 = vcmp.lt.s32.totalorder %v191, 0
    %v197 = vand.u32 %v191, 2139095040
    %v198 = vshrl.u32 %v197, 23
    %v199 = vsub.s32 %v198, 127
    %v200 = vand.u32 2147483647, %v191
    %v201 = vand.u32 %v200, 8388607
    %v202 = vor.u32 %v201, 8388608
    %v203 = vsub.s32 0, %v202
    %v204 = vadd.s32 %v199, 1
    %vm205 = vcmp.gt.s32.totalorder %v204, 0
    %v206 = vsel %vm205, %v204, 0
    %v207 = vshrl.u32 %v206, 5
    %v208 = vand.u32 %v206, 31
    %v209 = vsub.s32 32, %v208
    %v210 = vshrl.u32 683565275, %v209
    %v211 = vshll.u32 683565275, %v208
    %v212 = vshrl.u32 2475754826, %v209
    %v213 = vor.u32 %v211, %v212
    %v214 = vshll.u32 2475754826, %v208
    %v215 = vshrl.u32 2131351028, %v209
    %v216 = vor.u32 %v214, %v215
    %v217 = vshll.u32 2131351028, %v208
    %v218 = vshrl.u32 2102212464, %v209
    %v219 = vor.u32 %v217, %v218
    %v220 = vshll.u32 2102212464, %v208
    %v221 = vshrl.u32 920167782, %v209
    %v222 = vor.u32 %v220, %v221
    %v223 = vshll.u32 920167782, %v208
    %v224 = vshrl.u32 1326507024, %v209
    %v225 = vor.u32 %v223, %v224
    %vm226 = vcmp.lt.s32.totalorder %v207, 1
    %vm227 = vcmp.lt.s32.totalorder %v207, 2
    %vm228 = vcmp.lt.s32.totalorder %v207, 3
    %vm229 = vcmp.lt.s32.totalorder %v207, 4
    %v230 = vsel %vm226, %v210, %v213
    %v231 = vsel %vm229, %v219, 2102212464
    %v232 = vsel %vm228, %v216, %v231
    %v233 = vsel %vm227, %v230, %v232
    %v234 = vsel %vm226, %v213, %v216
    %v235 = vsel %vm229, %v222, 920167782
    %v236 = vsel %vm228, %v219, %v235
    %v237 = vsel %vm227, %v234, %v236
    %v238 = vsel %vm226, %v216, %v219
    %v239 = vsel %vm229, %v225, 1326507024
    %v240 = vsel %vm228, %v222, %v239
    %v241 = vsel %vm227, %v238, %v240
    %v242 = vshll.u32 %v202, 8
    %v243 = vand.u32 %v242, 65535
    %v244 = vshrl.u32 %v242, 16
    %v245 = vand.u32 %v241, 65535
    %v246 = vshrl.u32 %v241, 16
    %v247 = vmul.u32 %v243, %v245
    %v248 = vmul.u32 %v243, %v246
    %v249 = vmul.u32 %v244, %v245
    %v250 = vmul.u32 %v244, %v246
    %v251 = vshll.u32 %v248, 16
    %v252 = vshrl.u32 %v248, 16
    %v253 = vshll.u32 %v249, 16
    %v254 = vshrl.u32 %v249, 16
    %vm255 = vc.u32 %v247, %v251
    %v256 = vsel %vm255, 1, 0
    %v257 = vadd.s32 %v247, %v251
    %v258 = vadd.s32 %v250, %v256
    %vm259 = vc.u32 %v257, %v253
    %v260 = vsel %vm259, 1, 0
    %v261 = vadd.s32 %v257, %v253
    %v262 = vadd.s32 %v258, %v260
    %v263 = vadd.s32 %v262, %v252
    %v264 = vadd.s32 %v263, %v254
    %v265 = vand.u32 %v242, 65535
    %v266 = vshrl.u32 %v242, 16
    %v267 = vand.u32 %v237, 65535
    %v268 = vshrl.u32 %v237, 16
    %v269 = vmul.u32 %v265, %v267
    %v270 = vmul.u32 %v265, %v268
    %v271 = vmul.u32 %v266, %v267
    %v272 = vmul.u32 %v266, %v268
    %v273 = vshll.u32 %v270, 16
    %v274 = vshrl.u32 %v270, 16
    %v275 = vshll.u32 %v271, 16
    %v276 = vshrl.u32 %v271, 16
    %vm277 = vc.u32 %v269, %v273
    %v278 = vsel %vm277, 1, 0
    %v279 = vadd.s32 %v269, %v273
    %v280 = vadd.s32 %v272, %v278
    %vm281 = vc.u32 %v279, %v275
    %v282 = vsel %vm281, 1, 0
    %v283 = vadd.s32 %v279, %v275
    %v284 = vadd.s32 %v280, %v282
    %v285 = vadd.s32 %v284, %v274
    %v286 = vadd.s32 %v285, %v276
    %v287 = vmul.u32 %v242, %v233
    %v288 = vadd.s32 %v264, %v283
    %vm289 = vc.u32 %v264, %v283
    %v290 = vadd.s32 %v286, 1
    %v291 = vsel %vm289, %v290, %v286
    %v292 = vadd.s32 %v287, %v291
    %v293 = vadd.s32 %v292, 536870912
    %v294 = vshrl.u32 %v293, 30
    %v295 = vshll.u32 %v294, 30
    %v296 = vsub.s32 %v292, %v295
    %vm297 = vcmp.lt.s32.totalorder %v296, 0
    %v298 = vsub.s32 0, %v296
    %v299 = vsel %vm297, %v298, %v296
    %v300 = vclz %v299
    %v301 = vsub.s32 %v300, 2
    %vm302 = vcmp.gt.s32.totalorder 0, %v301
    %v303 = vsel %vm302, 0, %v301
    %v304 = vsub.s32 32, %v303
    %v305 = vshll.u32 %v296, %v303
    %v306 = vshrl.u32 %v288, %v304
    %v307 = vor.u32 %v305, %v306
    %v308 = vsub.s32 4294967266, %v303
    %v309 = vadd.s32 %v308, 127
    %v310 = vshll.u32 %v309, 23
    %v311 = vor.u32 4788187, %v310
    %v312 = vand.u32 2147483647, %v311
    %v314 = vcvt.s32.f32 %v307
    %v315 = vmul.f32 %v314, %v312
    %v316 = vxor.u32 %v315, 2147483648
    %v317 = vsel %vm196, %v316, %v315
    %v318 = vsub.s32 4, %v294
    %v319 = vsel %vm196, %v318, %v294
    %v320 = vsel %vm195, %v191, %v317
    %v321 = vsel %vm195, 0, %v319
    %v322 = vmul.f32 %v320, %v320
    %v323 = vmul.f32 %v322, -0.001358992
    %v324 = vadd.f32 %v323, 0.041655596
    %v325 = vmul.f32 %v322, %v324
    %v326 = vadd.f32 %v325, -0.4999988
    %v327 = vmul.f32 %v322, %v326
    %v328 = vadd.f32 1.0, %v327
    %v329 = vmul.f32 %v320, %v320
    %v330 = vmul.f32 %v329, -0.00019511016
    %v331 = vadd.f32 %v330, 0.008332121
    %v332 = vmul.f32 %v329, %v331
    %v333 = vadd.f32 %v332, -0.16666654
    %v334 = vmul.f32 %v329, %v333
    %v335 = vadd.f32 %v334, 1.0
    %v336 = vmul.f32 %v335, %v320
    %vm337 = vweird.f32 %v191
    %v338 = vand.u32 %v321, 3
    %vm339 = vcmp.lt.s32.totalorder %v338, 2
    %vm340 = vcmp.eq.s32.totalorder %v338, 0
    %v341 = vxor.u32 %v336, 2147483648
    %v342 = vsel %vm340, %v328, %v341
    %vm343 = vcmp.eq.s32.totalorder %v338, 2
    %v344 = vxor.u32 %v328, 2147483648
    %v345 = vsel %vm343, %v344, %v336
    %v346 = vsel %vm339, %v342, %v345
    %v347 = vsel %vm337, nan, %v346
    %v348 = vand.u32 2147483647, %v191
    %vm349 = vcmp.le.f32.partialorder %v348, 0.7853982
    %vm350 = vcmp.lt.s32.totalorder %v191, 0
    %v351 = vand.u32 %v191, 2139095040
    %v352 = vshrl.u32 %v351, 23
    %v353 = vsub.s32 %v352, 127
    %v354 = vand.u32 2147483647, %v191
    %v355 = vand.u32 %v354, 8388607
    %v356 = vor.u32 %v355, 8388608
    %v357 = vsub.s32 0, %v356
    %v358 = vadd.s32 %v353, 1
    %vm359 = vcmp.gt.s32.totalorder %v358, 0
    %v360 = vsel %vm359, %v358, 0
    %v361 = vshrl.u32 %v360, 5
    %v362 = vand.u32 %v360, 31
    %v363 = vsub.s32 32, %v362
    %v364 = vshrl.u32 683565275, %v363
    %v365 = vshll.u32 683565275, %v362
    %v366 = vshrl.u32 2475754826, %v363
    %v367 = vor.u32 %v365, %v366
    %v368 = vshll.u32 2475754826, %v362
    %v369 = vshrl.u32 2131351028, %v363
    %v370 = vor.u32 %v368, %v369
    %v371 = vshll.u32 2131351028, %v362
    %v372 = vshrl.u32 2102212464, %v363
    %v373 = vor.u32 %v371, %v372
    %v374 = vshll.u32 2102212464, %v362
    %v375 = vshrl.u32 920167782, %v363
    %v376 = vor.u32 %v374, %v375
    %v377 = vshll.u32 920167782, %v362
    %v378 = vshrl.u32 1326507024, %v363
    %v379 = vor.u32 %v377, %v378
    %vm380 = vcmp.lt.s32.totalorder %v361, 1
    %vm381 = vcmp.lt.s32.totalorder %v361, 2
    %vm382 = vcmp.lt.s32.totalorder %v361, 3
    %vm383 = vcmp.lt.s32.totalorder %v361, 4
    %v384 = vsel %vm380, %v364, %v367
    %v385 = vsel %vm383, %v373, 2102212464
    %v386 = vsel %vm382, %v370, %v385
    %v387 = vsel %vm381, %v384, %v386
    %v388 = vsel %vm380, %v367, %v370
    %v389 = vsel %vm383, %v376, 920167782
    %v390 = vsel %vm382, %v373, %v389
    %v391 = vsel %vm381, %v388, %v390
    %v392 = vsel %vm380, %v370, %v373
    %v393 = vsel %vm383, %v379, 1326507024
    %v394 = vsel %vm382, %v376, %v393
    %v395 = vsel %vm381, %v392, %v394
    %v396 = vshll.u32 %v356, 8
    %v397 = vand.u32 %v396, 65535
    %v398 = vshrl.u32 %v396, 16
    %v399 = vand.u32 %v395, 65535
    %v400 = vshrl.u32 %v395, 16
    %v401 = vmul.u32 %v397, %v399
    %v402 = vmul.u32 %v397, %v400
    %v403 = vmul.u32 %v398, %v399
    %v404 = vmul.u32 %v398, %v400
    %v405 = vshll.u32 %v402, 16
    %v406 = vshrl.u32 %v402, 16
    %v407 = vshll.u32 %v403, 16
    %v408 = vshrl.u32 %v403, 16
    %vm409 = vc.u32 %v401, %v405
    %v410 = vsel %vm409, 1, 0
    %v411 = vadd.s32 %v401, %v405
    %v412 = vadd.s32 %v404, %v410
    %vm413 = vc.u32 %v411, %v407
    %v414 = vsel %vm413, 1, 0
    %v415 = vadd.s32 %v411, %v407
    %v416 = vadd.s32 %v412, %v414
    %v417 = vadd.s32 %v416, %v406
    %v418 = vadd.s32 %v417, %v408
    %v419 = vand.u32 %v396, 65535
    %v420 = vshrl.u32 %v396, 16
    %v421 = vand.u32 %v391, 65535
    %v422 = vshrl.u32 %v391, 16
    %v423 = vmul.u32 %v419, %v421
    %v424 = vmul.u32 %v419, %v422
    %v425 = vmul.u32 %v420, %v421
    %v426 = vmul.u32 %v420, %v422
    %v427 = vshll.u32 %v424, 16
    %v428 = vshrl.u32 %v424, 16
    %v429 = vshll.u32 %v425, 16
    %v430 = vshrl.u32 %v425, 16
    %vm431 = vc.u32 %v423, %v427
    %v432 = vsel %vm431, 1, 0
    %v433 = vadd.s32 %v423, %v427
    %v434 = vadd.s32 %v426, %v432
    %vm435 = vc.u32 %v433, %v429
    %v436 = vsel %vm435, 1, 0
    %v437 = vadd.s32 %v433, %v429
    %v438 = vadd.s32 %v434, %v436
    %v439 = vadd.s32 %v438, %v428
    %v440 = vadd.s32 %v439, %v430
    %v441 = vmul.u32 %v396, %v387
    %v442 = vadd.s32 %v418, %v437
    %vm443 = vc.u32 %v418, %v437
    %v444 = vadd.s32 %v440, 1
    %v445 = vsel %vm443, %v444, %v440
    %v446 = vadd.s32 %v441, %v445
    %v447 = vadd.s32 %v446, 536870912
    %v448 = vshrl.u32 %v447, 30
    %v449 = vshll.u32 %v448, 30
    %v450 = vsub.s32 %v446, %v449
    %vm451 = vcmp.lt.s32.totalorder %v450, 0
    %v452 = vsub.s32 0, %v450
    %v453 = vsel %vm451, %v452, %v450
    %v454 = vclz %v453
    %v455 = vsub.s32 %v454, 2
    %vm456 = vcmp.gt.s32.totalorder 0, %v455
    %v457 = vsel %vm456, 0, %v455
    %v458 = vsub.s32 32, %v457
    %v459 = vshll.u32 %v450, %v457
    %v460 = vshrl.u32 %v442, %v458
    %v461 = vor.u32 %v459, %v460
    %v462 = vsub.s32 4294967266, %v457
    %v463 = vadd.s32 %v462, 127
    %v464 = vshll.u32 %v463, 23
    %v465 = vor.u32 4788187, %v464
    %v466 = vand.u32 2147483647, %v465
    %v468 = vcvt.s32.f32 %v461
    %v469 = vmul.f32 %v468, %v466
    %v470 = vxor.u32 %v469, 2147483648
    %v471 = vsel %vm350, %v470, %v469
    %v472 = vsub.s32 4, %v448
    %v473 = vsel %vm350, %v472, %v448
    %v474 = vsel %vm349, %v191, %v471
    %v475 = vsel %vm349, 0, %v473
    %v476 = vmul.f32 %v474, %v474
    %v477 = vmul.f32 %v476, -0.001358992
    %v478 = vadd.f32 %v477, 0.041655596
    %v479 = vmul.f32 %v476, %v478
    %v480 = vadd.f32 %v479, -0.4999988
    %v481 = vmul.f32 %v476, %v480
    %v482 = vadd.f32 1.0, %v481
    %v483 = vmul.f32 %v474, %v474
    %v484 = vmul.f32 %v483, -0.00019511016
    %v485 = vadd.f32 %v484, 0.008332121
    %v486 = vmul.f32 %v483, %v485
    %v487 = vadd.f32 %v486, -0.16666654
    %v488 = vmul.f32 %v483, %v487
    %v489 = vadd.f32 %v488, 1.0
    %v490 = vmul.f32 %v489, %v474
    %vm491 = vweird.f32 %v191
    %v492 = vadd.s32 %v475, 3
    %v493 = vand.u32 %v492, 3
    %vm494 = vcmp.lt.s32.totalorder %v493, 2
    %vm495 = vcmp.eq.s32.totalorder %v493, 0
    %v496 = vxor.u32 %v490, 2147483648
    %v497 = vsel %vm495, %v482, %v496
    %vm498 = vcmp.eq.s32.totalorder %v493, 2
    %v499 = vxor.u32 %v482, 2147483648
    %v500 = vsel %vm498, %v499, %v490
    %v501 = vsel %vm494, %v497, %v500
    %v502 = vsel %vm491, nan, %v501
    %v503 = vperm.slane %v187, 0
    %v504 = vlaneseq
    %v505 = vshrl.u32 %v504, 7
    %507 = vset.pattern.permute.xlu0 %v505
    %508 = vperm.xlu0 %507, %v503
    %v509 = vpop.permute.xlu0 %508
    %v510 = vperm.slane %v187, 1
    %v511 = vlaneseq
    %v512 = vshrl.u32 %v511, 7
    %514 = vset.pattern.permute.xlu0 %v512
    %515 = vperm.xlu0 %514, %v510
    %v516 = vpop.permute.xlu0 %515
    %v517 = vperm.slane %v187, 2
    %v518 = vlaneseq
    %v519 = vshrl.u32 %v518, 7
    %521 = vset.pattern.permute.xlu0 %v519
    %522 = vperm.xlu0 %521, %v517
    %v523 = vpop.permute.xlu0 %522
    %v524 = vperm.slane %v187, 3
    %v525 = vlaneseq
    %v526 = vshrl.u32 %v525, 7
    %528 = vset.pattern.permute.xlu0 %v526
    %529 = vperm.xlu0 %528, %v524
    %v530 = vpop.permute.xlu0 %529
    %v531 = vperm.slane %v187, 4
    %v532 = vlaneseq
    %v533 = vshrl.u32 %v532, 7
    %535 = vset.pattern.permute.xlu0 %v533
    %536 = vperm.xlu0 %535, %v531
    %v537 = vpop.permute.xlu0 %536
    %v538 = vperm.slane %v187, 5
    %v539 = vlaneseq
    %v540 = vshrl.u32 %v539, 7
    %542 = vset.pattern.permute.xlu0 %v540
    %543 = vperm.xlu0 %542, %v538
    %v544 = vpop.permute.xlu0 %543
    %v545 = vperm.slane %v187, 6
    %v546 = vlaneseq
    %v547 = vshrl.u32 %v546, 7
    %549 = vset.pattern.permute.xlu0 %v547
    %550 = vperm.xlu0 %549, %v545
    %v551 = vpop.permute.xlu0 %550
    %v552 = vperm.slane %v187, 7
    %v553 = vlaneseq
    %v554 = vshrl.u32 %v553, 7
    %556 = vset.pattern.permute.xlu0 %v554
    %557 = vperm.xlu0 %556, %v552
    %v558 = vpop.permute.xlu0 %557
    %v559 = vperm.slane %v186, 0
    %v560 = vmul.f32 %v509, %v559
    %v561 = vmul.f32 %v516, %v559
    %v562 = vmul.f32 %v523, %v559
    %v563 = vmul.f32 %v530, %v559
    %v564 = vmul.f32 %v537, %v559
    %v565 = vmul.f32 %v544, %v559
    %v566 = vmul.f32 %v551, %v559
    %v567 = vmul.f32 %v558, %v559
    %v568 = vperm.slane %v189, 0
    %v569 = vlaneseq
    %v570 = vshrl.u32 %v569, 7
    %572 = vset.pattern.permute.xlu0 %v570
    %573 = vperm.xlu0 %572, %v568
    %v574 = vpop.permute.xlu0 %573
    %v575 = vperm.slane %v189, 1
    %v576 = vlaneseq
    %v577 = vshrl.u32 %v576, 7
    %579 = vset.pattern.permute.xlu0 %v577
    %580 = vperm.xlu0 %579, %v575
    %v581 = vpop.permute.xlu0 %580
    %v582 = vperm.slane %v189, 2
    %v583 = vlaneseq
    %v584 = vshrl.u32 %v583, 7
    %586 = vset.pattern.permute.xlu0 %v584
    %587 = vperm.xlu0 %586, %v582
    %v588 = vpop.permute.xlu0 %587
    %v589 = vperm.slane %v189, 3
    %v590 = vlaneseq
    %v591 = vshrl.u32 %v590, 7
    %593 = vset.pattern.permute.xlu0 %v591
    %594 = vperm.xlu0 %593, %v589
    %v595 = vpop.permute.xlu0 %594
    %v596 = vperm.slane %v189, 4
    %v597 = vlaneseq
    %v598 = vshrl.u32 %v597, 7
    %600 = vset.pattern.permute.xlu0 %v598
    %601 = vperm.xlu0 %600, %v596
    %v602 = vpop.permute.xlu0 %601
    %v603 = vperm.slane %v189, 5
    %v604 = vlaneseq
    %v605 = vshrl.u32 %v604, 7
    %607 = vset.pattern.permute.xlu0 %v605
    %608 = vperm.xlu0 %607, %v603
    %v609 = vpop.permute.xlu0 %608
    %v610 = vperm.slane %v189, 6
    %v611 = vlaneseq
    %v612 = vshrl.u32 %v611, 7
    %614 = vset.pattern.permute.xlu0 %v612
    %615 = vperm.xlu0 %614, %v610
    %v616 = vpop.permute.xlu0 %615
    %v617 = vperm.slane %v189, 7
    %v618 = vlaneseq
    %v619 = vshrl.u32 %v618, 7
    %621 = vset.pattern.permute.xlu0 %v619
    %622 = vperm.xlu0 %621, %v617
    %v623 = vpop.permute.xlu0 %622
    %v624 = vperm.slane %v186, 1
    %v625 = vmul.f32 %v574, %v624
    %v626 = vmul.f32 %v581, %v624
    %v627 = vmul.f32 %v588, %v624
    %v628 = vmul.f32 %v595, %v624
    %v629 = vmul.f32 %v602, %v624
    %v630 = vmul.f32 %v609, %v624
    %v631 = vmul.f32 %v616, %v624
    %v632 = vmul.f32 %v623, %v624
    %v633 = vadd.f32 %v560, %v625
    %v634 = vadd.f32 %v561, %v626
    %v635 = vadd.f32 %v562, %v627
    %v636 = vadd.f32 %v563, %v628
    %v637 = vadd.f32 %v564, %v629
    %v638 = vadd.f32 %v565, %v630
    %v639 = vadd.f32 %v566, %v631
    %v640 = vadd.f32 %v567, %v632
    %v641 = vperm.slane %v347, 0
    %v642 = vlaneseq
    %v643 = vshrl.u32 %v642, 7
    %645 = vset.pattern.permute.xlu0 %v643
    %646 = vperm.xlu0 %645, %v641
    %v647 = vpop.permute.xlu0 %646
    %v648 = vperm.slane %v347, 1
    %v649 = vlaneseq
    %v650 = vshrl.u32 %v649, 7
    %652 = vset.pattern.permute.xlu0 %v650
    %653 = vperm.xlu0 %652, %v648
    %v654 = vpop.permute.xlu0 %653
    %v655 = vperm.slane %v347, 2
    %v656 = vlaneseq
    %v657 = vshrl.u32 %v656, 7
    %659 = vset.pattern.permute.xlu0 %v657
    %660 = vperm.xlu0 %659, %v655
    %v661 = vpop.permute.xlu0 %660
    %v662 = vperm.slane %v347, 3
    %v663 = vlaneseq
    %v664 = vshrl.u32 %v663, 7
    %666 = vset.pattern.permute.xlu0 %v664
    %667 = vperm.xlu0 %666, %v662
    %v668 = vpop.permute.xlu0 %667
    %v669 = vperm.slane %v347, 4
    %v670 = vlaneseq
    %v671 = vshrl.u32 %v670, 7
    %673 = vset.pattern.permute.xlu0 %v671
    %674 = vperm.xlu0 %673, %v669
    %v675 = vpop.permute.xlu0 %674
    %v676 = vperm.slane %v347, 5
    %v677 = vlaneseq
    %v678 = vshrl.u32 %v677, 7
    %680 = vset.pattern.permute.xlu0 %v678
    %681 = vperm.xlu0 %680, %v676
    %v682 = vpop.permute.xlu0 %681
    %v683 = vperm.slane %v347, 6
    %v684 = vlaneseq
    %v685 = vshrl.u32 %v684, 7
    %687 = vset.pattern.permute.xlu0 %v685
    %688 = vperm.xlu0 %687, %v683
    %v689 = vpop.permute.xlu0 %688
    %v690 = vperm.slane %v347, 7
    %v691 = vlaneseq
    %v692 = vshrl.u32 %v691, 7
    %694 = vset.pattern.permute.xlu0 %v692
    %695 = vperm.xlu0 %694, %v690
    %v696 = vpop.permute.xlu0 %695
    %v697 = vperm.slane %v186, 2
    %v698 = vmul.f32 %v647, %v697
    %v699 = vmul.f32 %v654, %v697
    %v700 = vmul.f32 %v661, %v697
    %v701 = vmul.f32 %v668, %v697
    %v702 = vmul.f32 %v675, %v697
    %v703 = vmul.f32 %v682, %v697
    %v704 = vmul.f32 %v689, %v697
    %v705 = vmul.f32 %v696, %v697
    %v706 = vadd.f32 %v633, %v698
    %v707 = vadd.f32 %v634, %v699
    %v708 = vadd.f32 %v635, %v700
    %v709 = vadd.f32 %v636, %v701
    %v710 = vadd.f32 %v637, %v702
    %v711 = vadd.f32 %v638, %v703
    %v712 = vadd.f32 %v639, %v704
    %v713 = vadd.f32 %v640, %v705
    %v714 = vperm.slane %v502, 0
    %v715 = vlaneseq
    %v716 = vshrl.u32 %v715, 7
    %718 = vset.pattern.permute.xlu0 %v716
    %719 = vperm.xlu0 %718, %v714
    %v720 = vpop.permute.xlu0 %719
    %v721 = vperm.slane %v502, 1
    %v722 = vlaneseq
    %v723 = vshrl.u32 %v722, 7
    %725 = vset.pattern.permute.xlu0 %v723
    %726 = vperm.xlu0 %725, %v721
    %v727 = vpop.permute.xlu0 %726
    %v728 = vperm.slane %v502, 2
    %v729 = vlaneseq
    %v730 = vshrl.u32 %v729, 7
    %732 = vset.pattern.permute.xlu0 %v730
    %733 = vperm.xlu0 %732, %v728
    %v734 = vpop.permute.xlu0 %733
    %v735 = vperm.slane %v502, 3
    %v736 = vlaneseq
    %v737 = vshrl.u32 %v736, 7
    %739 = vset.pattern.permute.xlu0 %v737
    %740 = vperm.xlu0 %739, %v735
    %v741 = vpop.permute.xlu0 %740
    %v742 = vperm.slane %v502, 4
    %v743 = vlaneseq
    %v744 = vshrl.u32 %v743, 7
    %746 = vset.pattern.permute.xlu0 %v744
    %747 = vperm.xlu0 %746, %v742
    %v748 = vpop.permute.xlu0 %747
    %v749 = vperm.slane %v502, 5
    %v750 = vlaneseq
    %v751 = vshrl.u32 %v750, 7
    %753 = vset.pattern.permute.xlu0 %v751
    %754 = vperm.xlu0 %753, %v749
    %v755 = vpop.permute.xlu0 %754
    %v756 = vperm.slane %v502, 6
    %v757 = vlaneseq
    %v758 = vshrl.u32 %v757, 7
    %760 = vset.pattern.permute.xlu0 %v758
    %761 = vperm.xlu0 %760, %v756
    %v762 = vpop.permute.xlu0 %761
    %v763 = vperm.slane %v502, 7
    %v764 = vlaneseq
    %v765 = vshrl.u32 %v764, 7
    %767 = vset.pattern.permute.xlu0 %v765
    %768 = vperm.xlu0 %767, %v763
    %v769 = vpop.permute.xlu0 %768
    %v770 = vperm.slane %v186, 3
    %v771 = vmul.f32 %v720, %v770
    %v772 = vmul.f32 %v727, %v770
    %v773 = vmul.f32 %v734, %v770
    %v774 = vmul.f32 %v741, %v770
    %v775 = vmul.f32 %v748, %v770
    %v776 = vmul.f32 %v755, %v770
    %v777 = vmul.f32 %v762, %v770
    %v778 = vmul.f32 %v769, %v770
    %v779 = vadd.f32 %v706, %v771
    %v780 = vadd.f32 %v707, %v772
    %v781 = vadd.f32 %v708, %v773
    %v782 = vadd.f32 %v709, %v774
    %v783 = vadd.f32 %v710, %v775
    %v784 = vadd.f32 %v711, %v776
    %v785 = vadd.f32 %v712, %v777
    %v786 = vadd.f32 %v713, %v778
    %v787 = vperm.slane %v193, 0
    %v788 = vlaneseq
    %v789 = vshrl.u32 %v788, 7
    %791 = vset.pattern.permute.xlu0 %v789
    %792 = vperm.xlu0 %791, %v787
    %v793 = vpop.permute.xlu0 %792
    %v794 = vperm.slane %v193, 1
    %v795 = vlaneseq
    %v796 = vshrl.u32 %v795, 7
    %798 = vset.pattern.permute.xlu0 %v796
    %799 = vperm.xlu0 %798, %v794
    %v800 = vpop.permute.xlu0 %799
    %v801 = vperm.slane %v193, 2
    %v802 = vlaneseq
    %v803 = vshrl.u32 %v802, 7
    %805 = vset.pattern.permute.xlu0 %v803
    %806 = vperm.xlu0 %805, %v801
    %v807 = vpop.permute.xlu0 %806
    %v808 = vperm.slane %v193, 3
    %v809 = vlaneseq
    %v810 = vshrl.u32 %v809, 7
    %812 = vset.pattern.permute.xlu0 %v810
    %813 = vperm.xlu0 %812, %v808
    %v814 = vpop.permute.xlu0 %813
    %v815 = vperm.slane %v193, 4
    %v816 = vlaneseq
    %v817 = vshrl.u32 %v816, 7
    %819 = vset.pattern.permute.xlu0 %v817
    %820 = vperm.xlu0 %819, %v815
    %v821 = vpop.permute.xlu0 %820
    %v822 = vperm.slane %v193, 5
    %v823 = vlaneseq
    %v824 = vshrl.u32 %v823, 7
    %826 = vset.pattern.permute.xlu0 %v824
    %827 = vperm.xlu0 %826, %v822
    %v828 = vpop.permute.xlu0 %827
    %v829 = vperm.slane %v193, 6
    %v830 = vlaneseq
    %v831 = vshrl.u32 %v830, 7
    %833 = vset.pattern.permute.xlu0 %v831
    %834 = vperm.xlu0 %833, %v829
    %v835 = vpop.permute.xlu0 %834
    %v836 = vperm.slane %v193, 7
    %v837 = vlaneseq
    %v838 = vshrl.u32 %v837, 7
    %840 = vset.pattern.permute.xlu0 %v838
    %841 = vperm.xlu0 %840, %v836
    %v842 = vpop.permute.xlu0 %841
    %v843 = vperm.slane %v186, 4
    %v844 = vmul.f32 %v793, %v843
    %v845 = vmul.f32 %v800, %v843
    %v846 = vmul.f32 %v807, %v843
    %v847 = vmul.f32 %v814, %v843
    %v848 = vmul.f32 %v821, %v843
    %v849 = vmul.f32 %v828, %v843
    %v850 = vmul.f32 %v835, %v843
    %v851 = vmul.f32 %v842, %v843
    %v852 = vadd.f32 %v779, %v844
    %v853 = vadd.f32 %v780, %v845
    %v854 = vadd.f32 %v781, %v846
    %v855 = vadd.f32 %v782, %v847
    %v856 = vadd.f32 %v783, %v848
    %v857 = vadd.f32 %v784, %v849
    %v858 = vadd.f32 %v785, %v850
    %v859 = vadd.f32 %v786, %v851
    %v860 = vld [vmem:[%s5] sm:$0x1]
    %v862 = vperm.slane %v860, 0
    %v864 = vadd.f32 %v852, %v862
    %v865 = vadd.f32 %v853, %v862
    %v866 = vadd.f32 %v854, %v862
    %v867 = vadd.f32 %v855, %v862
    %v868 = vadd.f32 %v856, %v862
    %v869 = vadd.f32 %v857, %v862
    %v870 = vadd.f32 %v858, %v862
    %v871 = vadd.f32 %v859, %v862
    %v872 = vmul.f32 %v864, 2.0
    %v873 = vmul.f32 %v865, 2.0
    %v874 = vmul.f32 %v866, 2.0
    %v875 = vmul.f32 %v867, 2.0
    %v876 = vmul.f32 %v868, 2.0
    %v877 = vmul.f32 %v869, 2.0
    %v878 = vmul.f32 %v870, 2.0
    %v879 = vmul.f32 %v871, 2.0
    %v880 = vld [vmem:[%s3] sm:$0xff]
    %v881 = vadd.f32 %v872, %v880
    %v882 = vadd.f32 %v873, %v880
    %v883 = vadd.f32 %v874, %v880
    %v884 = vadd.f32 %v875, %v880
    %v885 = vadd.f32 %v876, %v880
    %v886 = vadd.f32 %v877, %v880
    %v887 = vadd.f32 %v878, %v880
    %v888 = vadd.f32 %v879, %v880
    %v889 = vld [vmem:[%s2] sm:$0xff]
    %vm890 = vcmask 64512
    %v891 = vsel %vm890, %v889, inf
    %892 = vmin.xlane.f32.xlu0 %v891
    %v893 = vpop.xlane.xlu0 %892
    %vm894 = vcmp.gt.f32.partialorder %v893, 0.5
    %v895 = vsel %vm894, 1, 0
    %vm896 = vcmp.eq.s32.totalorder %v895, 1
    %v897 = vsel %vm896, 0.0, %v889
    %vm898 = vcmp.gt.f32.partialorder %v897, 0.5
    %v899 = vsel %vm898, -1e+30, 0.0
    %v900 = vld [vmem:[%s0] sm:$0xff]
    %v901 = vld [vmem:[%s6] sm:$0x1]
    %v902 = vld [vmem:[%s7] sm:$0x1]
    %vm903 = vcmask 261120
    %v904 = vsel %vm903, %v900, 0.0
    %905 = vadd.xlane.f32.xlu0 %v904
    %v906 = vpop.xlane.xlu0 %905
    %v907 = vrcp.pop 32.0
    %v908 = vmul.f32 32.0, %v907
    %v909 = vsub.f32 1.0, %v908
    %v910 = vmul.f32 %v907, %v909
    %v911 = vadd.f32 %v907, %v910
    %vm912 = vweird.f32 %v907
    %v913 = vsel %vm912, %v907, %v911
    %v914 = vmul.f32 %v906, %v913
    %v915 = vsub.f32 %v900, %v914
    %v916 = vmul.f32 %v915, %v915
    %v917 = vsel %vm903, %v916, 0.0
    %918 = vadd.xlane.f32.xlu0 %v917
    %v919 = vpop.xlane.xlu0 %918
    %v920 = vmul.f32 %v919, %v913
    %v921 = vadd.f32 %v920, 1e-05
    %v922 = vrsqrt.pop %v921
    %v923 = vmul.f32 %v922, %v921
    %v924 = vmul.f32 %v923, %v922
    %v925 = vmul.f32 0.5, %v924
    %v926 = vsub.f32 1.5, %v925
    %v927 = vmul.f32 %v922, %v926
    %vm928 = vweird.f32 %v921
    %vm929 = vweird.f32 %v922
    %vm930 = vmor %vm928, %vm929
    %v931 = vsel %vm930, %v922, %v927
    %v932 = vmul.f32 %v915, %v931
    %v934 = vperm.slane %v901, 0
    %v936 = vmul.f32 %v932, %v934
    %v938 = vperm.slane %v902, 0
    %v940 = vadd.f32 %v936, %v938
    %v941 = vld [vmem:[#allocation2] sm:$0x1]
    %v942 = vld [vmem:[#allocation4] sm:$0x1]
    %v943 = vsel %vm903, %v881, 0.0
    %944 = vadd.xlane.f32.xlu0 %v943
    %v945 = vpop.xlane.xlu0 %944
    %v946 = vsel %vm903, %v882, 0.0
    %947 = vadd.xlane.f32.xlu0 %v946
    %v948 = vpop.xlane.xlu0 %947
    %v949 = vsel %vm903, %v883, 0.0
    %950 = vadd.xlane.f32.xlu0 %v949
    %v951 = vpop.xlane.xlu0 %950
    %v952 = vsel %vm903, %v884, 0.0
    %953 = vadd.xlane.f32.xlu0 %v952
    %v954 = vpop.xlane.xlu0 %953
    %v955 = vsel %vm903, %v885, 0.0
    %956 = vadd.xlane.f32.xlu0 %v955
    %v957 = vpop.xlane.xlu0 %956
    %v958 = vsel %vm903, %v886, 0.0
    %959 = vadd.xlane.f32.xlu0 %v958
    %v960 = vpop.xlane.xlu0 %959
    %v961 = vsel %vm903, %v887, 0.0
    %962 = vadd.xlane.f32.xlu0 %v961
    %v963 = vpop.xlane.xlu0 %962
    %v964 = vsel %vm903, %v888, 0.0
    %965 = vadd.xlane.f32.xlu0 %v964
    %v966 = vpop.xlane.xlu0 %965
    %v967 = vmul.f32 %v945, %v913
    %v968 = vmul.f32 %v948, %v913
    %v969 = vmul.f32 %v951, %v913
    %v970 = vmul.f32 %v954, %v913
    %v971 = vmul.f32 %v957, %v913
    %v972 = vmul.f32 %v960, %v913
    %v973 = vmul.f32 %v963, %v913
    %v974 = vmul.f32 %v966, %v913
    %v975 = vsub.f32 %v881, %v967
    %v976 = vsub.f32 %v882, %v968
    %v977 = vsub.f32 %v883, %v969
    %v978 = vsub.f32 %v884, %v970
    %v979 = vsub.f32 %v885, %v971
    %v980 = vsub.f32 %v886, %v972
    %v981 = vsub.f32 %v887, %v973
    %v982 = vsub.f32 %v888, %v974
    %v983 = vmul.f32 %v975, %v975
    %v984 = vmul.f32 %v976, %v976
    %v985 = vmul.f32 %v977, %v977
    %v986 = vmul.f32 %v978, %v978
    %v987 = vmul.f32 %v979, %v979
    %v988 = vmul.f32 %v980, %v980
    %v989 = vmul.f32 %v981, %v981
    %v990 = vmul.f32 %v982, %v982
    %v991 = vsel %vm903, %v983, 0.0
    %992 = vadd.xlane.f32.xlu0 %v991
    %v993 = vpop.xlane.xlu0 %992
    %v994 = vsel %vm903, %v984, 0.0
    %995 = vadd.xlane.f32.xlu0 %v994
    %v996 = vpop.xlane.xlu0 %995
    %v997 = vsel %vm903, %v985, 0.0
    %998 = vadd.xlane.f32.xlu0 %v997
    %v999 = vpop.xlane.xlu0 %998
    %v1000 = vsel %vm903, %v986, 0.0
    %1001 = vadd.xlane.f32.xlu0 %v1000
    %v1002 = vpop.xlane.xlu0 %1001
    %v1003 = vsel %vm903, %v987, 0.0
    %1004 = vadd.xlane.f32.xlu0 %v1003
    %v1005 = vpop.xlane.xlu0 %1004
    %v1006 = vsel %vm903, %v988, 0.0
    %1007 = vadd.xlane.f32.xlu0 %v1006
    %v1008 = vpop.xlane.xlu0 %1007
    %v1009 = vsel %vm903, %v989, 0.0
    %1010 = vadd.xlane.f32.xlu0 %v1009
    %v1011 = vpop.xlane.xlu0 %1010
    %v1012 = vsel %vm903, %v990, 0.0
    %1013 = vadd.xlane.f32.xlu0 %v1012
    %v1014 = vpop.xlane.xlu0 %1013
    %v1015 = vmul.f32 %v993, %v913
    %v1016 = vmul.f32 %v996, %v913
    %v1017 = vmul.f32 %v999, %v913
    %v1018 = vmul.f32 %v1002, %v913
    %v1019 = vmul.f32 %v1005, %v913
    %v1020 = vmul.f32 %v1008, %v913
    %v1021 = vmul.f32 %v1011, %v913
    %v1022 = vmul.f32 %v1014, %v913
    %v1023 = vadd.f32 %v1015, 1e-05
    %v1024 = vadd.f32 %v1016, 1e-05
    %v1025 = vadd.f32 %v1017, 1e-05
    %v1026 = vadd.f32 %v1018, 1e-05
    %v1027 = vadd.f32 %v1019, 1e-05
    %v1028 = vadd.f32 %v1020, 1e-05
    %v1029 = vadd.f32 %v1021, 1e-05
    %v1030 = vadd.f32 %v1022, 1e-05
    %v1031 = vrsqrt.pop %v1023
    %v1032 = vmul.f32 %v1031, %v1023
    %v1033 = vmul.f32 %v1032, %v1031
    %v1034 = vmul.f32 0.5, %v1033
    %v1035 = vsub.f32 1.5, %v1034
    %v1036 = vmul.f32 %v1031, %v1035
    %vm1037 = vweird.f32 %v1023
    %vm1038 = vweird.f32 %v1031
    %vm1039 = vmor %vm1037, %vm1038
    %v1040 = vsel %vm1039, %v1031, %v1036
    %v1041 = vrsqrt.pop %v1024
    %v1042 = vmul.f32 %v1041, %v1024
    %v1043 = vmul.f32 %v1042, %v1041
    %v1044 = vmul.f32 0.5, %v1043
    %v1045 = vsub.f32 1.5, %v1044
    %v1046 = vmul.f32 %v1041, %v1045
    %vm1047 = vweird.f32 %v1024
    %vm1048 = vweird.f32 %v1041
    %vm1049 = vmor %vm1047, %vm1048
    %v1050 = vsel %vm1049, %v1041, %v1046
    %v1051 = vrsqrt.pop %v1025
    %v1052 = vmul.f32 %v1051, %v1025
    %v1053 = vmul.f32 %v1052, %v1051
    %v1054 = vmul.f32 0.5, %v1053
    %v1055 = vsub.f32 1.5, %v1054
    %v1056 = vmul.f32 %v1051, %v1055
    %vm1057 = vweird.f32 %v1025
    %vm1058 = vweird.f32 %v1051
    %vm1059 = vmor %vm1057, %vm1058
    %v1060 = vsel %vm1059, %v1051, %v1056
    %v1061 = vrsqrt.pop %v1026
    %v1062 = vmul.f32 %v1061, %v1026
    %v1063 = vmul.f32 %v1062, %v1061
    %v1064 = vmul.f32 0.5, %v1063
    %v1065 = vsub.f32 1.5, %v1064
    %v1066 = vmul.f32 %v1061, %v1065
    %vm1067 = vweird.f32 %v1026
    %vm1068 = vweird.f32 %v1061
    %vm1069 = vmor %vm1067, %vm1068
    %v1070 = vsel %vm1069, %v1061, %v1066
    %v1071 = vrsqrt.pop %v1027
    %v1072 = vmul.f32 %v1071, %v1027
    %v1073 = vmul.f32 %v1072, %v1071
    %v1074 = vmul.f32 0.5, %v1073
    %v1075 = vsub.f32 1.5, %v1074
    %v1076 = vmul.f32 %v1071, %v1075
    %vm1077 = vweird.f32 %v1027
    %vm1078 = vweird.f32 %v1071
    %vm1079 = vmor %vm1077, %vm1078
    %v1080 = vsel %vm1079, %v1071, %v1076
    %v1081 = vrsqrt.pop %v1028
    %v1082 = vmul.f32 %v1081, %v1028
    %v1083 = vmul.f32 %v1082, %v1081
    %v1084 = vmul.f32 0.5, %v1083
    %v1085 = vsub.f32 1.5, %v1084
    %v1086 = vmul.f32 %v1081, %v1085
    %vm1087 = vweird.f32 %v1028
    %vm1088 = vweird.f32 %v1081
    %vm1089 = vmor %vm1087, %vm1088
    %v1090 = vsel %vm1089, %v1081, %v1086
    %v1091 = vrsqrt.pop %v1029
    %v1092 = vmul.f32 %v1091, %v1029
    %v1093 = vmul.f32 %v1092, %v1091
    %v1094 = vmul.f32 0.5, %v1093
    %v1095 = vsub.f32 1.5, %v1094
    %v1096 = vmul.f32 %v1091, %v1095
    %vm1097 = vweird.f32 %v1029
    %vm1098 = vweird.f32 %v1091
    %vm1099 = vmor %vm1097, %vm1098
    %v1100 = vsel %vm1099, %v1091, %v1096
    %v1101 = vrsqrt.pop %v1030
    %v1102 = vmul.f32 %v1101, %v1030
    %v1103 = vmul.f32 %v1102, %v1101
    %v1104 = vmul.f32 0.5, %v1103
    %v1105 = vsub.f32 1.5, %v1104
    %v1106 = vmul.f32 %v1101, %v1105
    %vm1107 = vweird.f32 %v1030
    %vm1108 = vweird.f32 %v1101
    %vm1109 = vmor %vm1107, %vm1108
    %v1110 = vsel %vm1109, %v1101, %v1106
    %v1111 = vmul.f32 %v975, %v1040
    %v1112 = vmul.f32 %v976, %v1050
    %v1113 = vmul.f32 %v977, %v1060
    %v1114 = vmul.f32 %v978, %v1070
    %v1115 = vmul.f32 %v979, %v1080
    %v1116 = vmul.f32 %v980, %v1090
    %v1117 = vmul.f32 %v981, %v1100
    %v1118 = vmul.f32 %v982, %v1110
    %v1120 = vperm.slane %v941, 0
    %v1122 = vmul.f32 %v1111, %v1120
    %v1123 = vmul.f32 %v1112, %v1120
    %v1124 = vmul.f32 %v1113, %v1120
    %v1125 = vmul.f32 %v1114, %v1120
    %v1126 = vmul.f32 %v1115, %v1120
    %v1127 = vmul.f32 %v1116, %v1120
    %v1128 = vmul.f32 %v1117, %v1120
    %v1129 = vmul.f32 %v1118, %v1120
    %v1131 = vperm.slane %v942, 0
    %v1133 = vadd.f32 %v1122, %v1131
    %v1134 = vadd.f32 %v1123, %v1131
    %v1135 = vadd.f32 %v1124, %v1131
    %v1136 = vadd.f32 %v1125, %v1131
    %v1137 = vadd.f32 %v1126, %v1131
    %v1138 = vadd.f32 %v1127, %v1131
    %v1139 = vadd.f32 %v1128, %v1131
    %v1140 = vadd.f32 %v1129, %v1131
    %v1141 = vld [vmem:[%s10] sm:$0xff]
    %v1142 = vld [vmem:[%s10 + $0x8] sm:$0xff]
    %v1143 = vld [vmem:[%s10 + $0x10] sm:$0xff]
    %v1144 = vld [vmem:[%s10 + $0x18] sm:$0xff]
    %v1145 = vld [vmem:[%s11] sm:$0x1]
    %v1147 = vperm.slane %v1145, 0
    %v1150 = vsel %vm903, %v940, 0
    %1152 = vmatpush.msra.mxu0 0.0
    %1153 = vmatpush.msra.mxu0 0.0
    %1154 = vmatpush.msra.mxu0 0.0
    %1155 = vmatpush.msra.mxu0 0.0
    %1156 = vmatpush.msra.mxu0 0.0
    %1157 = vmatpush.msra.mxu0 0.0
    %1158 = vmatpush.msra.mxu0 0.0
    %1159 = vmatpush.msra.mxu0 0.0
    %1160 = vmatpush.msra.mxu0 0.0
    %1161 = vmatpush.msra.mxu0 0.0
    %1162 = vmatpush.msra.mxu0 0.0
    %1163 = vmatpush.msra.mxu0 0.0
    %1164 = vmatpush.msra.mxu0 %v1144
    %1165 = vmatpush.msra.mxu0 %v1143
    %1166 = vmatpush.msra.mxu0 %v1142
    %1167 = vmatpush.msra.mxu0 %v1141
    %1168 = vmatmul.f32.gmra.mxu0 %v1150
    %v1169 = vpop.f32.mrf.mxu0
    %v1170 = vadd.f32 %v1147, %v1169
    %1171 = vdwg.mxu0
    %v1172 = vld [vmem:[%s12] sm:$0xff]
    %v1173 = vld [vmem:[%s12 + $0x8] sm:$0xff]
    %v1174 = vld [vmem:[%s12 + $0x10] sm:$0xff]
    %v1175 = vld [vmem:[%s12 + $0x18] sm:$0xff]
    %v1176 = vld [vmem:[%s13] sm:$0x1]
    %v1178 = vperm.slane %v1176, 0
    %v1181 = vsel %vm903, %v1133, 0
    %v1184 = vsel %vm903, %v1134, 0
    %v1187 = vsel %vm903, %v1135, 0
    %v1190 = vsel %vm903, %v1136, 0
    %v1193 = vsel %vm903, %v1137, 0
    %v1196 = vsel %vm903, %v1138, 0
    %v1199 = vsel %vm903, %v1139, 0
    %v1202 = vsel %vm903, %v1140, 0
    %1204 = vmatpush.msra.mxu0 0.0
    %1205 = vmatpush.msra.mxu0 0.0
    %1206 = vmatpush.msra.mxu0 0.0
    %1207 = vmatpush.msra.mxu0 0.0
    %1208 = vmatpush.msra.mxu0 0.0
    %1209 = vmatpush.msra.mxu0 0.0
    %1210 = vmatpush.msra.mxu0 0.0
    %1211 = vmatpush.msra.mxu0 0.0
    %1212 = vmatpush.msra.mxu0 0.0
    %1213 = vmatpush.msra.mxu0 0.0
    %1214 = vmatpush.msra.mxu0 0.0
    %1215 = vmatpush.msra.mxu0 0.0
    %1216 = vmatpush.msra.mxu0 %v1175
    %1217 = vmatpush.msra.mxu0 %v1174
    %1218 = vmatpush.msra.mxu0 %v1173
    %1219 = vmatpush.msra.mxu0 %v1172
    %1220 = vmatmul.f32.gmra.mxu0 %v1181
    %v1221 = vpop.f32.mrf.mxu0
    %v1222 = vadd.f32 %v1178, %v1221
    %1223 = vmatmul.f32.gmra.mxu0 %v1184
    %v1224 = vpop.f32.mrf.mxu0
    %v1225 = vadd.f32 %v1178, %v1224
    %1226 = vmatmul.f32.gmra.mxu0 %v1187
    %v1227 = vpop.f32.mrf.mxu0
    %v1228 = vadd.f32 %v1178, %v1227
    %1229 = vmatmul.f32.gmra.mxu0 %v1190
    %v1230 = vpop.f32.mrf.mxu0
    %v1231 = vadd.f32 %v1178, %v1230
    %1232 = vmatmul.f32.gmra.mxu0 %v1193
    %v1233 = vpop.f32.mrf.mxu0
    %v1234 = vadd.f32 %v1178, %v1233
    %1235 = vmatmul.f32.gmra.mxu0 %v1196
    %v1236 = vpop.f32.mrf.mxu0
    %v1237 = vadd.f32 %v1178, %v1236
    %1238 = vmatmul.f32.gmra.mxu0 %v1199
    %v1239 = vpop.f32.mrf.mxu0
    %v1240 = vadd.f32 %v1178, %v1239
    %1241 = vmatmul.f32.gmra.mxu0 %v1202
    %v1242 = vpop.f32.mrf.mxu0
    %v1243 = vadd.f32 %v1178, %v1242
    %1244 = vdwg.mxu0
    %v1246 = vrot.slane %v1170, 1
    %v1247 = vrot.slane %v1170, 2
    %v1248 = vrot.slane %v1170, 3
    %v1249 = vrot.slane %v1170, 4
    %v1250 = vrot.slane %v1170, 5
    %v1251 = vrot.slane %v1170, 6
    %v1252 = vrot.slane %v1170, 7
    %v1253 = vperm.slane %v1170, 0
    %v1254 = vperm.slane %v1246, 0
    %v1255 = vperm.slane %v1247, 0
    %v1256 = vperm.slane %v1248, 0
    %v1257 = vperm.slane %v1249, 0
    %v1258 = vperm.slane %v1250, 0
    %v1259 = vperm.slane %v1251, 0
    %v1260 = vperm.slane %v1252, 0
    %v1269 = vmul.f32 %v1253, %v1222
    %v1270 = vmul.f32 %v1254, %v1225
    %v1271 = vmul.f32 %v1255, %v1228
    %v1272 = vmul.f32 %v1256, %v1231
    %v1273 = vmul.f32 %v1257, %v1234
    %v1274 = vmul.f32 %v1258, %v1237
    %v1275 = vmul.f32 %v1259, %v1240
    %v1276 = vmul.f32 %v1260, %v1243
    %vm1277 = vcmask 130048
    %v1278 = vsel %vm1277, %v1269, 0.0
    %1279 = vadd.xlane.f32.xlu0 %v1278
    %v1280 = vpop.xlane.xlu0 %1279
    %v1281 = vsel %vm1277, %v1270, 0.0
    %1282 = vadd.xlane.f32.xlu0 %v1281
    %v1283 = vpop.xlane.xlu0 %1282
    %v1284 = vsel %vm1277, %v1271, 0.0
    %1285 = vadd.xlane.f32.xlu0 %v1284
    %v1286 = vpop.xlane.xlu0 %1285
    %v1287 = vsel %vm1277, %v1272, 0.0
    %1288 = vadd.xlane.f32.xlu0 %v1287
    %v1289 = vpop.xlane.xlu0 %1288
    %v1290 = vsel %vm1277, %v1273, 0.0
    %1291 = vadd.xlane.f32.xlu0 %v1290
    %v1292 = vpop.xlane.xlu0 %1291
    %v1293 = vsel %vm1277, %v1274, 0.0
    %1294 = vadd.xlane.f32.xlu0 %v1293
    %v1295 = vpop.xlane.xlu0 %1294
    %v1296 = vsel %vm1277, %v1275, 0.0
    %1297 = vadd.xlane.f32.xlu0 %v1296
    %v1298 = vpop.xlane.xlu0 %1297
    %v1299 = vsel %vm1277, %v1276, 0.0
    %1300 = vadd.xlane.f32.xlu0 %v1299
    %v1301 = vpop.xlane.xlu0 %1300
    %v1302 = vmul.f32 %v1280, 0.25
    %v1303 = vmul.f32 %v1283, 0.25
    %v1304 = vmul.f32 %v1286, 0.25
    %v1305 = vmul.f32 %v1289, 0.25
    %v1306 = vmul.f32 %v1292, 0.25
    %v1307 = vmul.f32 %v1295, 0.25
    %v1308 = vmul.f32 %v1298, 0.25
    %v1309 = vmul.f32 %v1301, 0.25
    %v1311 = vperm.slane %v899, 0
    %v1312 = vlaneseq
    %v1313 = vshrl.u32 %v1312, 7
    %1315 = vset.pattern.permute.xlu0 %v1313
    %1316 = vperm.xlu0 %1315, %v1311
    %v1317 = vpop.permute.xlu0 %1316
    %v1318 = vperm.slane %v899, 1
    %v1319 = vlaneseq
    %v1320 = vshrl.u32 %v1319, 7
    %1322 = vset.pattern.permute.xlu0 %v1320
    %1323 = vperm.xlu0 %1322, %v1318
    %v1324 = vpop.permute.xlu0 %1323
    %v1325 = vperm.slane %v899, 2
    %v1326 = vlaneseq
    %v1327 = vshrl.u32 %v1326, 7
    %1329 = vset.pattern.permute.xlu0 %v1327
    %1330 = vperm.xlu0 %1329, %v1325
    %v1331 = vpop.permute.xlu0 %1330
    %v1332 = vperm.slane %v899, 3
    %v1333 = vlaneseq
    %v1334 = vshrl.u32 %v1333, 7
    %1336 = vset.pattern.permute.xlu0 %v1334
    %1337 = vperm.xlu0 %1336, %v1332
    %v1338 = vpop.permute.xlu0 %1337
    %v1339 = vperm.slane %v899, 4
    %v1340 = vlaneseq
    %v1341 = vshrl.u32 %v1340, 7
    %1343 = vset.pattern.permute.xlu0 %v1341
    %1344 = vperm.xlu0 %1343, %v1339
    %v1345 = vpop.permute.xlu0 %1344
    %v1346 = vperm.slane %v899, 5
    %v1347 = vlaneseq
    %v1348 = vshrl.u32 %v1347, 7
    %1350 = vset.pattern.permute.xlu0 %v1348
    %1351 = vperm.xlu0 %1350, %v1346
    %v1352 = vpop.permute.xlu0 %1351
    %v1353 = vperm.slane %v899, 6
    %v1354 = vlaneseq
    %v1355 = vshrl.u32 %v1354, 7
    %1357 = vset.pattern.permute.xlu0 %v1355
    %1358 = vperm.xlu0 %1357, %v1353
    %v1359 = vpop.permute.xlu0 %1358
    %v1360 = vperm.slane %v899, 7
    %v1361 = vlaneseq
    %v1362 = vshrl.u32 %v1361, 7
    %1364 = vset.pattern.permute.xlu0 %v1362
    %1365 = vperm.xlu0 %1364, %v1360
    %v1366 = vpop.permute.xlu0 %1365
    %v1375 = vadd.f32 %v1302, %v1317
    %v1376 = vadd.f32 %v1303, %v1324
    %v1377 = vadd.f32 %v1304, %v1331
    %v1378 = vadd.f32 %v1305, %v1338
    %v1379 = vadd.f32 %v1306, %v1345
    %v1380 = vadd.f32 %v1307, %v1352
    %v1381 = vadd.f32 %v1308, %v1359
    %v1382 = vadd.f32 %v1309, %v1366
    %1391 = vset.pattern.permute.xlu0 0
    %1392 = vperm.xlu0 %1391, %v1375
    %v1393 = vpop.permute.xlu0 %1392
    %1394 = vset.pattern.permute.xlu0 0
    %1395 = vperm.xlu0 %1394, %v1376
    %v1396 = vpop.permute.xlu0 %1395
    %1397 = vset.pattern.permute.xlu0 0
    %1398 = vperm.xlu0 %1397, %v1377
    %v1399 = vpop.permute.xlu0 %1398
    %1400 = vset.pattern.permute.xlu0 0
    %1401 = vperm.xlu0 %1400, %v1378
    %v1402 = vpop.permute.xlu0 %1401
    %1403 = vset.pattern.permute.xlu0 0
    %1404 = vperm.xlu0 %1403, %v1379
    %v1405 = vpop.permute.xlu0 %1404
    %1406 = vset.pattern.permute.xlu0 0
    %1407 = vperm.xlu0 %1406, %v1380
    %v1408 = vpop.permute.xlu0 %1407
    %1409 = vset.pattern.permute.xlu0 0
    %1410 = vperm.xlu0 %1409, %v1381
    %v1411 = vpop.permute.xlu0 %1410
    %1412 = vset.pattern.permute.xlu0 0
    %1413 = vperm.xlu0 %1412, %v1382
    %v1414 = vpop.permute.xlu0 %1413
    %v1415 = vlaneseq
    %v1416 = vand.u32 %v1415, 127
    %v1417 = vperm.slane %v1393, %v1416
    %v1418 = vperm.slane %v1396, %v1416
    %v1419 = vperm.slane %v1399, %v1416
    %v1420 = vperm.slane %v1402, %v1416
    %v1421 = vperm.slane %v1405, %v1416
    %v1422 = vperm.slane %v1408, %v1416
    %v1423 = vperm.slane %v1411, %v1416
    %v1424 = vperm.slane %v1414, %v1416
    %vm1425 = vcmask 1041409
    %v1426 = vsel %vm1425, %v1418, %v1417
    %vm1427 = vcmask 1042434
    %v1428 = vsel %vm1427, %v1419, %v1426
    %vm1429 = vcmask 1043459
    %v1430 = vsel %vm1429, %v1420, %v1428
    %vm1431 = vcmask 1044484
    %v1432 = vsel %vm1431, %v1421, %v1430
    %vm1433 = vcmask 1045509
    %v1434 = vsel %vm1433, %v1422, %v1432
    %vm1435 = vcmask 1046534
    %v1436 = vsel %vm1435, %v1423, %v1434
    %vm1437 = vcmask 1047559
    %v1438 = vsel %vm1437, %v1424, %v1436
    %v1440 = vsel %vm890, %v1438, -inf
    %1441 = vmax.xlane.f32.xlu0 %v1440
    %v1442 = vpop.xlane.xlu0 %1441
    %v1444 = vperm.slane %v1442, 0
    %v1445 = vperm.slane %v1442, 1
    %v1446 = vperm.slane %v1442, 2
    %v1447 = vperm.slane %v1442, 3
    %v1448 = vperm.slane %v1442, 4
    %v1449 = vperm.slane %v1442, 5
    %v1450 = vperm.slane %v1442, 6
    %v1451 = vperm.slane %v1442, 7
    %v1460 = vsub.f32 %v1375, %v1444
    %v1461 = vsub.f32 %v1376, %v1445
    %v1462 = vsub.f32 %v1377, %v1446
    %v1463 = vsub.f32 %v1378, %v1447
    %v1464 = vsub.f32 %v1379, %v1448
    %v1465 = vsub.f32 %v1380, %v1449
    %v1466 = vsub.f32 %v1381, %v1450
    %v1467 = vsub.f32 %v1382, %v1451
    %v1468 = vmul.f32 %v1460, 1.442695
    %v1469 = vpow.pop %v1468
    %v1470 = vmul.f32 %v1461, 1.442695
    %v1471 = vpow.pop %v1470
    %v1472 = vmul.f32 %v1462, 1.442695
    %v1473 = vpow.pop %v1472
    %v1474 = vmul.f32 %v1463, 1.442695
    %v1475 = vpow.pop %v1474
    %v1476 = vmul.f32 %v1464, 1.442695
    %v1477 = vpow.pop %v1476
    %v1478 = vmul.f32 %v1465, 1.442695
    %v1479 = vpow.pop %v1478
    %v1480 = vmul.f32 %v1466, 1.442695
    %v1481 = vpow.pop %v1480
    %v1482 = vmul.f32 %v1467, 1.442695
    %v1483 = vpow.pop %v1482
    %1492 = vset.pattern.permute.xlu0 0
    %1493 = vperm.xlu0 %1492, %v1469
    %v1494 = vpop.permute.xlu0 %1493
    %1495 = vset.pattern.permute.xlu0 0
    %1496 = vperm.xlu0 %1495, %v1471
    %v1497 = vpop.permute.xlu0 %1496
    %1498 = vset.pattern.permute.xlu0 0
    %1499 = vperm.xlu0 %1498, %v1473
    %v1500 = vpop.permute.xlu0 %1499
    %1501 = vset.pattern.permute.xlu0 0
    %1502 = vperm.xlu0 %1501, %v1475
    %v1503 = vpop.permute.xlu0 %1502
    %1504 = vset.pattern.permute.xlu0 0
    %1505 = vperm.xlu0 %1504, %v1477
    %v1506 = vpop.permute.xlu0 %1505
    %1507 = vset.pattern.permute.xlu0 0
    %1508 = vperm.xlu0 %1507, %v1479
    %v1509 = vpop.permute.xlu0 %1508
    %1510 = vset.pattern.permute.xlu0 0
    %1511 = vperm.xlu0 %1510, %v1481
    %v1512 = vpop.permute.xlu0 %1511
    %1513 = vset.pattern.permute.xlu0 0
    %1514 = vperm.xlu0 %1513, %v1483
    %v1515 = vpop.permute.xlu0 %1514
    %v1516 = vperm.slane %v1494, %v1416
    %v1517 = vperm.slane %v1497, %v1416
    %v1518 = vperm.slane %v1500, %v1416
    %v1519 = vperm.slane %v1503, %v1416
    %v1520 = vperm.slane %v1506, %v1416
    %v1521 = vperm.slane %v1509, %v1416
    %v1522 = vperm.slane %v1512, %v1416
    %v1523 = vperm.slane %v1515, %v1416
    %v1524 = vsel %vm1425, %v1517, %v1516
    %v1525 = vsel %vm1427, %v1518, %v1524
    %v1526 = vsel %vm1429, %v1519, %v1525
    %v1527 = vsel %vm1431, %v1520, %v1526
    %v1528 = vsel %vm1433, %v1521, %v1527
    %v1529 = vsel %vm1435, %v1522, %v1528
    %v1530 = vsel %vm1437, %v1523, %v1529
    %v1532 = vsel %vm890, %v1530, 0.0
    %1533 = vadd.xlane.f32.xlu0 %v1532
    %v1534 = vpop.xlane.xlu0 %1533
    %v1535 = vrcp.pop %v1534
    %v1537 = vperm.slane %v1535, 0
    %v1538 = vperm.slane %v1535, 1
    %v1539 = vperm.slane %v1535, 2
    %v1540 = vperm.slane %v1535, 3
    %v1541 = vperm.slane %v1535, 4
    %v1542 = vperm.slane %v1535, 5
    %v1543 = vperm.slane %v1535, 6
    %v1544 = vperm.slane %v1535, 7
    %v1553 = vmul.f32 %v1469, %v1537
    %v1554 = vmul.f32 %v1471, %v1538
    %v1555 = vmul.f32 %v1473, %v1539
    %v1556 = vmul.f32 %v1475, %v1540
    %v1557 = vmul.f32 %v1477, %v1541
    %v1558 = vmul.f32 %v1479, %v1542
    %v1559 = vmul.f32 %v1481, %v1543
    %v1560 = vmul.f32 %v1483, %v1544
    %1562 = vset.pattern.permute.xlu0 0
    %1563 = vperm.xlu0 %1562, %v1553
    %v1564 = vpop.permute.xlu0 %1563
    %1567 = vset.pattern.permute.xlu0 0
    %1568 = vperm.xlu0 %1567, %v1554
    %v1569 = vpop.permute.xlu0 %1568
    %1572 = vset.pattern.permute.xlu0 0
    %1573 = vperm.xlu0 %1572, %v1555
    %v1574 = vpop.permute.xlu0 %1573
    %1577 = vset.pattern.permute.xlu0 0
    %1578 = vperm.xlu0 %1577, %v1556
    %v1579 = vpop.permute.xlu0 %1578
    %1582 = vset.pattern.permute.xlu0 0
    %1583 = vperm.xlu0 %1582, %v1557
    %v1584 = vpop.permute.xlu0 %1583
    %1587 = vset.pattern.permute.xlu0 0
    %1588 = vperm.xlu0 %1587, %v1558
    %v1589 = vpop.permute.xlu0 %1588
    %1592 = vset.pattern.permute.xlu0 0
    %1593 = vperm.xlu0 %1592, %v1559
    %v1594 = vpop.permute.xlu0 %1593
    %1597 = vset.pattern.permute.xlu0 0
    %1598 = vperm.xlu0 %1597, %v1560
    %v1599 = vpop.permute.xlu0 %1598
    %v1601 = vmul.f32 %v1564, %v1222
    %v1602 = vmul.f32 %v1569, %v1225
    %v1603 = vmul.f32 %v1574, %v1228
    %v1604 = vmul.f32 %v1579, %v1231
    %v1605 = vmul.f32 %v1584, %v1234
    %v1606 = vmul.f32 %v1589, %v1237
    %v1607 = vmul.f32 %v1594, %v1240
    %v1608 = vmul.f32 %v1599, %v1243
    %vm1609 = vcmask 392448
    %v1610 = vsel %vm1609, %v1601, 0.0
    %v1611 = vrot.slane %v1610, 4
    %v1612 = vadd.f32 %v1610, %v1611
    %v1613 = vrot.slane %v1612, 2
    %v1614 = vadd.f32 %v1612, %v1613
    %v1615 = vrot.slane %v1614, 1
    %v1616 = vadd.f32 %v1614, %v1615
    %v1617 = vsel %vm1609, %v1602, 0.0
    %v1618 = vrot.slane %v1617, 4
    %v1619 = vadd.f32 %v1617, %v1618
    %v1620 = vrot.slane %v1619, 2
    %v1621 = vadd.f32 %v1619, %v1620
    %v1622 = vrot.slane %v1621, 1
    %v1623 = vadd.f32 %v1621, %v1622
    %v1624 = vsel %vm1609, %v1603, 0.0
    %v1625 = vrot.slane %v1624, 4
    %v1626 = vadd.f32 %v1624, %v1625
    %v1627 = vrot.slane %v1626, 2
    %v1628 = vadd.f32 %v1626, %v1627
    %v1629 = vrot.slane %v1628, 1
    %v1630 = vadd.f32 %v1628, %v1629
    %v1631 = vsel %vm1609, %v1604, 0.0
    %v1632 = vrot.slane %v1631, 4
    %v1633 = vadd.f32 %v1631, %v1632
    %v1634 = vrot.slane %v1633, 2
    %v1635 = vadd.f32 %v1633, %v1634
    %v1636 = vrot.slane %v1635, 1
    %v1637 = vadd.f32 %v1635, %v1636
    %v1638 = vsel %vm1609, %v1605, 0.0
    %v1639 = vrot.slane %v1638, 4
    %v1640 = vadd.f32 %v1638, %v1639
    %v1641 = vrot.slane %v1640, 2
    %v1642 = vadd.f32 %v1640, %v1641
    %v1643 = vrot.slane %v1642, 1
    %v1644 = vadd.f32 %v1642, %v1643
    %v1645 = vsel %vm1609, %v1606, 0.0
    %v1646 = vrot.slane %v1645, 4
    %v1647 = vadd.f32 %v1645, %v1646
    %v1648 = vrot.slane %v1647, 2
    %v1649 = vadd.f32 %v1647, %v1648
    %v1650 = vrot.slane %v1649, 1
    %v1651 = vadd.f32 %v1649, %v1650
    %v1652 = vsel %vm1609, %v1607, 0.0
    %v1653 = vrot.slane %v1652, 4
    %v1654 = vadd.f32 %v1652, %v1653
    %v1655 = vrot.slane %v1654, 2
    %v1656 = vadd.f32 %v1654, %v1655
    %v1657 = vrot.slane %v1656, 1
    %v1658 = vadd.f32 %v1656, %v1657
    %v1659 = vsel %vm1609, %v1608, 0.0
    %v1660 = vrot.slane %v1659, 4
    %v1661 = vadd.f32 %v1659, %v1660
    %v1662 = vrot.slane %v1661, 2
    %v1663 = vadd.f32 %v1661, %v1662
    %v1664 = vrot.slane %v1663, 1
    %v1665 = vadd.f32 %v1663, %v1664
    %1674 = vrot.lane.b32.xlu0 %v1269, 112
    %v1675 = vpop.permute.xlu0 %1674
    %1676 = vrot.lane.b32.xlu0 %v1270, 112
    %v1677 = vpop.permute.xlu0 %1676
    %1678 = vrot.lane.b32.xlu0 %v1271, 112
    %v1679 = vpop.permute.xlu0 %1678
    %1680 = vrot.lane.b32.xlu0 %v1272, 112
    %v1681 = vpop.permute.xlu0 %1680
    %1682 = vrot.lane.b32.xlu0 %v1273, 112
    %v1683 = vpop.permute.xlu0 %1682
    %1684 = vrot.lane.b32.xlu0 %v1274, 112
    %v1685 = vpop.permute.xlu0 %1684
    %1686 = vrot.lane.b32.xlu0 %v1275, 112
    %v1687 = vpop.permute.xlu0 %1686
    %1688 = vrot.lane.b32.xlu0 %v1276, 112
    %v1689 = vpop.permute.xlu0 %1688
    %v1698 = vsel %vm1277, %v1675, 0.0
    %1699 = vadd.xlane.f32.xlu0 %v1698
    %v1700 = vpop.xlane.xlu0 %1699
    %v1701 = vsel %vm1277, %v1677, 0.0
    %1702 = vadd.xlane.f32.xlu0 %v1701
    %v1703 = vpop.xlane.xlu0 %1702
    %v1704 = vsel %vm1277, %v1679, 0.0
    %1705 = vadd.xlane.f32.xlu0 %v1704
    %v1706 = vpop.xlane.xlu0 %1705
    %v1707 = vsel %vm1277, %v1681, 0.0
    %1708 = vadd.xlane.f32.xlu0 %v1707
    %v1709 = vpop.xlane.xlu0 %1708
    %v1710 = vsel %vm1277, %v1683, 0.0
    %1711 = vadd.xlane.f32.xlu0 %v1710
    %v1712 = vpop.xlane.xlu0 %1711
    %v1713 = vsel %vm1277, %v1685, 0.0
    %1714 = vadd.xlane.f32.xlu0 %v1713
    %v1715 = vpop.xlane.xlu0 %1714
    %v1716 = vsel %vm1277, %v1687, 0.0
    %1717 = vadd.xlane.f32.xlu0 %v1716
    %v1718 = vpop.xlane.xlu0 %1717
    %v1719 = vsel %vm1277, %v1689, 0.0
    %1720 = vadd.xlane.f32.xlu0 %v1719
    %v1721 = vpop.xlane.xlu0 %1720
    %v1722 = vmul.f32 %v1700, 0.25
    %v1723 = vmul.f32 %v1703, 0.25
    %v1724 = vmul.f32 %v1706, 0.25
    %v1725 = vmul.f32 %v1709, 0.25
    %v1726 = vmul.f32 %v1712, 0.25
    %v1727 = vmul.f32 %v1715, 0.25
    %v1728 = vmul.f32 %v1718, 0.25
    %v1729 = vmul.f32 %v1721, 0.25
    %v1730 = vadd.f32 %v1722, %v1317
    %v1731 = vadd.f32 %v1723, %v1324
    %v1732 = vadd.f32 %v1724, %v1331
    %v1733 = vadd.f32 %v1725, %v1338
    %v1734 = vadd.f32 %v1726, %v1345
    %v1735 = vadd.f32 %v1727, %v1352
    %v1736 = vadd.f32 %v1728, %v1359
    %v1737 = vadd.f32 %v1729, %v1366
    %1746 = vset.pattern.permute.xlu0 0
    %1747 = vperm.xlu0 %1746, %v1730
    %v1748 = vpop.permute.xlu0 %1747
    %1749 = vset.pattern.permute.xlu0 0
    %1750 = vperm.xlu0 %1749, %v1731
    %v1751 = vpop.permute.xlu0 %1750
    %1752 = vset.pattern.permute.xlu0 0
    %1753 = vperm.xlu0 %1752, %v1732
    %v1754 = vpop.permute.xlu0 %1753
    %1755 = vset.pattern.permute.xlu0 0
    %1756 = vperm.xlu0 %1755, %v1733
    %v1757 = vpop.permute.xlu0 %1756
    %1758 = vset.pattern.permute.xlu0 0
    %1759 = vperm.xlu0 %1758, %v1734
    %v1760 = vpop.permute.xlu0 %1759
    %1761 = vset.pattern.permute.xlu0 0
    %1762 = vperm.xlu0 %1761, %v1735
    %v1763 = vpop.permute.xlu0 %1762
    %1764 = vset.pattern.permute.xlu0 0
    %1765 = vperm.xlu0 %1764, %v1736
    %v1766 = vpop.permute.xlu0 %1765
    %1767 = vset.pattern.permute.xlu0 0
    %1768 = vperm.xlu0 %1767, %v1737
    %v1769 = vpop.permute.xlu0 %1768
    %v1770 = vperm.slane %v1748, %v1416
    %v1771 = vperm.slane %v1751, %v1416
    %v1772 = vperm.slane %v1754, %v1416
    %v1773 = vperm.slane %v1757, %v1416
    %v1774 = vperm.slane %v1760, %v1416
    %v1775 = vperm.slane %v1763, %v1416
    %v1776 = vperm.slane %v1766, %v1416
    %v1777 = vperm.slane %v1769, %v1416
    %v1778 = vsel %vm1425, %v1771, %v1770
    %v1779 = vsel %vm1427, %v1772, %v1778
    %v1780 = vsel %vm1429, %v1773, %v1779
    %v1781 = vsel %vm1431, %v1774, %v1780
    %v1782 = vsel %vm1433, %v1775, %v1781
    %v1783 = vsel %vm1435, %v1776, %v1782
    %v1784 = vsel %vm1437, %v1777, %v1783
    %v1786 = vsel %vm890, %v1784, -inf
    %1787 = vmax.xlane.f32.xlu0 %v1786
    %v1788 = vpop.xlane.xlu0 %1787
    %v1790 = vperm.slane %v1788, 0
    %v1791 = vperm.slane %v1788, 1
    %v1792 = vperm.slane %v1788, 2
    %v1793 = vperm.slane %v1788, 3
    %v1794 = vperm.slane %v1788, 4
    %v1795 = vperm.slane %v1788, 5
    %v1796 = vperm.slane %v1788, 6
    %v1797 = vperm.slane %v1788, 7
    %v1806 = vsub.f32 %v1730, %v1790
    %v1807 = vsub.f32 %v1731, %v1791
    %v1808 = vsub.f32 %v1732, %v1792
    %v1809 = vsub.f32 %v1733, %v1793
    %v1810 = vsub.f32 %v1734, %v1794
    %v1811 = vsub.f32 %v1735, %v1795
    %v1812 = vsub.f32 %v1736, %v1796
    %v1813 = vsub.f32 %v1737, %v1797
    %v1814 = vmul.f32 %v1806, 1.442695
    %v1815 = vpow.pop %v1814
    %v1816 = vmul.f32 %v1807, 1.442695
    %v1817 = vpow.pop %v1816
    %v1818 = vmul.f32 %v1808, 1.442695
    %v1819 = vpow.pop %v1818
    %v1820 = vmul.f32 %v1809, 1.442695
    %v1821 = vpow.pop %v1820
    %v1822 = vmul.f32 %v1810, 1.442695
    %v1823 = vpow.pop %v1822
    %v1824 = vmul.f32 %v1811, 1.442695
    %v1825 = vpow.pop %v1824
    %v1826 = vmul.f32 %v1812, 1.442695
    %v1827 = vpow.pop %v1826
    %v1828 = vmul.f32 %v1813, 1.442695
    %v1829 = vpow.pop %v1828
    %1838 = vset.pattern.permute.xlu0 0
    %1839 = vperm.xlu0 %1838, %v1815
    %v1840 = vpop.permute.xlu0 %1839
    %1841 = vset.pattern.permute.xlu0 0
    %1842 = vperm.xlu0 %1841, %v1817
    %v1843 = vpop.permute.xlu0 %1842
    %1844 = vset.pattern.permute.xlu0 0
    %1845 = vperm.xlu0 %1844, %v1819
    %v1846 = vpop.permute.xlu0 %1845
    %1847 = vset.pattern.permute.xlu0 0
    %1848 = vperm.xlu0 %1847, %v1821
    %v1849 = vpop.permute.xlu0 %1848
    %1850 = vset.pattern.permute.xlu0 0
    %1851 = vperm.xlu0 %1850, %v1823
    %v1852 = vpop.permute.xlu0 %1851
    %1853 = vset.pattern.permute.xlu0 0
    %1854 = vperm.xlu0 %1853, %v1825
    %v1855 = vpop.permute.xlu0 %1854
    %1856 = vset.pattern.permute.xlu0 0
    %1857 = vperm.xlu0 %1856, %v1827
    %v1858 = vpop.permute.xlu0 %1857
    %1859 = vset.pattern.permute.xlu0 0
    %1860 = vperm.xlu0 %1859, %v1829
    %v1861 = vpop.permute.xlu0 %1860
    %v1862 = vperm.slane %v1840, %v1416
    %v1863 = vperm.slane %v1843, %v1416
    %v1864 = vperm.slane %v1846, %v1416
    %v1865 = vperm.slane %v1849, %v1416
    %v1866 = vperm.slane %v1852, %v1416
    %v1867 = vperm.slane %v1855, %v1416
    %v1868 = vperm.slane %v1858, %v1416
    %v1869 = vperm.slane %v1861, %v1416
    %v1870 = vsel %vm1425, %v1863, %v1862
    %v1871 = vsel %vm1427, %v1864, %v1870
    %v1872 = vsel %vm1429, %v1865, %v1871
    %v1873 = vsel %vm1431, %v1866, %v1872
    %v1874 = vsel %vm1433, %v1867, %v1873
    %v1875 = vsel %vm1435, %v1868, %v1874
    %v1876 = vsel %vm1437, %v1869, %v1875
    %v1878 = vsel %vm890, %v1876, 0.0
    %1879 = vadd.xlane.f32.xlu0 %v1878
    %v1880 = vpop.xlane.xlu0 %1879
    %v1881 = vrcp.pop %v1880
    %v1883 = vperm.slane %v1881, 0
    %v1884 = vperm.slane %v1881, 1
    %v1885 = vperm.slane %v1881, 2
    %v1886 = vperm.slane %v1881, 3
    %v1887 = vperm.slane %v1881, 4
    %v1888 = vperm.slane %v1881, 5
    %v1889 = vperm.slane %v1881, 6
    %v1890 = vperm.slane %v1881, 7
    %v1899 = vmul.f32 %v1815, %v1883
    %v1900 = vmul.f32 %v1817, %v1884
    %v1901 = vmul.f32 %v1819, %v1885
    %v1902 = vmul.f32 %v1821, %v1886
    %v1903 = vmul.f32 %v1823, %v1887
    %v1904 = vmul.f32 %v1825, %v1888
    %v1905 = vmul.f32 %v1827, %v1889
    %v1906 = vmul.f32 %v1829, %v1890
    %1908 = vset.pattern.permute.xlu0 0
    %1909 = vperm.xlu0 %1908, %v1899
    %v1910 = vpop.permute.xlu0 %1909
    %1913 = vset.pattern.permute.xlu0 0
    %1914 = vperm.xlu0 %1913, %v1900
    %v1915 = vpop.permute.xlu0 %1914
    %1918 = vset.pattern.permute.xlu0 0
    %1919 = vperm.xlu0 %1918, %v1901
    %v1920 = vpop.permute.xlu0 %1919
    %1923 = vset.pattern.permute.xlu0 0
    %1924 = vperm.xlu0 %1923, %v1902
    %v1925 = vpop.permute.xlu0 %1924
    %1928 = vset.pattern.permute.xlu0 0
    %1929 = vperm.xlu0 %1928, %v1903
    %v1930 = vpop.permute.xlu0 %1929
    %1933 = vset.pattern.permute.xlu0 0
    %1934 = vperm.xlu0 %1933, %v1904
    %v1935 = vpop.permute.xlu0 %1934
    %1938 = vset.pattern.permute.xlu0 0
    %1939 = vperm.xlu0 %1938, %v1905
    %v1940 = vpop.permute.xlu0 %1939
    %1943 = vset.pattern.permute.xlu0 0
    %1944 = vperm.xlu0 %1943, %v1906
    %v1945 = vpop.permute.xlu0 %1944
    %v1947 = vmul.f32 %v1910, %v1222
    %v1948 = vmul.f32 %v1915, %v1225
    %v1949 = vmul.f32 %v1920, %v1228
    %v1950 = vmul.f32 %v1925, %v1231
    %v1951 = vmul.f32 %v1930, %v1234
    %v1952 = vmul.f32 %v1935, %v1237
    %v1953 = vmul.f32 %v1940, %v1240
    %v1954 = vmul.f32 %v1945, %v1243
    %vm1955 = vcmask 523648
    %v1956 = vsel %vm1955, %v1947, 0.0
    %v1957 = vrot.slane %v1956, 4
    %v1958 = vadd.f32 %v1956, %v1957
    %v1959 = vrot.slane %v1958, 2
    %v1960 = vadd.f32 %v1958, %v1959
    %v1961 = vrot.slane %v1960, 1
    %v1962 = vadd.f32 %v1960, %v1961
    %v1963 = vsel %vm1955, %v1948, 0.0
    %v1964 = vrot.slane %v1963, 4
    %v1965 = vadd.f32 %v1963, %v1964
    %v1966 = vrot.slane %v1965, 2
    %v1967 = vadd.f32 %v1965, %v1966
    %v1968 = vrot.slane %v1967, 1
    %v1969 = vadd.f32 %v1967, %v1968
    %v1970 = vsel %vm1955, %v1949, 0.0
    %v1971 = vrot.slane %v1970, 4
    %v1972 = vadd.f32 %v1970, %v1971
    %v1973 = vrot.slane %v1972, 2
    %v1974 = vadd.f32 %v1972, %v1973
    %v1975 = vrot.slane %v1974, 1
    %v1976 = vadd.f32 %v1974, %v1975
    %v1977 = vsel %vm1955, %v1950, 0.0
    %v1978 = vrot.slane %v1977, 4
    %v1979 = vadd.f32 %v1977, %v1978
    %v1980 = vrot.slane %v1979, 2
    %v1981 = vadd.f32 %v1979, %v1980
    %v1982 = vrot.slane %v1981, 1
    %v1983 = vadd.f32 %v1981, %v1982
    %v1984 = vsel %vm1955, %v1951, 0.0
    %v1985 = vrot.slane %v1984, 4
    %v1986 = vadd.f32 %v1984, %v1985
    %v1987 = vrot.slane %v1986, 2
    %v1988 = vadd.f32 %v1986, %v1987
    %v1989 = vrot.slane %v1988, 1
    %v1990 = vadd.f32 %v1988, %v1989
    %v1991 = vsel %vm1955, %v1952, 0.0
    %v1992 = vrot.slane %v1991, 4
    %v1993 = vadd.f32 %v1991, %v1992
    %v1994 = vrot.slane %v1993, 2
    %v1995 = vadd.f32 %v1993, %v1994
    %v1996 = vrot.slane %v1995, 1
    %v1997 = vadd.f32 %v1995, %v1996
    %v1998 = vsel %vm1955, %v1953, 0.0
    %v1999 = vrot.slane %v1998, 4
    %v2000 = vadd.f32 %v1998, %v1999
    %v2001 = vrot.slane %v2000, 2
    %v2002 = vadd.f32 %v2000, %v2001
    %v2003 = vrot.slane %v2002, 1
    %v2004 = vadd.f32 %v2002, %v2003
    %v2005 = vsel %vm1955, %v1954, 0.0
    %v2006 = vrot.slane %v2005, 4
    %v2007 = vadd.f32 %v2005, %v2006
    %v2008 = vrot.slane %v2007, 2
    %v2009 = vadd.f32 %v2007, %v2008
    %v2010 = vrot.slane %v2009, 1
    %v2011 = vadd.f32 %v2009, %v2010
    %v2020 = vsel %vm1425, %v1623, %v1616
    %v2021 = vsel %vm1427, %v1630, %v2020
    %v2022 = vsel %vm1429, %v1637, %v2021
    %v2023 = vsel %vm1431, %v1644, %v2022
    %v2024 = vsel %vm1433, %v1651, %v2023
    %v2025 = vsel %vm1435, %v1658, %v2024
    %v2026 = vsel %vm1437, %v1665, %v2025
    %2027 = vrot.lane.b32.xlu0 %v2026, 96
    %v2028 = vpop.permute.xlu0 %2027
    %v2038 = vsel %vm1425, %v1969, %v1962
    %v2039 = vsel %vm1427, %v1976, %v2038
    %v2040 = vsel %vm1429, %v1983, %v2039
    %v2041 = vsel %vm1431, %v1990, %v2040
    %v2042 = vsel %vm1433, %v1997, %v2041
    %v2043 = vsel %vm1435, %v2004, %v2042
    %v2044 = vsel %vm1437, %v2011, %v2043
    %2045 = vrot.lane.b32.xlu0 %v2044, 96
    %v2046 = vpop.permute.xlu0 %2045
    %v2048 = vsel %vm1277, %v2028, %v2046
    %v2049 = vld [vmem:[%s14] sm:$0xff]
    %v2050 = vld [vmem:[%s14 + $0x8] sm:$0xff]
    %v2051 = vld [vmem:[%s14 + $0x10] sm:$0xff]
    %v2052 = vld [vmem:[%s14 + $0x18] sm:$0xff]
    %v2054 = vsel %vm903, %v2048, 0
    %2056 = vmatpush.msra.mxu0 0.0
    %2057 = vmatpush.msra.mxu0 0.0
    %2058 = vmatpush.msra.mxu0 0.0
    %2059 = vmatpush.msra.mxu0 0.0
    %2060 = vmatpush.msra.mxu0 0.0
    %2061 = vmatpush.msra.mxu0 0.0
    %2062 = vmatpush.msra.mxu0 0.0
    %2063 = vmatpush.msra.mxu0 0.0
    %2064 = vmatpush.msra.mxu0 0.0
    %2065 = vmatpush.msra.mxu0 0.0
    %2066 = vmatpush.msra.mxu0 0.0
    %2067 = vmatpush.msra.mxu0 0.0
    %2068 = vmatpush.msra.mxu0 %v2052
    %2069 = vmatpush.msra.mxu0 %v2051
    %2070 = vmatpush.msra.mxu0 %v2050
    %2071 = vmatpush.msra.mxu0 %v2049
    %2072 = vmatmul.f32.gmra.mxu0 %v2054
    %v2073 = vpop.f32.mrf.mxu0
    %v2074 = vadd.f32 0.0, %v2073
    %2075 = vdwg.mxu0
    %v2076 = vadd.f32 %v900, %v2074
    %v2077 = vld [vmem:[%s15] sm:$0x1]
    %v2079 = vperm.slane %v2077, 0
    %v2081 = vadd.f32 %v2076, %v2079
    %v2082 = vld [vmem:[#allocation6] sm:$0x1]
    %v2083 = vld [vmem:[#allocation7] sm:$0x1]
    %v2084 = vsel %vm903, %v2081, 0.0
    %2085 = vadd.xlane.f32.xlu0 %v2084
    %v2086 = vpop.xlane.xlu0 %2085
    %v2087 = vmul.f32 %v2086, %v913
    %v2088 = vsub.f32 %v2081, %v2087
    %v2089 = vmul.f32 %v2088, %v2088
    %v2090 = vsel %vm903, %v2089, 0.0
    %2091 = vadd.xlane.f32.xlu0 %v2090
    %v2092 = vpop.xlane.xlu0 %2091
    %v2093 = vmul.f32 %v2092, %v913
    %v2094 = vadd.f32 %v2093, 1e-05
    %v2095 = vrsqrt.pop %v2094
    %v2096 = vmul.f32 %v2095, %v2094
    %v2097 = vmul.f32 %v2096, %v2095
    %v2098 = vmul.f32 0.5, %v2097
    %v2099 = vsub.f32 1.5, %v2098
    %v2100 = vmul.f32 %v2095, %v2099
    %vm2101 = vweird.f32 %v2094
    %vm2102 = vweird.f32 %v2095
    %vm2103 = vmor %vm2101, %vm2102
    %v2104 = vsel %vm2103, %v2095, %v2100
    %v2105 = vmul.f32 %v2088, %v2104
    %v2107 = vperm.slane %v2082, 0
    %v2109 = vmul.f32 %v2105, %v2107
    %v2111 = vperm.slane %v2083, 0
    %v2113 = vadd.f32 %v2109, %v2111
    %v2114 = vld [vmem:[%s18] sm:$0xff]
    %v2115 = vld [vmem:[%s18 + $0x8] sm:$0xff]
    %v2116 = vld [vmem:[%s18 + $0x10] sm:$0xff]
    %v2117 = vld [vmem:[%s18 + $0x18] sm:$0xff]
    %v2118 = vld [vmem:[%s19] sm:$0x1]
    %v2120 = vperm.slane %v2118, 0
    %v2123 = vsel %vm903, %v2113, 0
    %2125 = vmatpush.msra.mxu0 0.0
    %2126 = vmatpush.msra.mxu0 0.0
    %2127 = vmatpush.msra.mxu0 0.0
    %2128 = vmatpush.msra.mxu0 0.0
    %2129 = vmatpush.msra.mxu0 0.0
    %2130 = vmatpush.msra.mxu0 0.0
    %2131 = vmatpush.msra.mxu0 0.0
    %2132 = vmatpush.msra.mxu0 0.0
    %2133 = vmatpush.msra.mxu0 0.0
    %2134 = vmatpush.msra.mxu0 0.0
    %2135 = vmatpush.msra.mxu0 0.0
    %2136 = vmatpush.msra.mxu0 0.0
    %2137 = vmatpush.msra.mxu0 %v2117
    %2138 = vmatpush.msra.mxu0 %v2116
    %2139 = vmatpush.msra.mxu0 %v2115
    %2140 = vmatpush.msra.mxu0 %v2114
    %2141 = vmatmul.f32.gmra.mxu0 %v2123
    %v2142 = vpop.f32.mrf.mxu0
    %v2143 = vadd.f32 %v2120, %v2142
    %2144 = vdwg.mxu0
    %v2145 = vmax.f32 %v2143, 0.0
    %v2146 = vld [vmem:[%s20] sm:$0xff]
    %v2147 = vld [vmem:[%s20 + $0x8] sm:$0xff]
    %v2148 = vld [vmem:[%s20 + $0x10] sm:$0xff]
    %v2149 = vld [vmem:[%s20 + $0x18] sm:$0xff]
    %v2150 = vld [vmem:[%s20 + $0x20] sm:$0xff]
    %v2151 = vld [vmem:[%s20 + $0x28] sm:$0xff]
    %v2152 = vld [vmem:[%s20 + $0x30] sm:$0xff]
    %v2153 = vld [vmem:[%s20 + $0x38] sm:$0xff]
    %vm2154 = vcmask 523264
    %v2156 = vsel %vm2154, %v2145, 0
    %2158 = vmatpush.msra.mxu0 0.0
    %2159 = vmatpush.msra.mxu0 0.0
    %2160 = vmatpush.msra.mxu0 0.0
    %2161 = vmatpush.msra.mxu0 0.0
    %2162 = vmatpush.msra.mxu0 0.0
    %2163 = vmatpush.msra.mxu0 0.0
    %2164 = vmatpush.msra.mxu0 0.0
    %2165 = vmatpush.msra.mxu0 0.0
    %2166 = vmatpush.msra.mxu0 %v2153
    %2167 = vmatpush.msra.mxu0 %v2152
    %2168 = vmatpush.msra.mxu0 %v2151
    %2169 = vmatpush.msra.mxu0 %v2150
    %2170 = vmatpush.msra.mxu0 %v2149
    %2171 = vmatpush.msra.mxu0 %v2148
    %2172 = vmatpush.msra.mxu0 %v2147
    %2173 = vmatpush.msra.mxu0 %v2146
    %2174 = vmatmul.f32.gmra.mxu0 %v2156
    %v2175 = vpop.f32.mrf.mxu0
    %v2176 = vadd.f32 0.0, %v2175
    %2177 = vdwg.mxu0
    %v2178 = vadd.f32 %v2081, %v2176
    %v2179 = vld [vmem:[%s21] sm:$0x1]
    %v2181 = vperm.slane %v2179, 0
    %v2183 = vadd.f32 %v2178, %v2181
    %s2184 = scalar_lea.vmem %s6, 1
    %v2185 = vld [vmem:[%s2184] sm:$0x1]
    %s2186 = scalar_lea.vmem %s7, 1
    %v2187 = vld [vmem:[%s2186] sm:$0x1]
    %v2188 = vsel %vm903, %v2183, 0.0
    %2189 = vadd.xlane.f32.xlu0 %v2188
    %v2190 = vpop.xlane.xlu0 %2189
    %v2191 = vmul.f32 %v2190, %v913
    %v2192 = vsub.f32 %v2183, %v2191
    %v2193 = vmul.f32 %v2192, %v2192
    %v2194 = vsel %vm903, %v2193, 0.0
    %2195 = vadd.xlane.f32.xlu0 %v2194
    %v2196 = vpop.xlane.xlu0 %2195
    %v2197 = vmul.f32 %v2196, %v913
    %v2198 = vadd.f32 %v2197, 1e-05
    %v2199 = vrsqrt.pop %v2198
    %v2200 = vmul.f32 %v2199, %v2198
    %v2201 = vmul.f32 %v2200, %v2199
    %v2202 = vmul.f32 0.5, %v2201
    %v2203 = vsub.f32 1.5, %v2202
    %v2204 = vmul.f32 %v2199, %v2203
    %vm2205 = vweird.f32 %v2198
    %vm2206 = vweird.f32 %v2199
    %vm2207 = vmor %vm2205, %vm2206
    %v2208 = vsel %vm2207, %v2199, %v2204
    %v2209 = vmul.f32 %v2192, %v2208
    %v2211 = vperm.slane %v2185, 0
    %v2213 = vmul.f32 %v2209, %v2211
    %v2215 = vperm.slane %v2187, 0
    %v2217 = vadd.f32 %v2213, %v2215
    %s2218 = scalar_lea.vmem [#allocation2], 1
    %v2219 = vld [vmem:[%s2218] sm:$0x1]
    %s2220 = scalar_lea.vmem [#allocation4], 1
    %v2221 = vld [vmem:[%s2220] sm:$0x1]
    %v2223 = vperm.slane %v2219, 0
    %v2225 = vmul.f32 %v1111, %v2223
    %v2226 = vmul.f32 %v1112, %v2223
    %v2227 = vmul.f32 %v1113, %v2223
    %v2228 = vmul.f32 %v1114, %v2223
    %v2229 = vmul.f32 %v1115, %v2223
    %v2230 = vmul.f32 %v1116, %v2223
    %v2231 = vmul.f32 %v1117, %v2223
    %v2232 = vmul.f32 %v1118, %v2223
    %v2234 = vperm.slane %v2221, 0
    %v2236 = vadd.f32 %v2225, %v2234
    %v2237 = vadd.f32 %v2226, %v2234
    %v2238 = vadd.f32 %v2227, %v2234
    %v2239 = vadd.f32 %v2228, %v2234
    %v2240 = vadd.f32 %v2229, %v2234
    %v2241 = vadd.f32 %v2230, %v2234
    %v2242 = vadd.f32 %v2231, %v2234
    %v2243 = vadd.f32 %v2232, %v2234
    %s2244 = scalar_lea.vmem %s10, 32
    %v2245 = vld [vmem:[%s2244] sm:$0xff]
    %v2246 = vld [vmem:[%s2244 + $0x8] sm:$0xff]
    %v2247 = vld [vmem:[%s2244 + $0x10] sm:$0xff]
    %v2248 = vld [vmem:[%s2244 + $0x18] sm:$0xff]
    %s2249 = scalar_lea.vmem %s11, 1
    %v2250 = vld [vmem:[%s2249] sm:$0x1]
    %v2252 = vperm.slane %v2250, 0
    %v2255 = vsel %vm903, %v2217, 0
    %2257 = vmatpush.msra.mxu0 0.0
    %2258 = vmatpush.msra.mxu0 0.0
    %2259 = vmatpush.msra.mxu0 0.0
    %2260 = vmatpush.msra.mxu0 0.0
    %2261 = vmatpush.msra.mxu0 0.0
    %2262 = vmatpush.msra.mxu0 0.0
    %2263 = vmatpush.msra.mxu0 0.0
    %2264 = vmatpush.msra.mxu0 0.0
    %2265 = vmatpush.msra.mxu0 0.0
    %2266 = vmatpush.msra.mxu0 0.0
    %2267 = vmatpush.msra.mxu0 0.0
    %2268 = vmatpush.msra.mxu0 0.0
    %2269 = vmatpush.msra.mxu0 %v2248
    %2270 = vmatpush.msra.mxu0 %v2247
    %2271 = vmatpush.msra.mxu0 %v2246
    %2272 = vmatpush.msra.mxu0 %v2245
    %2273 = vmatmul.f32.gmra.mxu0 %v2255
    %v2274 = vpop.f32.mrf.mxu0
    %v2275 = vadd.f32 %v2252, %v2274
    %2276 = vdwg.mxu0
    %s2277 = scalar_lea.vmem %s12, 32
    %v2278 = vld [vmem:[%s2277] sm:$0xff]
    %v2279 = vld [vmem:[%s2277 + $0x8] sm:$0xff]
    %v2280 = vld [vmem:[%s2277 + $0x10] sm:$0xff]
    %v2281 = vld [vmem:[%s2277 + $0x18] sm:$0xff]
    %s2282 = scalar_lea.vmem %s13, 1
    %v2283 = vld [vmem:[%s2282] sm:$0x1]
    %v2285 = vperm.slane %v2283, 0
    %v2288 = vsel %vm903, %v2236, 0
    %v2291 = vsel %vm903, %v2237, 0
    %v2294 = vsel %vm903, %v2238, 0
    %v2297 = vsel %vm903, %v2239, 0
    %v2300 = vsel %vm903, %v2240, 0
    %v2303 = vsel %vm903, %v2241, 0
    %v2306 = vsel %vm903, %v2242, 0
    %v2309 = vsel %vm903, %v2243, 0
    %2311 = vmatpush.msra.mxu0 0.0
    %2312 = vmatpush.msra.mxu0 0.0
    %2313 = vmatpush.msra.mxu0 0.0
    %2314 = vmatpush.msra.mxu0 0.0
    %2315 = vmatpush.msra.mxu0 0.0
    %2316 = vmatpush.msra.mxu0 0.0
    %2317 = vmatpush.msra.mxu0 0.0
    %2318 = vmatpush.msra.mxu0 0.0
    %2319 = vmatpush.msra.mxu0 0.0
    %2320 = vmatpush.msra.mxu0 0.0
    %2321 = vmatpush.msra.mxu0 0.0
    %2322 = vmatpush.msra.mxu0 0.0
    %2323 = vmatpush.msra.mxu0 %v2281
    %2324 = vmatpush.msra.mxu0 %v2280
    %2325 = vmatpush.msra.mxu0 %v2279
    %2326 = vmatpush.msra.mxu0 %v2278
    %2327 = vmatmul.f32.gmra.mxu0 %v2288
    %v2328 = vpop.f32.mrf.mxu0
    %v2329 = vadd.f32 %v2285, %v2328
    %2330 = vmatmul.f32.gmra.mxu0 %v2291
    %v2331 = vpop.f32.mrf.mxu0
    %v2332 = vadd.f32 %v2285, %v2331
    %2333 = vmatmul.f32.gmra.mxu0 %v2294
    %v2334 = vpop.f32.mrf.mxu0
    %v2335 = vadd.f32 %v2285, %v2334
    %2336 = vmatmul.f32.gmra.mxu0 %v2297
    %v2337 = vpop.f32.mrf.mxu0
    %v2338 = vadd.f32 %v2285, %v2337
    %2339 = vmatmul.f32.gmra.mxu0 %v2300
    %v2340 = vpop.f32.mrf.mxu0
    %v2341 = vadd.f32 %v2285, %v2340
    %2342 = vmatmul.f32.gmra.mxu0 %v2303
    %v2343 = vpop.f32.mrf.mxu0
    %v2344 = vadd.f32 %v2285, %v2343
    %2345 = vmatmul.f32.gmra.mxu0 %v2306
    %v2346 = vpop.f32.mrf.mxu0
    %v2347 = vadd.f32 %v2285, %v2346
    %2348 = vmatmul.f32.gmra.mxu0 %v2309
    %v2349 = vpop.f32.mrf.mxu0
    %v2350 = vadd.f32 %v2285, %v2349
    %2351 = vdwg.mxu0
    %v2353 = vrot.slane %v2275, 1
    %v2354 = vrot.slane %v2275, 2
    %v2355 = vrot.slane %v2275, 3
    %v2356 = vrot.slane %v2275, 4
    %v2357 = vrot.slane %v2275, 5
    %v2358 = vrot.slane %v2275, 6
    %v2359 = vrot.slane %v2275, 7
    %v2360 = vperm.slane %v2275, 0
    %v2361 = vperm.slane %v2353, 0
    %v2362 = vperm.slane %v2354, 0
    %v2363 = vperm.slane %v2355, 0
    %v2364 = vperm.slane %v2356, 0
    %v2365 = vperm.slane %v2357, 0
    %v2366 = vperm.slane %v2358, 0
    %v2367 = vperm.slane %v2359, 0
    %v2376 = vmul.f32 %v2360, %v2329
    %v2377 = vmul.f32 %v2361, %v2332
    %v2378 = vmul.f32 %v2362, %v2335
    %v2379 = vmul.f32 %v2363, %v2338
    %v2380 = vmul.f32 %v2364, %v2341
    %v2381 = vmul.f32 %v2365, %v2344
    %v2382 = vmul.f32 %v2366, %v2347
    %v2383 = vmul.f32 %v2367, %v2350
    %v2384 = vsel %vm1277, %v2376, 0.0
    %2385 = vadd.xlane.f32.xlu0 %v2384
    %v2386 = vpop.xlane.xlu0 %2385
    %v2387 = vsel %vm1277, %v2377, 0.0
    %2388 = vadd.xlane.f32.xlu0 %v2387
    %v2389 = vpop.xlane.xlu0 %2388
    %v2390 = vsel %vm1277, %v2378, 0.0
    %2391 = vadd.xlane.f32.xlu0 %v2390
    %v2392 = vpop.xlane.xlu0 %2391
    %v2393 = vsel %vm1277, %v2379, 0.0
    %2394 = vadd.xlane.f32.xlu0 %v2393
    %v2395 = vpop.xlane.xlu0 %2394
    %v2396 = vsel %vm1277, %v2380, 0.0
    %2397 = vadd.xlane.f32.xlu0 %v2396
    %v2398 = vpop.xlane.xlu0 %2397
    %v2399 = vsel %vm1277, %v2381, 0.0
    %2400 = vadd.xlane.f32.xlu0 %v2399
    %v2401 = vpop.xlane.xlu0 %2400
    %v2402 = vsel %vm1277, %v2382, 0.0
    %2403 = vadd.xlane.f32.xlu0 %v2402
    %v2404 = vpop.xlane.xlu0 %2403
    %v2405 = vsel %vm1277, %v2383, 0.0
    %2406 = vadd.xlane.f32.xlu0 %v2405
    %v2407 = vpop.xlane.xlu0 %2406
    %v2408 = vmul.f32 %v2386, 0.25
    %v2409 = vmul.f32 %v2389, 0.25
    %v2410 = vmul.f32 %v2392, 0.25
    %v2411 = vmul.f32 %v2395, 0.25
    %v2412 = vmul.f32 %v2398, 0.25
    %v2413 = vmul.f32 %v2401, 0.25
    %v2414 = vmul.f32 %v2404, 0.25
    %v2415 = vmul.f32 %v2407, 0.25
    %v2416 = vadd.f32 %v2408, %v1317
    %v2417 = vadd.f32 %v2409, %v1324
    %v2418 = vadd.f32 %v2410, %v1331
    %v2419 = vadd.f32 %v2411, %v1338
    %v2420 = vadd.f32 %v2412, %v1345
    %v2421 = vadd.f32 %v2413, %v1352
    %v2422 = vadd.f32 %v2414, %v1359
    %v2423 = vadd.f32 %v2415, %v1366
    %2432 = vset.pattern.permute.xlu0 0
    %2433 = vperm.xlu0 %2432, %v2416
    %v2434 = vpop.permute.xlu0 %2433
    %2435 = vset.pattern.permute.xlu0 0
    %2436 = vperm.xlu0 %2435, %v2417
    %v2437 = vpop.permute.xlu0 %2436
    %2438 = vset.pattern.permute.xlu0 0
    %2439 = vperm.xlu0 %2438, %v2418
    %v2440 = vpop.permute.xlu0 %2439
    %2441 = vset.pattern.permute.xlu0 0
    %2442 = vperm.xlu0 %2441, %v2419
    %v2443 = vpop.permute.xlu0 %2442
    %2444 = vset.pattern.permute.xlu0 0
    %2445 = vperm.xlu0 %2444, %v2420
    %v2446 = vpop.permute.xlu0 %2445
    %2447 = vset.pattern.permute.xlu0 0
    %2448 = vperm.xlu0 %2447, %v2421
    %v2449 = vpop.permute.xlu0 %2448
    %2450 = vset.pattern.permute.xlu0 0
    %2451 = vperm.xlu0 %2450, %v2422
    %v2452 = vpop.permute.xlu0 %2451
    %2453 = vset.pattern.permute.xlu0 0
    %2454 = vperm.xlu0 %2453, %v2423
    %v2455 = vpop.permute.xlu0 %2454
    %v2456 = vperm.slane %v2434, %v1416
    %v2457 = vperm.slane %v2437, %v1416
    %v2458 = vperm.slane %v2440, %v1416
    %v2459 = vperm.slane %v2443, %v1416
    %v2460 = vperm.slane %v2446, %v1416
    %v2461 = vperm.slane %v2449, %v1416
    %v2462 = vperm.slane %v2452, %v1416
    %v2463 = vperm.slane %v2455, %v1416
    %v2464 = vsel %vm1425, %v2457, %v2456
    %v2465 = vsel %vm1427, %v2458, %v2464
    %v2466 = vsel %vm1429, %v2459, %v2465
    %v2467 = vsel %vm1431, %v2460, %v2466
    %v2468 = vsel %vm1433, %v2461, %v2467
    %v2469 = vsel %vm1435, %v2462, %v2468
    %v2470 = vsel %vm1437, %v2463, %v2469
    %v2472 = vsel %vm890, %v2470, -inf
    %2473 = vmax.xlane.f32.xlu0 %v2472
    %v2474 = vpop.xlane.xlu0 %2473
    %v2476 = vperm.slane %v2474, 0
    %v2477 = vperm.slane %v2474, 1
    %v2478 = vperm.slane %v2474, 2
    %v2479 = vperm.slane %v2474, 3
    %v2480 = vperm.slane %v2474, 4
    %v2481 = vperm.slane %v2474, 5
    %v2482 = vperm.slane %v2474, 6
    %v2483 = vperm.slane %v2474, 7
    %v2492 = vsub.f32 %v2416, %v2476
    %v2493 = vsub.f32 %v2417, %v2477
    %v2494 = vsub.f32 %v2418, %v2478
    %v2495 = vsub.f32 %v2419, %v2479
    %v2496 = vsub.f32 %v2420, %v2480
    %v2497 = vsub.f32 %v2421, %v2481
    %v2498 = vsub.f32 %v2422, %v2482
    %v2499 = vsub.f32 %v2423, %v2483
    %v2500 = vmul.f32 %v2492, 1.442695
    %v2501 = vpow.pop %v2500
    %v2502 = vmul.f32 %v2493, 1.442695
    %v2503 = vpow.pop %v2502
    %v2504 = vmul.f32 %v2494, 1.442695
    %v2505 = vpow.pop %v2504
    %v2506 = vmul.f32 %v2495, 1.442695
    %v2507 = vpow.pop %v2506
    %v2508 = vmul.f32 %v2496, 1.442695
    %v2509 = vpow.pop %v2508
    %v2510 = vmul.f32 %v2497, 1.442695
    %v2511 = vpow.pop %v2510
    %v2512 = vmul.f32 %v2498, 1.442695
    %v2513 = vpow.pop %v2512
    %v2514 = vmul.f32 %v2499, 1.442695
    %v2515 = vpow.pop %v2514
    %2524 = vset.pattern.permute.xlu0 0
    %2525 = vperm.xlu0 %2524, %v2501
    %v2526 = vpop.permute.xlu0 %2525
    %2527 = vset.pattern.permute.xlu0 0
    %2528 = vperm.xlu0 %2527, %v2503
    %v2529 = vpop.permute.xlu0 %2528
    %2530 = vset.pattern.permute.xlu0 0
    %2531 = vperm.xlu0 %2530, %v2505
    %v2532 = vpop.permute.xlu0 %2531
    %2533 = vset.pattern.permute.xlu0 0
    %2534 = vperm.xlu0 %2533, %v2507
    %v2535 = vpop.permute.xlu0 %2534
    %2536 = vset.pattern.permute.xlu0 0
    %2537 = vperm.xlu0 %2536, %v2509
    %v2538 = vpop.permute.xlu0 %2537
    %2539 = vset.pattern.permute.xlu0 0
    %2540 = vperm.xlu0 %2539, %v2511
    %v2541 = vpop.permute.xlu0 %2540
    %2542 = vset.pattern.permute.xlu0 0
    %2543 = vperm.xlu0 %2542, %v2513
    %v2544 = vpop.permute.xlu0 %2543
    %2545 = vset.pattern.permute.xlu0 0
    %2546 = vperm.xlu0 %2545, %v2515
    %v2547 = vpop.permute.xlu0 %2546
    %v2548 = vperm.slane %v2526, %v1416
    %v2549 = vperm.slane %v2529, %v1416
    %v2550 = vperm.slane %v2532, %v1416
    %v2551 = vperm.slane %v2535, %v1416
    %v2552 = vperm.slane %v2538, %v1416
    %v2553 = vperm.slane %v2541, %v1416
    %v2554 = vperm.slane %v2544, %v1416
    %v2555 = vperm.slane %v2547, %v1416
    %v2556 = vsel %vm1425, %v2549, %v2548
    %v2557 = vsel %vm1427, %v2550, %v2556
    %v2558 = vsel %vm1429, %v2551, %v2557
    %v2559 = vsel %vm1431, %v2552, %v2558
    %v2560 = vsel %vm1433, %v2553, %v2559
    %v2561 = vsel %vm1435, %v2554, %v2560
    %v2562 = vsel %vm1437, %v2555, %v2561
    %v2564 = vsel %vm890, %v2562, 0.0
    %2565 = vadd.xlane.f32.xlu0 %v2564
    %v2566 = vpop.xlane.xlu0 %2565
    %v2567 = vrcp.pop %v2566
    %v2569 = vperm.slane %v2567, 0
    %v2570 = vperm.slane %v2567, 1
    %v2571 = vperm.slane %v2567, 2
    %v2572 = vperm.slane %v2567, 3
    %v2573 = vperm.slane %v2567, 4
    %v2574 = vperm.slane %v2567, 5
    %v2575 = vperm.slane %v2567, 6
    %v2576 = vperm.slane %v2567, 7
    %v2585 = vmul.f32 %v2501, %v2569
    %v2586 = vmul.f32 %v2503, %v2570
    %v2587 = vmul.f32 %v2505, %v2571
    %v2588 = vmul.f32 %v2507, %v2572
    %v2589 = vmul.f32 %v2509, %v2573
    %v2590 = vmul.f32 %v2511, %v2574
    %v2591 = vmul.f32 %v2513, %v2575
    %v2592 = vmul.f32 %v2515, %v2576
    %2594 = vset.pattern.permute.xlu0 0
    %2595 = vperm.xlu0 %2594, %v2585
    %v2596 = vpop.permute.xlu0 %2595
    %2599 = vset.pattern.permute.xlu0 0
    %2600 = vperm.xlu0 %2599, %v2586
    %v2601 = vpop.permute.xlu0 %2600
    %2604 = vset.pattern.permute.xlu0 0
    %2605 = vperm.xlu0 %2604, %v2587
    %v2606 = vpop.permute.xlu0 %2605
    %2609 = vset.pattern.permute.xlu0 0
    %2610 = vperm.xlu0 %2609, %v2588
    %v2611 = vpop.permute.xlu0 %2610
    %2614 = vset.pattern.permute.xlu0 0
    %2615 = vperm.xlu0 %2614, %v2589
    %v2616 = vpop.permute.xlu0 %2615
    %2619 = vset.pattern.permute.xlu0 0
    %2620 = vperm.xlu0 %2619, %v2590
    %v2621 = vpop.permute.xlu0 %2620
    %2624 = vset.pattern.permute.xlu0 0
    %2625 = vperm.xlu0 %2624, %v2591
    %v2626 = vpop.permute.xlu0 %2625
    %2629 = vset.pattern.permute.xlu0 0
    %2630 = vperm.xlu0 %2629, %v2592
    %v2631 = vpop.permute.xlu0 %2630
    %v2633 = vmul.f32 %v2596, %v2329
    %v2634 = vmul.f32 %v2601, %v2332
    %v2635 = vmul.f32 %v2606, %v2335
    %v2636 = vmul.f32 %v2611, %v2338
    %v2637 = vmul.f32 %v2616, %v2341
    %v2638 = vmul.f32 %v2621, %v2344
    %v2639 = vmul.f32 %v2626, %v2347
    %v2640 = vmul.f32 %v2631, %v2350
    %v2641 = vsel %vm1609, %v2633, 0.0
    %v2642 = vrot.slane %v2641, 4
    %v2643 = vadd.f32 %v2641, %v2642
    %v2644 = vrot.slane %v2643, 2
    %v2645 = vadd.f32 %v2643, %v2644
    %v2646 = vrot.slane %v2645, 1
    %v2647 = vadd.f32 %v2645, %v2646
    %v2648 = vsel %vm1609, %v2634, 0.0
    %v2649 = vrot.slane %v2648, 4
    %v2650 = vadd.f32 %v2648, %v2649
    %v2651 = vrot.slane %v2650, 2
    %v2652 = vadd.f32 %v2650, %v2651
    %v2653 = vrot.slane %v2652, 1
    %v2654 = vadd.f32 %v2652, %v2653
    %v2655 = vsel %vm1609, %v2635, 0.0
    %v2656 = vrot.slane %v2655, 4
    %v2657 = vadd.f32 %v2655, %v2656
    %v2658 = vrot.slane %v2657, 2
    %v2659 = vadd.f32 %v2657, %v2658
    %v2660 = vrot.slane %v2659, 1
    %v2661 = vadd.f32 %v2659, %v2660
    %v2662 = vsel %vm1609, %v2636, 0.0
    %v2663 = vrot.slane %v2662, 4
    %v2664 = vadd.f32 %v2662, %v2663
    %v2665 = vrot.slane %v2664, 2
    %v2666 = vadd.f32 %v2664, %v2665
    %v2667 = vrot.slane %v2666, 1
    %v2668 = vadd.f32 %v2666, %v2667
    %v2669 = vsel %vm1609, %v2637, 0.0
    %v2670 = vrot.slane %v2669, 4
    %v2671 = vadd.f32 %v2669, %v2670
    %v2672 = vrot.slane %v2671, 2
    %v2673 = vadd.f32 %v2671, %v2672
    %v2674 = vrot.slane %v2673, 1
    %v2675 = vadd.f32 %v2673, %v2674
    %v2676 = vsel %vm1609, %v2638, 0.0
    %v2677 = vrot.slane %v2676, 4
    %v2678 = vadd.f32 %v2676, %v2677
    %v2679 = vrot.slane %v2678, 2
    %v2680 = vadd.f32 %v2678, %v2679
    %v2681 = vrot.slane %v2680, 1
    %v2682 = vadd.f32 %v2680, %v2681
    %v2683 = vsel %vm1609, %v2639, 0.0
    %v2684 = vrot.slane %v2683, 4
    %v2685 = vadd.f32 %v2683, %v2684
    %v2686 = vrot.slane %v2685, 2
    %v2687 = vadd.f32 %v2685, %v2686
    %v2688 = vrot.slane %v2687, 1
    %v2689 = vadd.f32 %v2687, %v2688
    %v2690 = vsel %vm1609, %v2640, 0.0
    %v2691 = vrot.slane %v2690, 4
    %v2692 = vadd.f32 %v2690, %v2691
    %v2693 = vrot.slane %v2692, 2
    %v2694 = vadd.f32 %v2692, %v2693
    %v2695 = vrot.slane %v2694, 1
    %v2696 = vadd.f32 %v2694, %v2695
    %2705 = vrot.lane.b32.xlu0 %v2376, 112
    %v2706 = vpop.permute.xlu0 %2705
    %2707 = vrot.lane.b32.xlu0 %v2377, 112
    %v2708 = vpop.permute.xlu0 %2707
    %2709 = vrot.lane.b32.xlu0 %v2378, 112
    %v2710 = vpop.permute.xlu0 %2709
    %2711 = vrot.lane.b32.xlu0 %v2379, 112
    %v2712 = vpop.permute.xlu0 %2711
    %2713 = vrot.lane.b32.xlu0 %v2380, 112
    %v2714 = vpop.permute.xlu0 %2713
    %2715 = vrot.lane.b32.xlu0 %v2381, 112
    %v2716 = vpop.permute.xlu0 %2715
    %2717 = vrot.lane.b32.xlu0 %v2382, 112
    %v2718 = vpop.permute.xlu0 %2717
    %2719 = vrot.lane.b32.xlu0 %v2383, 112
    %v2720 = vpop.permute.xlu0 %2719
    %v2729 = vsel %vm1277, %v2706, 0.0
    %2730 = vadd.xlane.f32.xlu0 %v2729
    %v2731 = vpop.xlane.xlu0 %2730
    %v2732 = vsel %vm1277, %v2708, 0.0
    %2733 = vadd.xlane.f32.xlu0 %v2732
    %v2734 = vpop.xlane.xlu0 %2733
    %v2735 = vsel %vm1277, %v2710, 0.0
    %2736 = vadd.xlane.f32.xlu0 %v2735
    %v2737 = vpop.xlane.xlu0 %2736
    %v2738 = vsel %vm1277, %v2712, 0.0
    %2739 = vadd.xlane.f32.xlu0 %v2738
    %v2740 = vpop.xlane.xlu0 %2739
    %v2741 = vsel %vm1277, %v2714, 0.0
    %2742 = vadd.xlane.f32.xlu0 %v2741
    %v2743 = vpop.xlane.xlu0 %2742
    %v2744 = vsel %vm1277, %v2716, 0.0
    %2745 = vadd.xlane.f32.xlu0 %v2744
    %v2746 = vpop.xlane.xlu0 %2745
    %v2747 = vsel %vm1277, %v2718, 0.0
    %2748 = vadd.xlane.f32.xlu0 %v2747
    %v2749 = vpop.xlane.xlu0 %2748
    %v2750 = vsel %vm1277, %v2720, 0.0
    %2751 = vadd.xlane.f32.xlu0 %v2750
    %v2752 = vpop.xlane.xlu0 %2751
    %v2753 = vmul.f32 %v2731, 0.25
    %v2754 = vmul.f32 %v2734, 0.25
    %v2755 = vmul.f32 %v2737, 0.25
    %v2756 = vmul.f32 %v2740, 0.25
    %v2757 = vmul.f32 %v2743, 0.25
    %v2758 = vmul.f32 %v2746, 0.25
    %v2759 = vmul.f32 %v2749, 0.25
    %v2760 = vmul.f32 %v2752, 0.25
    %v2761 = vadd.f32 %v2753, %v1317
    %v2762 = vadd.f32 %v2754, %v1324
    %v2763 = vadd.f32 %v2755, %v1331
    %v2764 = vadd.f32 %v2756, %v1338
    %v2765 = vadd.f32 %v2757, %v1345
    %v2766 = vadd.f32 %v2758, %v1352
    %v2767 = vadd.f32 %v2759, %v1359
    %v2768 = vadd.f32 %v2760, %v1366
    %2777 = vset.pattern.permute.xlu0 0
    %2778 = vperm.xlu0 %2777, %v2761
    %v2779 = vpop.permute.xlu0 %2778
    %2780 = vset.pattern.permute.xlu0 0
    %2781 = vperm.xlu0 %2780, %v2762
    %v2782 = vpop.permute.xlu0 %2781
    %2783 = vset.pattern.permute.xlu0 0
    %2784 = vperm.xlu0 %2783, %v2763
    %v2785 = vpop.permute.xlu0 %2784
    %2786 = vset.pattern.permute.xlu0 0
    %2787 = vperm.xlu0 %2786, %v2764
    %v2788 = vpop.permute.xlu0 %2787
    %2789 = vset.pattern.permute.xlu0 0
    %2790 = vperm.xlu0 %2789, %v2765
    %v2791 = vpop.permute.xlu0 %2790
    %2792 = vset.pattern.permute.xlu0 0
    %2793 = vperm.xlu0 %2792, %v2766
    %v2794 = vpop.permute.xlu0 %2793
    %2795 = vset.pattern.permute.xlu0 0
    %2796 = vperm.xlu0 %2795, %v2767
    %v2797 = vpop.permute.xlu0 %2796
    %2798 = vset.pattern.permute.xlu0 0
    %2799 = vperm.xlu0 %2798, %v2768
    %v2800 = vpop.permute.xlu0 %2799
    %v2801 = vperm.slane %v2779, %v1416
    %v2802 = vperm.slane %v2782, %v1416
    %v2803 = vperm.slane %v2785, %v1416
    %v2804 = vperm.slane %v2788, %v1416
    %v2805 = vperm.slane %v2791, %v1416
    %v2806 = vperm.slane %v2794, %v1416
    %v2807 = vperm.slane %v2797, %v1416
    %v2808 = vperm.slane %v2800, %v1416
    %v2809 = vsel %vm1425, %v2802, %v2801
    %v2810 = vsel %vm1427, %v2803, %v2809
    %v2811 = vsel %vm1429, %v2804, %v2810
    %v2812 = vsel %vm1431, %v2805, %v2811
    %v2813 = vsel %vm1433, %v2806, %v2812
    %v2814 = vsel %vm1435, %v2807, %v2813
    %v2815 = vsel %vm1437, %v2808, %v2814
    %v2817 = vsel %vm890, %v2815, -inf
    %2818 = vmax.xlane.f32.xlu0 %v2817
    %v2819 = vpop.xlane.xlu0 %2818
    %v2821 = vperm.slane %v2819, 0
    %v2822 = vperm.slane %v2819, 1
    %v2823 = vperm.slane %v2819, 2
    %v2824 = vperm.slane %v2819, 3
    %v2825 = vperm.slane %v2819, 4
    %v2826 = vperm.slane %v2819, 5
    %v2827 = vperm.slane %v2819, 6
    %v2828 = vperm.slane %v2819, 7
    %v2837 = vsub.f32 %v2761, %v2821
    %v2838 = vsub.f32 %v2762, %v2822
    %v2839 = vsub.f32 %v2763, %v2823
    %v2840 = vsub.f32 %v2764, %v2824
    %v2841 = vsub.f32 %v2765, %v2825
    %v2842 = vsub.f32 %v2766, %v2826
    %v2843 = vsub.f32 %v2767, %v2827
    %v2844 = vsub.f32 %v2768, %v2828
    %v2845 = vmul.f32 %v2837, 1.442695
    %v2846 = vpow.pop %v2845
    %v2847 = vmul.f32 %v2838, 1.442695
    %v2848 = vpow.pop %v2847
    %v2849 = vmul.f32 %v2839, 1.442695
    %v2850 = vpow.pop %v2849
    %v2851 = vmul.f32 %v2840, 1.442695
    %v2852 = vpow.pop %v2851
    %v2853 = vmul.f32 %v2841, 1.442695
    %v2854 = vpow.pop %v2853
    %v2855 = vmul.f32 %v2842, 1.442695
    %v2856 = vpow.pop %v2855
    %v2857 = vmul.f32 %v2843, 1.442695
    %v2858 = vpow.pop %v2857
    %v2859 = vmul.f32 %v2844, 1.442695
    %v2860 = vpow.pop %v2859
    %2869 = vset.pattern.permute.xlu0 0
    %2870 = vperm.xlu0 %2869, %v2846
    %v2871 = vpop.permute.xlu0 %2870
    %2872 = vset.pattern.permute.xlu0 0
    %2873 = vperm.xlu0 %2872, %v2848
    %v2874 = vpop.permute.xlu0 %2873
    %2875 = vset.pattern.permute.xlu0 0
    %2876 = vperm.xlu0 %2875, %v2850
    %v2877 = vpop.permute.xlu0 %2876
    %2878 = vset.pattern.permute.xlu0 0
    %2879 = vperm.xlu0 %2878, %v2852
    %v2880 = vpop.permute.xlu0 %2879
    %2881 = vset.pattern.permute.xlu0 0
    %2882 = vperm.xlu0 %2881, %v2854
    %v2883 = vpop.permute.xlu0 %2882
    %2884 = vset.pattern.permute.xlu0 0
    %2885 = vperm.xlu0 %2884, %v2856
    %v2886 = vpop.permute.xlu0 %2885
    %2887 = vset.pattern.permute.xlu0 0
    %2888 = vperm.xlu0 %2887, %v2858
    %v2889 = vpop.permute.xlu0 %2888
    %2890 = vset.pattern.permute.xlu0 0
    %2891 = vperm.xlu0 %2890, %v2860
    %v2892 = vpop.permute.xlu0 %2891
    %v2893 = vperm.slane %v2871, %v1416
    %v2894 = vperm.slane %v2874, %v1416
    %v2895 = vperm.slane %v2877, %v1416
    %v2896 = vperm.slane %v2880, %v1416
    %v2897 = vperm.slane %v2883, %v1416
    %v2898 = vperm.slane %v2886, %v1416
    %v2899 = vperm.slane %v2889, %v1416
    %v2900 = vperm.slane %v2892, %v1416
    %v2901 = vsel %vm1425, %v2894, %v2893
    %v2902 = vsel %vm1427, %v2895, %v2901
    %v2903 = vsel %vm1429, %v2896, %v2902
    %v2904 = vsel %vm1431, %v2897, %v2903
    %v2905 = vsel %vm1433, %v2898, %v2904
    %v2906 = vsel %vm1435, %v2899, %v2905
    %v2907 = vsel %vm1437, %v2900, %v2906
    %v2909 = vsel %vm890, %v2907, 0.0
    %2910 = vadd.xlane.f32.xlu0 %v2909
    %v2911 = vpop.xlane.xlu0 %2910
    %v2912 = vrcp.pop %v2911
    %v2914 = vperm.slane %v2912, 0
    %v2915 = vperm.slane %v2912, 1
    %v2916 = vperm.slane %v2912, 2
    %v2917 = vperm.slane %v2912, 3
    %v2918 = vperm.slane %v2912, 4
    %v2919 = vperm.slane %v2912, 5
    %v2920 = vperm.slane %v2912, 6
    %v2921 = vperm.slane %v2912, 7
    %v2930 = vmul.f32 %v2846, %v2914
    %v2931 = vmul.f32 %v2848, %v2915
    %v2932 = vmul.f32 %v2850, %v2916
    %v2933 = vmul.f32 %v2852, %v2917
    %v2934 = vmul.f32 %v2854, %v2918
    %v2935 = vmul.f32 %v2856, %v2919
    %v2936 = vmul.f32 %v2858, %v2920
    %v2937 = vmul.f32 %v2860, %v2921
    %2939 = vset.pattern.permute.xlu0 0
    %2940 = vperm.xlu0 %2939, %v2930
    %v2941 = vpop.permute.xlu0 %2940
    %2944 = vset.pattern.permute.xlu0 0
    %2945 = vperm.xlu0 %2944, %v2931
    %v2946 = vpop.permute.xlu0 %2945
    %2949 = vset.pattern.permute.xlu0 0
    %2950 = vperm.xlu0 %2949, %v2932
    %v2951 = vpop.permute.xlu0 %2950
    %2954 = vset.pattern.permute.xlu0 0
    %2955 = vperm.xlu0 %2954, %v2933
    %v2956 = vpop.permute.xlu0 %2955
    %2959 = vset.pattern.permute.xlu0 0
    %2960 = vperm.xlu0 %2959, %v2934
    %v2961 = vpop.permute.xlu0 %2960
    %2964 = vset.pattern.permute.xlu0 0
    %2965 = vperm.xlu0 %2964, %v2935
    %v2966 = vpop.permute.xlu0 %2965
    %2969 = vset.pattern.permute.xlu0 0
    %2970 = vperm.xlu0 %2969, %v2936
    %v2971 = vpop.permute.xlu0 %2970
    %2974 = vset.pattern.permute.xlu0 0
    %2975 = vperm.xlu0 %2974, %v2937
    %v2976 = vpop.permute.xlu0 %2975
    %v2978 = vmul.f32 %v2941, %v2329
    %v2979 = vmul.f32 %v2946, %v2332
    %v2980 = vmul.f32 %v2951, %v2335
    %v2981 = vmul.f32 %v2956, %v2338
    %v2982 = vmul.f32 %v2961, %v2341
    %v2983 = vmul.f32 %v2966, %v2344
    %v2984 = vmul.f32 %v2971, %v2347
    %v2985 = vmul.f32 %v2976, %v2350
    %v2986 = vsel %vm1955, %v2978, 0.0
    %v2987 = vrot.slane %v2986, 4
    %v2988 = vadd.f32 %v2986, %v2987
    %v2989 = vrot.slane %v2988, 2
    %v2990 = vadd.f32 %v2988, %v2989
    %v2991 = vrot.slane %v2990, 1
    %v2992 = vadd.f32 %v2990, %v2991
    %v2993 = vsel %vm1955, %v2979, 0.0
    %v2994 = vrot.slane %v2993, 4
    %v2995 = vadd.f32 %v2993, %v2994
    %v2996 = vrot.slane %v2995, 2
    %v2997 = vadd.f32 %v2995, %v2996
    %v2998 = vrot.slane %v2997, 1
    %v2999 = vadd.f32 %v2997, %v2998
    %v3000 = vsel %vm1955, %v2980, 0.0
    %v3001 = vrot.slane %v3000, 4
    %v3002 = vadd.f32 %v3000, %v3001
    %v3003 = vrot.slane %v3002, 2
    %v3004 = vadd.f32 %v3002, %v3003
    %v3005 = vrot.slane %v3004, 1
    %v3006 = vadd.f32 %v3004, %v3005
    %v3007 = vsel %vm1955, %v2981, 0.0
    %v3008 = vrot.slane %v3007, 4
    %v3009 = vadd.f32 %v3007, %v3008
    %v3010 = vrot.slane %v3009, 2
    %v3011 = vadd.f32 %v3009, %v3010
    %v3012 = vrot.slane %v3011, 1
    %v3013 = vadd.f32 %v3011, %v3012
    %v3014 = vsel %vm1955, %v2982, 0.0
    %v3015 = vrot.slane %v3014, 4
    %v3016 = vadd.f32 %v3014, %v3015
    %v3017 = vrot.slane %v3016, 2
    %v3018 = vadd.f32 %v3016, %v3017
    %v3019 = vrot.slane %v3018, 1
    %v3020 = vadd.f32 %v3018, %v3019
    %v3021 = vsel %vm1955, %v2983, 0.0
    %v3022 = vrot.slane %v3021, 4
    %v3023 = vadd.f32 %v3021, %v3022
    %v3024 = vrot.slane %v3023, 2
    %v3025 = vadd.f32 %v3023, %v3024
    %v3026 = vrot.slane %v3025, 1
    %v3027 = vadd.f32 %v3025, %v3026
    %v3028 = vsel %vm1955, %v2984, 0.0
    %v3029 = vrot.slane %v3028, 4
    %v3030 = vadd.f32 %v3028, %v3029
    %v3031 = vrot.slane %v3030, 2
    %v3032 = vadd.f32 %v3030, %v3031
    %v3033 = vrot.slane %v3032, 1
    %v3034 = vadd.f32 %v3032, %v3033
    %v3035 = vsel %vm1955, %v2985, 0.0
    %v3036 = vrot.slane %v3035, 4
    %v3037 = vadd.f32 %v3035, %v3036
    %v3038 = vrot.slane %v3037, 2
    %v3039 = vadd.f32 %v3037, %v3038
    %v3040 = vrot.slane %v3039, 1
    %v3041 = vadd.f32 %v3039, %v3040
    %v3050 = vsel %vm1425, %v2654, %v2647
    %v3051 = vsel %vm1427, %v2661, %v3050
    %v3052 = vsel %vm1429, %v2668, %v3051
    %v3053 = vsel %vm1431, %v2675, %v3052
    %v3054 = vsel %vm1433, %v2682, %v3053
    %v3055 = vsel %vm1435, %v2689, %v3054
    %v3056 = vsel %vm1437, %v2696, %v3055
    %3057 = vrot.lane.b32.xlu0 %v3056, 96
    %v3058 = vpop.permute.xlu0 %3057
    %v3068 = vsel %vm1425, %v2999, %v2992
    %v3069 = vsel %vm1427, %v3006, %v3068
    %v3070 = vsel %vm1429, %v3013, %v3069
    %v3071 = vsel %vm1431, %v3020, %v3070
    %v3072 = vsel %vm1433, %v3027, %v3071
    %v3073 = vsel %vm1435, %v3034, %v3072
    %v3074 = vsel %vm1437, %v3041, %v3073
    %3075 = vrot.lane.b32.xlu0 %v3074, 96
    %v3076 = vpop.permute.xlu0 %3075
    %v3078 = vsel %vm1277, %v3058, %v3076
    %s3079 = scalar_lea.vmem %s14, 32
    %v3080 = vld [vmem:[%s3079] sm:$0xff]
    %v3081 = vld [vmem:[%s3079 + $0x8] sm:$0xff]
    %v3082 = vld [vmem:[%s3079 + $0x10] sm:$0xff]
    %v3083 = vld [vmem:[%s3079 + $0x18] sm:$0xff]
    %v3085 = vsel %vm903, %v3078, 0
    %3087 = vmatpush.msra.mxu0 0.0
    %3088 = vmatpush.msra.mxu0 0.0
    %3089 = vmatpush.msra.mxu0 0.0
    %3090 = vmatpush.msra.mxu0 0.0
    %3091 = vmatpush.msra.mxu0 0.0
    %3092 = vmatpush.msra.mxu0 0.0
    %3093 = vmatpush.msra.mxu0 0.0
    %3094 = vmatpush.msra.mxu0 0.0
    %3095 = vmatpush.msra.mxu0 0.0
    %3096 = vmatpush.msra.mxu0 0.0
    %3097 = vmatpush.msra.mxu0 0.0
    %3098 = vmatpush.msra.mxu0 0.0
    %3099 = vmatpush.msra.mxu0 %v3083
    %3100 = vmatpush.msra.mxu0 %v3082
    %3101 = vmatpush.msra.mxu0 %v3081
    %3102 = vmatpush.msra.mxu0 %v3080
    %3103 = vmatmul.f32.gmra.mxu0 %v3085
    %v3104 = vpop.f32.mrf.mxu0
    %v3105 = vadd.f32 0.0, %v3104
    %3106 = vdwg.mxu0
    %v3107 = vadd.f32 %v2183, %v3105
    %s3108 = scalar_lea.vmem %s15, 1
    %v3109 = vld [vmem:[%s3108] sm:$0x1]
    %v3111 = vperm.slane %v3109, 0
    %v3113 = vadd.f32 %v3107, %v3111
    %s3114 = scalar_lea.vmem [#allocation6], 1
    %v3115 = vld [vmem:[%s3114] sm:$0x1]
    %s3116 = scalar_lea.vmem [#allocation7], 1
    %v3117 = vld [vmem:[%s3116] sm:$0x1]
    %v3118 = vsel %vm903, %v3113, 0.0
    %3119 = vadd.xlane.f32.xlu0 %v3118
    %v3120 = vpop.xlane.xlu0 %3119
    %v3121 = vmul.f32 %v3120, %v913
    %v3122 = vsub.f32 %v3113, %v3121
    %v3123 = vmul.f32 %v3122, %v3122
    %v3124 = vsel %vm903, %v3123, 0.0
    %3125 = vadd.xlane.f32.xlu0 %v3124
    %v3126 = vpop.xlane.xlu0 %3125
    %v3127 = vmul.f32 %v3126, %v913
    %v3128 = vadd.f32 %v3127, 1e-05
    %v3129 = vrsqrt.pop %v3128
    %v3130 = vmul.f32 %v3129, %v3128
    %v3131 = vmul.f32 %v3130, %v3129
    %v3132 = vmul.f32 0.5, %v3131
    %v3133 = vsub.f32 1.5, %v3132
    %v3134 = vmul.f32 %v3129, %v3133
    %vm3135 = vweird.f32 %v3128
    %vm3136 = vweird.f32 %v3129
    %vm3137 = vmor %vm3135, %vm3136
    %v3138 = vsel %vm3137, %v3129, %v3134
    %v3139 = vmul.f32 %v3122, %v3138
    %v3141 = vperm.slane %v3115, 0
    %v3143 = vmul.f32 %v3139, %v3141
    %v3145 = vperm.slane %v3117, 0
    %v3147 = vadd.f32 %v3143, %v3145
    %s3148 = scalar_lea.vmem %s18, 32
    %v3149 = vld [vmem:[%s3148] sm:$0xff]
    %v3150 = vld [vmem:[%s3148 + $0x8] sm:$0xff]
    %v3151 = vld [vmem:[%s3148 + $0x10] sm:$0xff]
    %v3152 = vld [vmem:[%s3148 + $0x18] sm:$0xff]
    %s3153 = scalar_lea.vmem %s19, 1
    %v3154 = vld [vmem:[%s3153] sm:$0x1]
    %v3156 = vperm.slane %v3154, 0
    %v3159 = vsel %vm903, %v3147, 0
    %3161 = vmatpush.msra.mxu0 0.0
    %3162 = vmatpush.msra.mxu0 0.0
    %3163 = vmatpush.msra.mxu0 0.0
    %3164 = vmatpush.msra.mxu0 0.0
    %3165 = vmatpush.msra.mxu0 0.0
    %3166 = vmatpush.msra.mxu0 0.0
    %3167 = vmatpush.msra.mxu0 0.0
    %3168 = vmatpush.msra.mxu0 0.0
    %3169 = vmatpush.msra.mxu0 0.0
    %3170 = vmatpush.msra.mxu0 0.0
    %3171 = vmatpush.msra.mxu0 0.0
    %3172 = vmatpush.msra.mxu0 0.0
    %3173 = vmatpush.msra.mxu0 %v3152
    %3174 = vmatpush.msra.mxu0 %v3151
    %3175 = vmatpush.msra.mxu0 %v3150
    %3176 = vmatpush.msra.mxu0 %v3149
    %3177 = vmatmul.f32.gmra.mxu0 %v3159
    %v3178 = vpop.f32.mrf.mxu0
    %v3179 = vadd.f32 %v3156, %v3178
    %3180 = vdwg.mxu0
    %v3181 = vmax.f32 %v3179, 0.0
    %s3182 = scalar_lea.vmem %s20, 64
    %v3183 = vld [vmem:[%s3182] sm:$0xff]
    %v3184 = vld [vmem:[%s3182 + $0x8] sm:$0xff]
    %v3185 = vld [vmem:[%s3182 + $0x10] sm:$0xff]
    %v3186 = vld [vmem:[%s3182 + $0x18] sm:$0xff]
    %v3187 = vld [vmem:[%s3182 + $0x20] sm:$0xff]
    %v3188 = vld [vmem:[%s3182 + $0x28] sm:$0xff]
    %v3189 = vld [vmem:[%s3182 + $0x30] sm:$0xff]
    %v3190 = vld [vmem:[%s3182 + $0x38] sm:$0xff]
    %v3192 = vsel %vm2154, %v3181, 0
    %3194 = vmatpush.msra.mxu0 0.0
    %3195 = vmatpush.msra.mxu0 0.0
    %3196 = vmatpush.msra.mxu0 0.0
    %3197 = vmatpush.msra.mxu0 0.0
    %3198 = vmatpush.msra.mxu0 0.0
    %3199 = vmatpush.msra.mxu0 0.0
    %3200 = vmatpush.msra.mxu0 0.0
    %3201 = vmatpush.msra.mxu0 0.0
    %3202 = vmatpush.msra.mxu0 %v3190
    %3203 = vmatpush.msra.mxu0 %v3189
    %3204 = vmatpush.msra.mxu0 %v3188
    %3205 = vmatpush.msra.mxu0 %v3187
    %3206 = vmatpush.msra.mxu0 %v3186
    %3207 = vmatpush.msra.mxu0 %v3185
    %3208 = vmatpush.msra.mxu0 %v3184
    %3209 = vmatpush.msra.mxu0 %v3183
    %3210 = vmatmul.f32.gmra.mxu0 %v3192
    %v3211 = vpop.f32.mrf.mxu0
    %v3212 = vadd.f32 0.0, %v3211
    %3213 = vdwg.mxu0
    %v3214 = vadd.f32 %v3113, %v3212
    %s3215 = scalar_lea.vmem %s21, 1
    %v3216 = vld [vmem:[%s3215] sm:$0x1]
    %v3218 = vperm.slane %v3216, 0
    %v3220 = vadd.f32 %v3214, %v3218
    %v3221 = vld [vmem:[#allocation9] sm:$0x1]
    %v3222 = vld [vmem:[#allocation10] sm:$0x1]
    %v3223 = vsel %vm903, %v3220, 0.0
    %3224 = vadd.xlane.f32.xlu0 %v3223
    %v3225 = vpop.xlane.xlu0 %3224
    %v3226 = vmul.f32 %v3225, %v913
    %v3227 = vsub.f32 %v3220, %v3226
    %v3228 = vmul.f32 %v3227, %v3227
    %v3229 = vsel %vm903, %v3228, 0.0
    %3230 = vadd.xlane.f32.xlu0 %v3229
    %v3231 = vpop.xlane.xlu0 %3230
    %v3232 = vmul.f32 %v3231, %v913
    %v3233 = vadd.f32 %v3232, 1e-05
    %v3234 = vrsqrt.pop %v3233
    %v3235 = vmul.f32 %v3234, %v3233
    %v3236 = vmul.f32 %v3235, %v3234
    %v3237 = vmul.f32 0.5, %v3236
    %v3238 = vsub.f32 1.5, %v3237
    %v3239 = vmul.f32 %v3234, %v3238
    %vm3240 = vweird.f32 %v3233
    %vm3241 = vweird.f32 %v3234
    %vm3242 = vmor %vm3240, %vm3241
    %v3243 = vsel %vm3242, %v3234, %v3239
    %v3244 = vmul.f32 %v3227, %v3243
    %v3246 = vperm.slane %v3221, 0
    %v3248 = vmul.f32 %v3244, %v3246
    %v3250 = vperm.slane %v3222, 0
    %v3252 = vadd.f32 %v3248, %v3250
    %v3253 = vld [vmem:[%s24] sm:$0xff]
    %v3254 = vld [vmem:[%s24 + $0x8] sm:$0xff]
    %v3255 = vld [vmem:[%s24 + $0x10] sm:$0xff]
    %v3256 = vld [vmem:[%s24 + $0x18] sm:$0xff]
    %v3257 = vld [vmem:[#allocation12] sm:$0x1]
    %v3259 = vperm.slane %v3257, 0
    %v3262 = vsel %vm903, %v3252, 0
    %3264 = vmatpush.msra.mxu0 0.0
    %3265 = vmatpush.msra.mxu0 0.0
    %3266 = vmatpush.msra.mxu0 0.0
    %3267 = vmatpush.msra.mxu0 0.0
    %3268 = vmatpush.msra.mxu0 0.0
    %3269 = vmatpush.msra.mxu0 0.0
    %3270 = vmatpush.msra.mxu0 0.0
    %3271 = vmatpush.msra.mxu0 0.0
    %3272 = vmatpush.msra.mxu0 0.0
    %3273 = vmatpush.msra.mxu0 0.0
    %3274 = vmatpush.msra.mxu0 0.0
    %3275 = vmatpush.msra.mxu0 0.0
    %3276 = vmatpush.msra.mxu0 %v3256
    %3277 = vmatpush.msra.mxu0 %v3255
    %3278 = vmatpush.msra.mxu0 %v3254
    %3279 = vmatpush.msra.mxu0 %v3253
    %3280 = vmatmul.f32.gmra.mxu0 %v3262
    %v3281 = vpop.f32.mrf.mxu0
    %v3282 = vadd.f32 %v3259, %v3281
    %3283 = vdwg.mxu0
    %3284 = vst.msk [vmem:[%s26] sm:$0xff] %vm1277, %v3282
    // Predicated region
    $region134: #{vae_encoder_forward.1} parent=1 // pred_check
      _
    $region135: #{vae_encoder_forward.1} parent=1 // pred_check_branch
      %3286 = sbr.rel (0) target = $region137
    $region136: #{vae_encoder_forward.1} parent=1 // pred_region
      _
    $region137: #{vae_encoder_forward.1} parent=1 // pred_fallthru
      _
    // Predicated region
    $region138: #{vae_encoder_forward.1} parent=1 // pred_check
      _
    $region139: #{vae_encoder_forward.1} parent=1 // pred_check_branch
      %3288 = sbr.rel (0) target = $region141
    $region140: #{vae_encoder_forward.1} parent=1 // pred_region
      _
    $region141: #{vae_encoder_forward.1} parent=1 // pred_fallthru
      _
    %3289 = vsyncpa [#allocation3], 1
    %3290 = vsyncpa [#allocation5], 1
    %3291 = vsyncpa [#allocation8], 1
    %3292 = vsyncpa [#allocation11], 1

</llo_original>
